<compile_context>
chip_gen: v7x
topology: tpu7x:2x2x1
jax: 0.10.0
libtpu: 0.0.40
codegen_flags: <defaults>
</compile_context>

<pallas_src>
import jax
import jax.numpy as jnp
import numpy as np
from jax.experimental import pallas as pl
from jax.experimental.pallas import tpu as pltpu


def _round_up(x, m):
    return (x + m - 1) // m * m


# ----------------------------------------------------------------------------
# pltpu.roll direction probe (tiny one-off kernel).  The main kernel needs
# "result[p] = a[p + d]" shifts; detect the rotation convention once and fall
# back to an unambiguous slice+concat shift if the probe is inconclusive.
# ----------------------------------------------------------------------------
_ROLL_MODE = None   # +1: pltpu.roll == jnp.roll (out[p]=in[p-shift]); -1: opposite; 0: fallback


def _get_roll_mode():
    global _ROLL_MODE
    if _ROLL_MODE is not None:
        return _ROLL_MODE
    n = 384

    def probe(x_ref, o_ref):
        o_ref[...] = pltpu.roll(x_ref[...], 19, axis=1)

    try:
        x = jnp.arange(8 * n, dtype=jnp.float32).reshape(8, n)
        out = pl.pallas_call(
            probe, out_shape=jax.ShapeDtypeStruct((8, n), jnp.float32))(x)
        v = float(jax.block_until_ready(out)[0, 0])
        if v == float((0 - 19) % n):
            _ROLL_MODE = 1
        elif v == 19.0:
            _ROLL_MODE = -1
        else:
            _ROLL_MODE = 0
    except Exception:
        _ROLL_MODE = 0
    return _ROLL_MODE


# ----------------------------------------------------------------------------
# Fused CascadeRdn kernel (one batch sample per grid step).
# ----------------------------------------------------------------------------
def _make_cascade_kernel(CP, NP, Wp, depth, scaling, roll_mode):
    D0, D1 = depth
    # tap offsets on the flattened (Hp, Wp) padded grid; tap order t = kh*3 + kw
    shifts = [(kh - 1) * Wp + (kw - 1) for kh in range(3) for kw in range(3)]

    def shift_lanes(a, d):
        # s[:, p] = a[:, (p + d) % NP]; circular wrap only lands on halo lanes.
        k = d % NP
        if k == 0:
            return a
        if roll_mode == 1:
            return pltpu.roll(a, (NP - k) % NP, axis=1)
        if roll_mode == -1:
            return pltpu.roll(a, k, axis=1)
        return jnp.concatenate([a[:, k:], a[:, :k]], axis=1)

    def kernel(x_ref, mask_ref, w3_ref, w1_ref, b3_ref, b1_ref, o_ref):
        mask = mask_ref[...]                     # (1, NP): 1 interior, 0 halo/pad lanes
        x = x_ref[0]                             # (CP, NP); halo + pad channels are zero

        def build_patch(a):                      # im2col: (CP, NP) -> (9*CP, NP)
            return jnp.concatenate([shift_lanes(a, d) for d in shifts], axis=0)

        w3_c = 0                                 # trace-time cursors into packed weights
        w1_c = 0
        fl = [x]
        cur = x
        for i in range(D0):
            # ------------------------------ Rdb i ------------------------------
            rdb_in = cur
            feats = [rdb_in]
            patches = [build_patch(rdb_in)]      # built once, reused by convs j..D1-1
            for j in range(D1):
                acc = None
                for s in range(j + 1):           # conv(concat(feats)) == sum of partials
                    part = jnp.dot(w3_ref[w3_c], patches[s],
                                   preferred_element_type=jnp.float32)
                    acc = part if acc is None else acc + part
                    w3_c += 1
                acc = acc + b3_ref[i * D1 + j]   # (CP, 1) lane-broadcast bias
                if j < D1 - 1:
                    acc = jnp.maximum(acc, 0.0)  # ReLU on all but the last Rdb conv
                y = acc * mask                   # re-zero the SAME-padding halo
                feats.append(y)
                if j < D1 - 1:
                    patches.append(build_patch(y))
            res = feats[-1] if scaling == 1.0 else feats[-1] * scaling
            cur = res + rdb_in                   # Rdb residual
            fl.append(cur)
            # --------------- CascadeRdn conv11_i over concat(fl) ---------------
            acc = None
            for s in range(i + 2):
                part = jnp.dot(w1_ref[w1_c], fl[s],
                               preferred_element_type=jnp.float32)
                acc = part if acc is None else acc + part
                w1_c += 1
            cur = (acc + b1_ref[i]) * mask
        o_ref[0] = cur.astype(o_ref.dtype)

    return kernel


def _pack_params(params, C, CP, depth):
    """Split every conv weight into per-source (Cout, 9*Cin)/(Cout, Cin) pieces
    (so the channel concat becomes a sum of partial matmuls), zero-pad C -> CP,
    and stack into four small arrays whose packing order matches the kernel."""
    D0, D1 = depth
    w3_pieces, b3 = [], []
    for i in range(D0):
        for j in range(D1):
            w, b = params["rdn"][i][j]                 # w: (3, 3, C*(j+1), C)
            for s in range(j + 1):
                p = w[:, :, s * C:(s + 1) * C, :]      # (kh, kw, ci, co)
                p = jnp.transpose(p, (3, 0, 1, 2))     # (co, kh, kw, ci)
                p = jnp.pad(p, ((0, CP - C), (0, 0), (0, 0), (0, CP - C)))
                w3_pieces.append(p.reshape(CP, 9 * CP))
            b3.append(jnp.pad(b, (0, CP - C)).reshape(CP, 1))
    w1_pieces, b1 = [], []
    for i in range(D0):
        w, b = params["conv11"][i]                     # w: (1, 1, C*(i+2), C)
        for s in range(i + 2):
            p = w[0, 0, s * C:(s + 1) * C, :]          # (ci, co)
            p = jnp.pad(jnp.transpose(p, (1, 0)), ((0, CP - C), (0, CP - C)))
            w1_pieces.append(p)
        b1.append(jnp.pad(b, (0, CP - C)).reshape(CP, 1))
    return (jnp.stack(w3_pieces), jnp.stack(w1_pieces),
            jnp.stack(b3), jnp.stack(b1))


def cascade_rdn_pallas(x_nchw, params, depth=(3, 3), scaling=1.0):
    """Fused CascadeRdn forward.  x_nchw: (N, C, H, W) float32 (PyTorch layout)."""
    N, C, H, W = x_nchw.shape
    CP = _round_up(C, 8)                  # channel pad -> native 8-sublane tiles
    Hp, Wp = H + 2, W + 2                 # SAME-padding halo for the 3x3 convs
    S = Hp * Wp
    NP = _round_up(S, 128)                # lane pad -> full 128-lane vregs

    # channels-first, spatially padded + flattened, lane-padded input
    xp = jnp.pad(x_nchw, ((0, 0), (0, CP - C), (1, 1), (1, 1)))
    x_flat = jnp.pad(xp.reshape(N, CP, S), ((0, 0), (0, 0), (0, NP - S)))

    # interior mask on the flattened padded grid (1 = real pixel, 0 = halo/pad)
    rr = np.arange(S) // Wp
    cc = np.arange(S) % Wp
    m = ((rr >= 1) & (rr <= H) & (cc >= 1) & (cc <= W)).astype(np.float32)
    mask = jnp.asarray(np.pad(m, (0, NP - S)))[None, :]           # (1, NP)

    w3, w1, b3, b1 = _pack_params(params, C, CP, depth)
    kernel = _make_cascade_kernel(CP, NP, Wp, depth, scaling, _get_roll_mode())

    out_flat = pl.pallas_call(
        kernel,
        out_shape=jax.ShapeDtypeStruct((N, CP, NP), x_nchw.dtype),
        grid_spec=pltpu.PrefetchScalarGridSpec(
            num_scalar_prefetch=0,
            grid=(N,),                                           # one sample per grid step
            in_specs=[
                pl.BlockSpec((1, CP, NP), lambda n: (n, 0, 0)),  # x
                pl.BlockSpec((1, NP), lambda n: (0, 0)),         # interior mask
                pl.BlockSpec(w3.shape, lambda n: (0, 0, 0)),     # packed 3x3 weight pieces
                pl.BlockSpec(w1.shape, lambda n: (0, 0, 0)),     # packed 1x1 weight pieces
                pl.BlockSpec(b3.shape, lambda n: (0, 0, 0)),     # 3x3 biases
                pl.BlockSpec(b1.shape, lambda n: (0, 0, 0)),     # 1x1 biases
            ],
            out_specs=pl.BlockSpec((1, CP, NP), lambda n: (n, 0, 0)),
        ),
        compiler_params=pltpu.CompilerParams(
            dimension_semantics=("parallel",)),                  # v7x: one sample per TC
    )(x_flat, mask, w3, w1, b3, b1)

    out = out_flat[:, :C, :S].reshape(N, C, Hp, Wp)[:, :, 1:1 + H, 1:1 + W]
    return out


# ----------------------------------------------------------------------------
# Pure-JAX reference (mirrors the PyTorch module exactly, NCHW) for validation.
# ----------------------------------------------------------------------------
def _conv_ref(x, w, b, relu=False):
    out = jax.lax.conv_general_dilated(
        x, w, window_strides=(1, 1), padding="SAME",
        dimension_numbers=("NCHW", "HWIO", "NCHW"),
        precision=jax.lax.Precision.HIGHEST)
    out = out + b[None, :, None, None]
    return jnp.maximum(out, 0.0) if relu else out


def cascade_rdn_ref(x, params, depth=(3, 3), scaling=1.0):
    D0, D1 = depth
    fl = [x]
    cur = x
    for i in range(D0):
        rdb_in = cur
        feats = [rdb_in]
        for j in range(D1):
            w, b = params["rdn"][i][j]
            feats.append(_conv_ref(jnp.concatenate(feats, axis=1), w, b,
                                   relu=(j < D1 - 1)))
        cur = feats[-1] * scaling + rdb_in
        fl.append(cur)
        w, b = params["conv11"][i]
        cur = _conv_ref(jnp.concatenate(fl, axis=1), w, b, relu=False)
    return cur


# ----------------------------------------------------------------------------
# Deterministic parameter init (PyTorch-style uniform fan-in scaling).
# ----------------------------------------------------------------------------
def init_conv(key, kh, kw, cin, cout):
    kw_key, kb_key = jax.random.split(key)
    scale = 1.0 / np.sqrt(kh * kw * cin)
    w = jax.random.uniform(kw_key, (kh, kw, cin, cout), jnp.float32, -scale, scale)
    b = jax.random.uniform(kb_key, (cout,), jnp.float32, -scale, scale)
    return w, b


def init_cascade_rdn(key, channels, depth=(3, 3), ks=3):
    params = {"rdn": [], "conv11": []}
    for i in range(depth[0]):
        rdn_p = []
        for j in range(depth[1]):
            key, sub = jax.random.split(key)
            # Rdb conv_j: Conv2d(C + C*j, C, 3, padding=1)
            rdn_p.append(init_conv(sub, ks, ks, channels * (j + 1), channels))
        params["rdn"].append(rdn_p)
        key, sub = jax.random.split(key)
        # CascadeRdn conv11_i: Conv2d(C + C*(i+1), C, 1)
        params["conv11"].append(init_conv(sub, 1, 1, channels * (i + 2), channels))
    return params


if __name__ == "__main__":
    key = jax.random.PRNGKey(0)
    N, C, H, W = 2, 4, 16, 16          # PyTorch NCHW input shape: (2, 4, 16, 16)
    kx, kp = jax.random.split(key)

    x = jax.random.normal(kx, (N, C, H, W), jnp.float32)
    params = init_cascade_rdn(kp, C, depth=(3, 3), ks=3)

    out = jax.block_until_ready(cascade_rdn_pallas(x, params, depth=(3, 3)))
    ref = jax.block_until_ready(cascade_rdn_ref(x, params, depth=(3, 3)))

    assert out.shape == (N, C, H, W)
    np.testing.assert_allclose(np.asarray(out), np.asarray(ref), rtol=2e-3, atol=2e-3)
    print("KERNEL_OK")
</pallas_src>

<mosaic_0001>
module attributes {stable_mosaic.version = 11 : i64} {
  func.func @probe(%arg0: memref<8x384xf32, #tpu.memory_space<vmem>>, %arg1: memref<8x384xf32, #tpu.memory_space<vmem>>) attributes {dimension_semantics = [], scalar_prefetch = 0 : i64, scratch_operands = 0 : i64, tpu.core_type = #tpu.core_type<tc>} {
    %c0 = arith.constant 0 : index
    %c0_0 = arith.constant 0 : index
    %0 = vector.load %arg0[%c0, %c0_0] : memref<8x384xf32, #tpu.memory_space<vmem>>, vector<8x384xf32>
    %c19_i32 = arith.constant 19 : i32
    %1 = tpu.dynamic_rotate %0 by %c19_i32 dim 1 : vector<8x384xf32>, i32 -> vector<8x384xf32>
    %c0_1 = arith.constant 0 : index
    %c0_2 = arith.constant 0 : index
    %2 = vector.load %arg1[%c0_1, %c0_2] : memref<8x384xf32, #tpu.memory_space<vmem>>, vector<8x384xf32>
    tpu.vector_store %arg1[%c0_1, %c0_2], %1 {strides = array<i32>} : memref<8x384xf32, #tpu.memory_space<vmem>>, vector<8x384xf32>,
    return
  }
}

module attributes {stable_mosaic.version = 11 : i64} {
  func.func @kernel(%arg0: i32, %arg1: memref<1x8x384xf32, #tpu.memory_space<vmem>>, %arg2: memref<1x384xf32, #tpu.memory_space<vmem>>, %arg3: memref<18x8x72xf32, #tpu.memory_space<vmem>>, %arg4: memref<9x8x8xf32, #tpu.memory_space<vmem>>, %arg5: memref<9x8x1xf32, #tpu.memory_space<vmem>>, %arg6: memref<3x8x1xf32, #tpu.memory_space<vmem>>, %arg7: memref<1x8x384xf32, #tpu.memory_space<vmem>>) attributes {dimension_semantics = [#tpu.dimension_semantics<parallel>], iteration_bounds = array<i64: 2>, scalar_prefetch = 0 : i64, scratch_operands = 0 : i64, tpu.core_type = #tpu.core_type<tc>, window_params = [{transform_indices = @transform_0, window_bounds = array<i64: 1, 8, 384>}, {pipeline_mode = #tpu.pipeline_mode<synchronous>, transform_indices = @transform_1, window_bounds = array<i64: 1, 384>}, {pipeline_mode = #tpu.pipeline_mode<synchronous>, transform_indices = @transform_2, window_bounds = array<i64: 18, 8, 72>}, {pipeline_mode = #tpu.pipeline_mode<synchronous>, transform_indices = @transform_3, window_bounds = array<i64: 9, 8, 8>}, {pipeline_mode = #tpu.pipeline_mode<synchronous>, transform_indices = @transform_4, window_bounds = array<i64: 9, 8, 1>}, {pipeline_mode = #tpu.pipeline_mode<synchronous>, transform_indices = @transform_5, window_bounds = array<i64: 3, 8, 1>}, {transform_indices = @transform_6, window_bounds = array<i64: 1, 8, 384>}]} {
    %c0 = arith.constant 0 : index
    %c0_0 = arith.constant 0 : index
    %0 = vector.load %arg2[%c0, %c0_0] : memref<1x384xf32, #tpu.memory_space<vmem>>, vector<1x384xf32>
    %c0_1 = arith.constant 0 : index
    %c0_2 = arith.constant 0 : index
    %c0_3 = arith.constant 0 : index
    %1 = vector.load %arg1[%c0_1, %c0_2, %c0_3] : memref<1x8x384xf32, #tpu.memory_space<vmem>>, vector<1x8x384xf32>
    %2 = vector.shape_cast %1 : vector<1x8x384xf32> to vector<8x384xf32>
    %3 = vector.extract_strided_slice %2 {offsets = [0, 365], sizes = [8, 19], strides = [1, 1]} : vector<8x384xf32> to vector<8x19xf32>
    %4 = vector.extract_strided_slice %2 {offsets = [0, 0], sizes = [8, 365], strides = [1, 1]} : vector<8x384xf32> to vector<8x365xf32>
    %5 = tpu.concatenate %3, %4 in 1 : vector<8x19xf32>, vector<8x365xf32> -> vector<8x384xf32>
    %6 = vector.extract_strided_slice %2 {offsets = [0, 366], sizes = [8, 18], strides = [1, 1]} : vector<8x384xf32> to vector<8x18xf32>
    %7 = vector.extract_strided_slice %2 {offsets = [0, 0], sizes = [8, 366], strides = [1, 1]} : vector<8x384xf32> to vector<8x366xf32>
    %8 = tpu.concatenate %6, %7 in 1 : vector<8x18xf32>, vector<8x366xf32> -> vector<8x384xf32>
    %9 = vector.extract_strided_slice %2 {offsets = [0, 367], sizes = [8, 17], strides = [1, 1]} : vector<8x384xf32> to vector<8x17xf32>
    %10 = vector.extract_strided_slice %2 {offsets = [0, 0], sizes = [8, 367], strides = [1, 1]} : vector<8x384xf32> to vector<8x367xf32>
    %11 = tpu.concatenate %9, %10 in 1 : vector<8x17xf32>, vector<8x367xf32> -> vector<8x384xf32>
    %12 = vector.extract_strided_slice %2 {offsets = [0, 383], sizes = [8, 1], strides = [1, 1]} : vector<8x384xf32> to vector<8x1xf32>
    %13 = vector.extract_strided_slice %2 {offsets = [0, 0], sizes = [8, 383], strides = [1, 1]} : vector<8x384xf32> to vector<8x383xf32>
    %14 = tpu.concatenate %12, %13 in 1 : vector<8x1xf32>, vector<8x383xf32> -> vector<8x384xf32>
    %15 = vector.extract_strided_slice %2 {offsets = [0, 1], sizes = [8, 383], strides = [1, 1]} : vector<8x384xf32> to vector<8x383xf32>
    %16 = vector.extract_strided_slice %2 {offsets = [0, 0], sizes = [8, 1], strides = [1, 1]} : vector<8x384xf32> to vector<8x1xf32>
    %17 = tpu.concatenate %15, %16 in 1 : vector<8x383xf32>, vector<8x1xf32> -> vector<8x384xf32>
    %18 = vector.extract_strided_slice %2 {offsets = [0, 17], sizes = [8, 367], strides = [1, 1]} : vector<8x384xf32> to vector<8x367xf32>
    %19 = vector.extract_strided_slice %2 {offsets = [0, 0], sizes = [8, 17], strides = [1, 1]} : vector<8x384xf32> to vector<8x17xf32>
    %20 = tpu.concatenate %18, %19 in 1 : vector<8x367xf32>, vector<8x17xf32> -> vector<8x384xf32>
    %21 = vector.extract_strided_slice %2 {offsets = [0, 18], sizes = [8, 366], strides = [1, 1]} : vector<8x384xf32> to vector<8x366xf32>
    %22 = vector.extract_strided_slice %2 {offsets = [0, 0], sizes = [8, 18], strides = [1, 1]} : vector<8x384xf32> to vector<8x18xf32>
    %23 = tpu.concatenate %21, %22 in 1 : vector<8x366xf32>, vector<8x18xf32> -> vector<8x384xf32>
    %24 = vector.extract_strided_slice %2 {offsets = [0, 19], sizes = [8, 365], strides = [1, 1]} : vector<8x384xf32> to vector<8x365xf32>
    %25 = vector.extract_strided_slice %2 {offsets = [0, 0], sizes = [8, 19], strides = [1, 1]} : vector<8x384xf32> to vector<8x19xf32>
    %26 = tpu.concatenate %24, %25 in 1 : vector<8x365xf32>, vector<8x19xf32> -> vector<8x384xf32>
    %27 = tpu.concatenate %5, %8, %11, %14, %2, %17, %20, %23, %26 in 0 : vector<8x384xf32>, vector<8x384xf32>, vector<8x384xf32>, vector<8x384xf32>, vector<8x384xf32>, vector<8x384xf32>, vector<8x384xf32>, vector<8x384xf32>, vector<8x384xf32> -> vector<72x384xf32>
    %c0_4 = arith.constant 0 : index
    %c0_5 = arith.constant 0 : index
    %c0_6 = arith.constant 0 : index
    %28 = vector.load %arg3[%c0_4, %c0_5, %c0_6] : memref<18x8x72xf32, #tpu.memory_space<vmem>>, vector<1x8x72xf32>
    %29 = vector.shape_cast %28 : vector<1x8x72xf32> to vector<8x72xf32>
    %cst = arith.constant dense<0.000000e+00> : vector<8x384xf32>
    %30 = tpu.matmul %29, %27, %cst {dimension_numbers = #tpu.dot_dimension_numbers<[1], [0], [0], [1], [0, 0, 1, 1], [], []>} : vector<8x72xf32>, vector<72x384xf32>, vector<8x384xf32> -> vector<8x384xf32>
    %c0_7 = arith.constant 0 : index
    %c0_8 = arith.constant 0 : index
    %c0_9 = arith.constant 0 : index
    %31 = vector.load %arg5[%c0_7, %c0_8, %c0_9] : memref<9x8x1xf32, #tpu.memory_space<vmem>>, vector<1x8x1xf32>
    %32 = vector.shape_cast %31 : vector<1x8x1xf32> to vector<8x1xf32>
    %33 = vector.broadcast %32 : vector<8x1xf32> to vector<8x384xf32>
    %34 = arith.addf %30, %33 : vector<8x384xf32>
    %cst_10 = arith.constant 0.000000e+00 : f32
    %35 = vector.broadcast %cst_10 : f32 to vector<8x384xf32>
    %36 = arith.maximumf %34, %35 : vector<8x384xf32>
    %37 = vector.broadcast %0 : vector<1x384xf32> to vector<8x384xf32>
    %38 = arith.mulf %36, %37 : vector<8x384xf32>
    %39 = vector.extract_strided_slice %38 {offsets = [0, 365], sizes = [8, 19], strides = [1, 1]} : vector<8x384xf32> to vector<8x19xf32>
    %40 = vector.extract_strided_slice %38 {offsets = [0, 0], sizes = [8, 365], strides = [1, 1]} : vector<8x384xf32> to vector<8x365xf32>
    %41 = tpu.concatenate %39, %40 in 1 : vector<8x19xf32>, vector<8x365xf32> -> vector<8x384xf32>
    %42 = vector.extract_strided_slice %38 {offsets = [0, 366], sizes = [8, 18], strides = [1, 1]} : vector<8x384xf32> to vector<8x18xf32>
    %43 = vector.extract_strided_slice %38 {offsets = [0, 0], sizes = [8, 366], strides = [1, 1]} : vector<8x384xf32> to vector<8x366xf32>
    %44 = tpu.concatenate %42, %43 in 1 : vector<8x18xf32>, vector<8x366xf32> -> vector<8x384xf32>
    %45 = vector.extract_strided_slice %38 {offsets = [0, 367], sizes = [8, 17], strides = [1, 1]} : vector<8x384xf32> to vector<8x17xf32>
    %46 = vector.extract_strided_slice %38 {offsets = [0, 0], sizes = [8, 367], strides = [1, 1]} : vector<8x384xf32> to vector<8x367xf32>
    %47 = tpu.concatenate %45, %46 in 1 : vector<8x17xf32>, vector<8x367xf32> -> vector<8x384xf32>
    %48 = vector.extract_strided_slice %38 {offsets = [0, 383], sizes = [8, 1], strides = [1, 1]} : vector<8x384xf32> to vector<8x1xf32>
    %49 = vector.extract_strided_slice %38 {offsets = [0, 0], sizes = [8, 383], strides = [1, 1]} : vector<8x384xf32> to vector<8x383xf32>
    %50 = tpu.concatenate %48, %49 in 1 : vector<8x1xf32>, vector<8x383xf32> -> vector<8x384xf32>
    %51 = vector.extract_strided_slice %38 {offsets = [0, 1], sizes = [8, 383], strides = [1, 1]} : vector<8x384xf32> to vector<8x383xf32>
    %52 = vector.extract_strided_slice %38 {offsets = [0, 0], sizes = [8, 1], strides = [1, 1]} : vector<8x384xf32> to vector<8x1xf32>
    %53 = tpu.concatenate %51, %52 in 1 : vector<8x383xf32>, vector<8x1xf32> -> vector<8x384xf32>
    %54 = vector.extract_strided_slice %38 {offsets = [0, 17], sizes = [8, 367], strides = [1, 1]} : vector<8x384xf32> to vector<8x367xf32>
    %55 = vector.extract_strided_slice %38 {offsets = [0, 0], sizes = [8, 17], strides = [1, 1]} : vector<8x384xf32> to vector<8x17xf32>
    %56 = tpu.concatenate %54, %55 in 1 : vector<8x367xf32>, vector<8x17xf32> -> vector<8x384xf32>
    %57 = vector.extract_strided_slice %38 {offsets = [0, 18], sizes = [8, 366], strides = [1, 1]} : vector<8x384xf32> to vector<8x366xf32>
    %58 = vector.extract_strided_slice %38 {offsets = [0, 0], sizes = [8, 18], strides = [1, 1]} : vector<8x384xf32> to vector<8x18xf32>
    %59 = tpu.concatenate %57, %58 in 1 : vector<8x366xf32>, vector<8x18xf32> -> vector<8x384xf32>
    %60 = vector.extract_strided_slice %38 {offsets = [0, 19], sizes = [8, 365], strides = [1, 1]} : vector<8x384xf32> to vector<8x365xf32>
    %61 = vector.extract_strided_slice %38 {offsets = [0, 0], sizes = [8, 19], strides = [1, 1]} : vector<8x384xf32> to vector<8x19xf32>
    %62 = tpu.concatenate %60, %61 in 1 : vector<8x365xf32>, vector<8x19xf32> -> vector<8x384xf32>
    %63 = tpu.concatenate %41, %44, %47, %50, %38, %53, %56, %59, %62 in 0 : vector<8x384xf32>, vector<8x384xf32>, vector<8x384xf32>, vector<8x384xf32>, vector<8x384xf32>, vector<8x384xf32>, vector<8x384xf32>, vector<8x384xf32>, vector<8x384xf32> -> vector<72x384xf32>
    %c1 = arith.constant 1 : index
    %c0_11 = arith.constant 0 : index
    %c0_12 = arith.constant 0 : index
    %64 = vector.load %arg3[%c1, %c0_11, %c0_12] : memref<18x8x72xf32, #tpu.memory_space<vmem>>, vector<1x8x72xf32>
    %65 = vector.shape_cast %64 : vector<1x8x72xf32> to vector<8x72xf32>
    %cst_13 = arith.constant dense<0.000000e+00> : vector<8x384xf32>
    %66 = tpu.matmul %65, %27, %cst_13 {dimension_numbers = #tpu.dot_dimension_numbers<[1], [0], [0], [1], [0, 0, 1, 1], [], []>} : vector<8x72xf32>, vector<72x384xf32>, vector<8x384xf32> -> vector<8x384xf32>
    %c2 = arith.constant 2 : index
    %c0_14 = arith.constant 0 : index
    %c0_15 = arith.constant 0 : index
    %67 = vector.load %arg3[%c2, %c0_14, %c0_15] : memref<18x8x72xf32, #tpu.memory_space<vmem>>, vector<1x8x72xf32>
    %68 = vector.shape_cast %67 : vector<1x8x72xf32> to vector<8x72xf32>
    %cst_16 = arith.constant dense<0.000000e+00> : vector<8x384xf32>
    %69 = tpu.matmul %68, %63, %cst_16 {dimension_numbers = #tpu.dot_dimension_numbers<[1], [0], [0], [1], [0, 0, 1, 1], [], []>} : vector<8x72xf32>, vector<72x384xf32>, vector<8x384xf32> -> vector<8x384xf32>
    %70 = arith.addf %66, %69 : vector<8x384xf32>
    %c1_17 = arith.constant 1 : index
    %c0_18 = arith.constant 0 : index
    %c0_19 = arith.constant 0 : index
    %71 = vector.load %arg5[%c1_17, %c0_18, %c0_19] : memref<9x8x1xf32, #tpu.memory_space<vmem>>, vector<1x8x1xf32>
    %72 = vector.shape_cast %71 : vector<1x8x1xf32> to vector<8x1xf32>
    %73 = vector.broadcast %72 : vector<8x1xf32> to vector<8x384xf32>
    %74 = arith.addf %70, %73 : vector<8x384xf32>
    %cst_20 = arith.constant 0.000000e+00 : f32
    %75 = vector.broadcast %cst_20 : f32 to vector<8x384xf32>
    %76 = arith.maximumf %74, %75 : vector<8x384xf32>
    %77 = vector.broadcast %0 : vector<1x384xf32> to vector<8x384xf32>
    %78 = arith.mulf %76, %77 : vector<8x384xf32>
    %79 = vector.extract_strided_slice %78 {offsets = [0, 365], sizes = [8, 19], strides = [1, 1]} : vector<8x384xf32> to vector<8x19xf32>
    %80 = vector.extract_strided_slice %78 {offsets = [0, 0], sizes = [8, 365], strides = [1, 1]} : vector<8x384xf32> to vector<8x365xf32>
    %81 = tpu.concatenate %79, %80 in 1 : vector<8x19xf32>, vector<8x365xf32> -> vector<8x384xf32>
    %82 = vector.extract_strided_slice %78 {offsets = [0, 366], sizes = [8, 18], strides = [1, 1]} : vector<8x384xf32> to vector<8x18xf32>
    %83 = vector.extract_strided_slice %78 {offsets = [0, 0], sizes = [8, 366], strides = [1, 1]} : vector<8x384xf32> to vector<8x366xf32>
    %84 = tpu.concatenate %82, %83 in 1 : vector<8x18xf32>, vector<8x366xf32> -> vector<8x384xf32>
    %85 = vector.extract_strided_slice %78 {offsets = [0, 367], sizes = [8, 17], strides = [1, 1]} : vector<8x384xf32> to vector<8x17xf32>
    %86 = vector.extract_strided_slice %78 {offsets = [0, 0], sizes = [8, 367], strides = [1, 1]} : vector<8x384xf32> to vector<8x367xf32>
    %87 = tpu.concatenate %85, %86 in 1 : vector<8x17xf32>, vector<8x367xf32> -> vector<8x384xf32>
    %88 = vector.extract_strided_slice %78 {offsets = [0, 383], sizes = [8, 1], strides = [1, 1]} : vector<8x384xf32> to vector<8x1xf32>
    %89 = vector.extract_strided_slice %78 {offsets = [0, 0], sizes = [8, 383], strides = [1, 1]} : vector<8x384xf32> to vector<8x383xf32>
    %90 = tpu.concatenate %88, %89 in 1 : vector<8x1xf32>, vector<8x383xf32> -> vector<8x384xf32>
    %91 = vector.extract_strided_slice %78 {offsets = [0, 1], sizes = [8, 383], strides = [1, 1]} : vector<8x384xf32> to vector<8x383xf32>
    %92 = vector.extract_strided_slice %78 {offsets = [0, 0], sizes = [8, 1], strides = [1, 1]} : vector<8x384xf32> to vector<8x1xf32>
    %93 = tpu.concatenate %91, %92 in 1 : vector<8x383xf32>, vector<8x1xf32> -> vector<8x384xf32>
    %94 = vector.extract_strided_slice %78 {offsets = [0, 17], sizes = [8, 367], strides = [1, 1]} : vector<8x384xf32> to vector<8x367xf32>
    %95 = vector.extract_strided_slice %78 {offsets = [0, 0], sizes = [8, 17], strides = [1, 1]} : vector<8x384xf32> to vector<8x17xf32>
    %96 = tpu.concatenate %94, %95 in 1 : vector<8x367xf32>, vector<8x17xf32> -> vector<8x384xf32>
    %97 = vector.extract_strided_slice %78 {offsets = [0, 18], sizes = [8, 366], strides = [1, 1]} : vector<8x384xf32> to vector<8x366xf32>
    %98 = vector.extract_strided_slice %78 {offsets = [0, 0], sizes = [8, 18], strides = [1, 1]} : vector<8x384xf32> to vector<8x18xf32>
    %99 = tpu.concatenate %97, %98 in 1 : vector<8x366xf32>, vector<8x18xf32> -> vector<8x384xf32>
    %100 = vector.extract_strided_slice %78 {offsets = [0, 19], sizes = [8, 365], strides = [1, 1]} : vector<8x384xf32> to vector<8x365xf32>
    %101 = vector.extract_strided_slice %78 {offsets = [0, 0], sizes = [8, 19], strides = [1, 1]} : vector<8x384xf32> to vector<8x19xf32>
    %102 = tpu.concatenate %100, %101 in 1 : vector<8x365xf32>, vector<8x19xf32> -> vector<8x384xf32>
    %103 = tpu.concatenate %81, %84, %87, %90, %78, %93, %96, %99, %102 in 0 : vector<8x384xf32>, vector<8x384xf32>, vector<8x384xf32>, vector<8x384xf32>, vector<8x384xf32>, vector<8x384xf32>, vector<8x384xf32>, vector<8x384xf32>, vector<8x384xf32> -> vector<72x384xf32>
    %c3 = arith.constant 3 : index
    %c0_21 = arith.constant 0 : index
    %c0_22 = arith.constant 0 : index
    %104 = vector.load %arg3[%c3, %c0_21, %c0_22] : memref<18x8x72xf32, #tpu.memory_space<vmem>>, vector<1x8x72xf32>
    %105 = vector.shape_cast %104 : vector<1x8x72xf32> to vector<8x72xf32>
    %cst_23 = arith.constant dense<0.000000e+00> : vector<8x384xf32>
    %106 = tpu.matmul %105, %27, %cst_23 {dimension_numbers = #tpu.dot_dimension_numbers<[1], [0], [0], [1], [0, 0, 1, 1], [], []>} : vector<8x72xf32>, vector<72x384xf32>, vector<8x384xf32> -> vector<8x384xf32>
    %c4 = arith.constant 4 : index
    %c0_24 = arith.constant 0 : index
    %c0_25 = arith.constant 0 : index
    %107 = vector.load %arg3[%c4, %c0_24, %c0_25] : memref<18x8x72xf32, #tpu.memory_space<vmem>>, vector<1x8x72xf32>
    %108 = vector.shape_cast %107 : vector<1x8x72xf32> to vector<8x72xf32>
    %cst_26 = arith.constant dense<0.000000e+00> : vector<8x384xf32>
    %109 = tpu.matmul %108, %63, %cst_26 {dimension_numbers = #tpu.dot_dimension_numbers<[1], [0], [0], [1], [0, 0, 1, 1], [], []>} : vector<8x72xf32>, vector<72x384xf32>, vector<8x384xf32> -> vector<8x384xf32>
    %110 = arith.addf %106, %109 : vector<8x384xf32>
    %c5 = arith.constant 5 : index
    %c0_27 = arith.constant 0 : index
    %c0_28 = arith.constant 0 : index
    %111 = vector.load %arg3[%c5, %c0_27, %c0_28] : memref<18x8x72xf32, #tpu.memory_space<vmem>>, vector<1x8x72xf32>
    %112 = vector.shape_cast %111 : vector<1x8x72xf32> to vector<8x72xf32>
    %cst_29 = arith.constant dense<0.000000e+00> : vector<8x384xf32>
    %113 = tpu.matmul %112, %103, %cst_29 {dimension_numbers = #tpu.dot_dimension_numbers<[1], [0], [0], [1], [0, 0, 1, 1], [], []>} : vector<8x72xf32>, vector<72x384xf32>, vector<8x384xf32> -> vector<8x384xf32>
    %114 = arith.addf %110, %113 : vector<8x384xf32>
    %c2_30 = arith.constant 2 : index
    %c0_31 = arith.constant 0 : index
    %c0_32 = arith.constant 0 : index
    %115 = vector.load %arg5[%c2_30, %c0_31, %c0_32] : memref<9x8x1xf32, #tpu.memory_space<vmem>>, vector<1x8x1xf32>
    %116 = vector.shape_cast %115 : vector<1x8x1xf32> to vector<8x1xf32>
    %117 = vector.broadcast %116 : vector<8x1xf32> to vector<8x384xf32>
    %118 = arith.addf %114, %117 : vector<8x384xf32>
    %119 = vector.broadcast %0 : vector<1x384xf32> to vector<8x384xf32>
    %120 = arith.mulf %118, %119 : vector<8x384xf32>
    %121 = arith.addf %120, %2 : vector<8x384xf32>
    %c0_33 = arith.constant 0 : index
    %c0_34 = arith.constant 0 : index
    %c0_35 = arith.constant 0 : index
    %122 = vector.load %arg4[%c0_33, %c0_34, %c0_35] : memref<9x8x8xf32, #tpu.memory_space<vmem>>, vector<1x8x8xf32>
    %123 = vector.shape_cast %122 : vector<1x8x8xf32> to vector<8x8xf32>
    %cst_36 = arith.constant dense<0.000000e+00> : vector<8x384xf32>
    %124 = tpu.matmul %123, %2, %cst_36 {dimension_numbers = #tpu.dot_dimension_numbers<[1], [0], [0], [1], [0, 0, 1, 1], [], []>} : vector<8x8xf32>, vector<8x384xf32>, vector<8x384xf32> -> vector<8x384xf32>
    %c1_37 = arith.constant 1 : index
    %c0_38 = arith.constant 0 : index
    %c0_39 = arith.constant 0 : index
    %125 = vector.load %arg4[%c1_37, %c0_38, %c0_39] : memref<9x8x8xf32, #tpu.memory_space<vmem>>, vector<1x8x8xf32>
    %126 = vector.shape_cast %125 : vector<1x8x8xf32> to vector<8x8xf32>
    %cst_40 = arith.constant dense<0.000000e+00> : vector<8x384xf32>
    %127 = tpu.matmul %126, %121, %cst_40 {dimension_numbers = #tpu.dot_dimension_numbers<[1], [0], [0], [1], [0, 0, 1, 1], [], []>} : vector<8x8xf32>, vector<8x384xf32>, vector<8x384xf32> -> vector<8x384xf32>
    %128 = arith.addf %124, %127 : vector<8x384xf32>
    %c0_41 = arith.constant 0 : index
    %c0_42 = arith.constant 0 : index
    %c0_43 = arith.constant 0 : index
    %129 = vector.load %arg6[%c0_41, %c0_42, %c0_43] : memref<3x8x1xf32, #tpu.memory_space<vmem>>, vector<1x8x1xf32>
    %130 = vector.shape_cast %129 : vector<1x8x1xf32> to vector<8x1xf32>
    %131 = vector.broadcast %130 : vector<8x1xf32> to vector<8x384xf32>
    %132 = arith.addf %128, %131 : vector<8x384xf32>
    %133 = vector.broadcast %0 : vector<1x384xf32> to vector<8x384xf32>
    %134 = arith.mulf %132, %133 : vector<8x384xf32>
    %135 = vector.extract_strided_slice %134 {offsets = [0, 365], sizes = [8, 19], strides = [1, 1]} : vector<8x384xf32> to vector<8x19xf32>
    %136 = vector.extract_strided_slice %134 {offsets = [0, 0], sizes = [8, 365], strides = [1, 1]} : vector<8x384xf32> to vector<8x365xf32>
    %137 = tpu.concatenate %135, %136 in 1 : vector<8x19xf32>, vector<8x365xf32> -> vector<8x384xf32>
    %138 = vector.extract_strided_slice %134 {offsets = [0, 366], sizes = [8, 18], strides = [1, 1]} : vector<8x384xf32> to vector<8x18xf32>
    %139 = vector.extract_strided_slice %134 {offsets = [0, 0], sizes = [8, 366], strides = [1, 1]} : vector<8x384xf32> to vector<8x366xf32>
    %140 = tpu.concatenate %138, %139 in 1 : vector<8x18xf32>, vector<8x366xf32> -> vector<8x384xf32>
    %141 = vector.extract_strided_slice %134 {offsets = [0, 367], sizes = [8, 17], strides = [1, 1]} : vector<8x384xf32> to vector<8x17xf32>
    %142 = vector.extract_strided_slice %134 {offsets = [0, 0], sizes = [8, 367], strides = [1, 1]} : vector<8x384xf32> to vector<8x367xf32>
    %143 = tpu.concatenate %141, %142 in 1 : vector<8x17xf32>, vector<8x367xf32> -> vector<8x384xf32>
    %144 = vector.extract_strided_slice %134 {offsets = [0, 383], sizes = [8, 1], strides = [1, 1]} : vector<8x384xf32> to vector<8x1xf32>
    %145 = vector.extract_strided_slice %134 {offsets = [0, 0], sizes = [8, 383], strides = [1, 1]} : vector<8x384xf32> to vector<8x383xf32>
    %146 = tpu.concatenate %144, %145 in 1 : vector<8x1xf32>, vector<8x383xf32> -> vector<8x384xf32>
    %147 = vector.extract_strided_slice %134 {offsets = [0, 1], sizes = [8, 383], strides = [1, 1]} : vector<8x384xf32> to vector<8x383xf32>
    %148 = vector.extract_strided_slice %134 {offsets = [0, 0], sizes = [8, 1], strides = [1, 1]} : vector<8x384xf32> to vector<8x1xf32>
    %149 = tpu.concatenate %147, %148 in 1 : vector<8x383xf32>, vector<8x1xf32> -> vector<8x384xf32>
    %150 = vector.extract_strided_slice %134 {offsets = [0, 17], sizes = [8, 367], strides = [1, 1]} : vector<8x384xf32> to vector<8x367xf32>
    %151 = vector.extract_strided_slice %134 {offsets = [0, 0], sizes = [8, 17], strides = [1, 1]} : vector<8x384xf32> to vector<8x17xf32>
    %152 = tpu.concatenate %150, %151 in 1 : vector<8x367xf32>, vector<8x17xf32> -> vector<8x384xf32>
    %153 = vector.extract_strided_slice %134 {offsets = [0, 18], sizes = [8, 366], strides = [1, 1]} : vector<8x384xf32> to vector<8x366xf32>
    %154 = vector.extract_strided_slice %134 {offsets = [0, 0], sizes = [8, 18], strides = [1, 1]} : vector<8x384xf32> to vector<8x18xf32>
    %155 = tpu.concatenate %153, %154 in 1 : vector<8x366xf32>, vector<8x18xf32> -> vector<8x384xf32>
    %156 = vector.extract_strided_slice %134 {offsets = [0, 19], sizes = [8, 365], strides = [1, 1]} : vector<8x384xf32> to vector<8x365xf32>
    %157 = vector.extract_strided_slice %134 {offsets = [0, 0], sizes = [8, 19], strides = [1, 1]} : vector<8x384xf32> to vector<8x19xf32>
    %158 = tpu.concatenate %156, %157 in 1 : vector<8x365xf32>, vector<8x19xf32> -> vector<8x384xf32>
    %159 = tpu.concatenate %137, %140, %143, %146, %134, %149, %152, %155, %158 in 0 : vector<8x384xf32>, vector<8x384xf32>, vector<8x384xf32>, vector<8x384xf32>, vector<8x384xf32>, vector<8x384xf32>, vector<8x384xf32>, vector<8x384xf32>, vector<8x384xf32> -> vector<72x384xf32>
    %c6 = arith.constant 6 : index
    %c0_44 = arith.constant 0 : index
    %c0_45 = arith.constant 0 : index
    %160 = vector.load %arg3[%c6, %c0_44, %c0_45] : memref<18x8x72xf32, #tpu.memory_space<vmem>>, vector<1x8x72xf32>
    %161 = vector.shape_cast %160 : vector<1x8x72xf32> to vector<8x72xf32>
    %cst_46 = arith.constant dense<0.000000e+00> : vector<8x384xf32>
    %162 = tpu.matmul %161, %159, %cst_46 {dimension_numbers = #tpu.dot_dimension_numbers<[1], [0], [0], [1], [0, 0, 1, 1], [], []>} : vector<8x72xf32>, vector<72x384xf32>, vector<8x384xf32> -> vector<8x384xf32>
    %c3_47 = arith.constant 3 : index
    %c0_48 = arith.constant 0 : index
    %c0_49 = arith.constant 0 : index
    %163 = vector.load %arg5[%c3_47, %c0_48, %c0_49] : memref<9x8x1xf32, #tpu.memory_space<vmem>>, vector<1x8x1xf32>
    %164 = vector.shape_cast %163 : vector<1x8x1xf32> to vector<8x1xf32>
    %165 = vector.broadcast %164 : vector<8x1xf32> to vector<8x384xf32>
    %166 = arith.addf %162, %165 : vector<8x384xf32>
    %cst_50 = arith.constant 0.000000e+00 : f32
    %167 = vector.broadcast %cst_50 : f32 to vector<8x384xf32>
    %168 = arith.maximumf %166, %167 : vector<8x384xf32>
    %169 = vector.broadcast %0 : vector<1x384xf32> to vector<8x384xf32>
    %170 = arith.mulf %168, %169 : vector<8x384xf32>
    %171 = vector.extract_strided_slice %170 {offsets = [0, 365], sizes = [8, 19], strides = [1, 1]} : vector<8x384xf32> to vector<8x19xf32>
    %172 = vector.extract_strided_slice %170 {offsets = [0, 0], sizes = [8, 365], strides = [1, 1]} : vector<8x384xf32> to vector<8x365xf32>
    %173 = tpu.concatenate %171, %172 in 1 : vector<8x19xf32>, vector<8x365xf32> -> vector<8x384xf32>
    %174 = vector.extract_strided_slice %170 {offsets = [0, 366], sizes = [8, 18], strides = [1, 1]} : vector<8x384xf32> to vector<8x18xf32>
    %175 = vector.extract_strided_slice %170 {offsets = [0, 0], sizes = [8, 366], strides = [1, 1]} : vector<8x384xf32> to vector<8x366xf32>
    %176 = tpu.concatenate %174, %175 in 1 : vector<8x18xf32>, vector<8x366xf32> -> vector<8x384xf32>
    %177 = vector.extract_strided_slice %170 {offsets = [0, 367], sizes = [8, 17], strides = [1, 1]} : vector<8x384xf32> to vector<8x17xf32>
    %178 = vector.extract_strided_slice %170 {offsets = [0, 0], sizes = [8, 367], strides = [1, 1]} : vector<8x384xf32> to vector<8x367xf32>
    %179 = tpu.concatenate %177, %178 in 1 : vector<8x17xf32>, vector<8x367xf32> -> vector<8x384xf32>
    %180 = vector.extract_strided_slice %170 {offsets = [0, 383], sizes = [8, 1], strides = [1, 1]} : vector<8x384xf32> to vector<8x1xf32>
    %181 = vector.extract_strided_slice %170 {offsets = [0, 0], sizes = [8, 383], strides = [1, 1]} : vector<8x384xf32> to vector<8x383xf32>
    %182 = tpu.concatenate %180, %181 in 1 : vector<8x1xf32>, vector<8x383xf32> -> vector<8x384xf32>
    %183 = vector.extract_strided_slice %170 {offsets = [0, 1], sizes = [8, 383], strides = [1, 1]} : vector<8x384xf32> to vector<8x383xf32>
    %184 = vector.extract_strided_slice %170 {offsets = [0, 0], sizes = [8, 1], strides = [1, 1]} : vector<8x384xf32> to vector<8x1xf32>
    %185 = tpu.concatenate %183, %184 in 1 : vector<8x383xf32>, vector<8x1xf32> -> vector<8x384xf32>
    %186 = vector.extract_strided_slice %170 {offsets = [0, 17], sizes = [8, 367], strides = [1, 1]} : vector<8x384xf32> to vector<8x367xf32>
    %187 = vector.extract_strided_slice %170 {offsets = [0, 0], sizes = [8, 17], strides = [1, 1]} : vector<8x384xf32> to vector<8x17xf32>
    %188 = tpu.concatenate %186, %187 in 1 : vector<8x367xf32>, vector<8x17xf32> -> vector<8x384xf32>
    %189 = vector.extract_strided_slice %170 {offsets = [0, 18], sizes = [8, 366], strides = [1, 1]} : vector<8x384xf32> to vector<8x366xf32>
    %190 = vector.extract_strided_slice %170 {offsets = [0, 0], sizes = [8, 18], strides = [1, 1]} : vector<8x384xf32> to vector<8x18xf32>
    %191 = tpu.concatenate %189, %190 in 1 : vector<8x366xf32>, vector<8x18xf32> -> vector<8x384xf32>
    %192 = vector.extract_strided_slice %170 {offsets = [0, 19], sizes = [8, 365], strides = [1, 1]} : vector<8x384xf32> to vector<8x365xf32>
    %193 = vector.extract_strided_slice %170 {offsets = [0, 0], sizes = [8, 19], strides = [1, 1]} : vector<8x384xf32> to vector<8x19xf32>
    %194 = tpu.concatenate %192, %193 in 1 : vector<8x365xf32>, vector<8x19xf32> -> vector<8x384xf32>
    %195 = tpu.concatenate %173, %176, %179, %182, %170, %185, %188, %191, %194 in 0 : vector<8x384xf32>, vector<8x384xf32>, vector<8x384xf32>, vector<8x384xf32>, vector<8x384xf32>, vector<8x384xf32>, vector<8x384xf32>, vector<8x384xf32>, vector<8x384xf32> -> vector<72x384xf32>
    %c7 = arith.constant 7 : index
    %c0_51 = arith.constant 0 : index
    %c0_52 = arith.constant 0 : index
    %196 = vector.load %arg3[%c7, %c0_51, %c0_52] : memref<18x8x72xf32, #tpu.memory_space<vmem>>, vector<1x8x72xf32>
    %197 = vector.shape_cast %196 : vector<1x8x72xf32> to vector<8x72xf32>
    %cst_53 = arith.constant dense<0.000000e+00> : vector<8x384xf32>
    %198 = tpu.matmul %197, %159, %cst_53 {dimension_numbers = #tpu.dot_dimension_numbers<[1], [0], [0], [1], [0, 0, 1, 1], [], []>} : vector<8x72xf32>, vector<72x384xf32>, vector<8x384xf32> -> vector<8x384xf32>
    %c8 = arith.constant 8 : index
    %c0_54 = arith.constant 0 : index
    %c0_55 = arith.constant 0 : index
    %199 = vector.load %arg3[%c8, %c0_54, %c0_55] : memref<18x8x72xf32, #tpu.memory_space<vmem>>, vector<1x8x72xf32>
    %200 = vector.shape_cast %199 : vector<1x8x72xf32> to vector<8x72xf32>
    %cst_56 = arith.constant dense<0.000000e+00> : vector<8x384xf32>
    %201 = tpu.matmul %200, %195, %cst_56 {dimension_numbers = #tpu.dot_dimension_numbers<[1], [0], [0], [1], [0, 0, 1, 1], [], []>} : vector<8x72xf32>, vector<72x384xf32>, vector<8x384xf32> -> vector<8x384xf32>
    %202 = arith.addf %198, %201 : vector<8x384xf32>
    %c4_57 = arith.constant 4 : index
    %c0_58 = arith.constant 0 : index
    %c0_59 = arith.constant 0 : index
    %203 = vector.load %arg5[%c4_57, %c0_58, %c0_59] : memref<9x8x1xf32, #tpu.memory_space<vmem>>, vector<1x8x1xf32>
    %204 = vector.shape_cast %203 : vector<1x8x1xf32> to vector<8x1xf32>
    %205 = vector.broadcast %204 : vector<8x1xf32> to vector<8x384xf32>
    %206 = arith.addf %202, %205 : vector<8x384xf32>
    %cst_60 = arith.constant 0.000000e+00 : f32
    %207 = vector.broadcast %cst_60 : f32 to vector<8x384xf32>
    %208 = arith.maximumf %206, %207 : vector<8x384xf32>
    %209 = vector.broadcast %0 : vector<1x384xf32> to vector<8x384xf32>
    %210 = arith.mulf %208, %209 : vector<8x384xf32>
    %211 = vector.extract_strided_slice %210 {offsets = [0, 365], sizes = [8, 19], strides = [1, 1]} : vector<8x384xf32> to vector<8x19xf32>
    %212 = vector.extract_strided_slice %210 {offsets = [0, 0], sizes = [8, 365], strides = [1, 1]} : vector<8x384xf32> to vector<8x365xf32>
    %213 = tpu.concatenate %211, %212 in 1 : vector<8x19xf32>, vector<8x365xf32> -> vector<8x384xf32>
    %214 = vector.extract_strided_slice %210 {offsets = [0, 366], sizes = [8, 18], strides = [1, 1]} : vector<8x384xf32> to vector<8x18xf32>
    %215 = vector.extract_strided_slice %210 {offsets = [0, 0], sizes = [8, 366], strides = [1, 1]} : vector<8x384xf32> to vector<8x366xf32>
    %216 = tpu.concatenate %214, %215 in 1 : vector<8x18xf32>, vector<8x366xf32> -> vector<8x384xf32>
    %217 = vector.extract_strided_slice %210 {offsets = [0, 367], sizes = [8, 17], strides = [1, 1]} : vector<8x384xf32> to vector<8x17xf32>
    %218 = vector.extract_strided_slice %210 {offsets = [0, 0], sizes = [8, 367], strides = [1, 1]} : vector<8x384xf32> to vector<8x367xf32>
    %219 = tpu.concatenate %217, %218 in 1 : vector<8x17xf32>, vector<8x367xf32> -> vector<8x384xf32>
    %220 = vector.extract_strided_slice %210 {offsets = [0, 383], sizes = [8, 1], strides = [1, 1]} : vector<8x384xf32> to vector<8x1xf32>
    %221 = vector.extract_strided_slice %210 {offsets = [0, 0], sizes = [8, 383], strides = [1, 1]} : vector<8x384xf32> to vector<8x383xf32>
    %222 = tpu.concatenate %220, %221 in 1 : vector<8x1xf32>, vector<8x383xf32> -> vector<8x384xf32>
    %223 = vector.extract_strided_slice %210 {offsets = [0, 1], sizes = [8, 383], strides = [1, 1]} : vector<8x384xf32> to vector<8x383xf32>
    %224 = vector.extract_strided_slice %210 {offsets = [0, 0], sizes = [8, 1], strides = [1, 1]} : vector<8x384xf32> to vector<8x1xf32>
    %225 = tpu.concatenate %223, %224 in 1 : vector<8x383xf32>, vector<8x1xf32> -> vector<8x384xf32>
    %226 = vector.extract_strided_slice %210 {offsets = [0, 17], sizes = [8, 367], strides = [1, 1]} : vector<8x384xf32> to vector<8x367xf32>
    %227 = vector.extract_strided_slice %210 {offsets = [0, 0], sizes = [8, 17], strides = [1, 1]} : vector<8x384xf32> to vector<8x17xf32>
    %228 = tpu.concatenate %226, %227 in 1 : vector<8x367xf32>, vector<8x17xf32> -> vector<8x384xf32>
    %229 = vector.extract_strided_slice %210 {offsets = [0, 18], sizes = [8, 366], strides = [1, 1]} : vector<8x384xf32> to vector<8x366xf32>
    %230 = vector.extract_strided_slice %210 {offsets = [0, 0], sizes = [8, 18], strides = [1, 1]} : vector<8x384xf32> to vector<8x18xf32>
    %231 = tpu.concatenate %229, %230 in 1 : vector<8x366xf32>, vector<8x18xf32> -> vector<8x384xf32>
    %232 = vector.extract_strided_slice %210 {offsets = [0, 19], sizes = [8, 365], strides = [1, 1]} : vector<8x384xf32> to vector<8x365xf32>
    %233 = vector.extract_strided_slice %210 {offsets = [0, 0], sizes = [8, 19], strides = [1, 1]} : vector<8x384xf32> to vector<8x19xf32>
    %234 = tpu.concatenate %232, %233 in 1 : vector<8x365xf32>, vector<8x19xf32> -> vector<8x384xf32>
    %235 = tpu.concatenate %213, %216, %219, %222, %210, %225, %228, %231, %234 in 0 : vector<8x384xf32>, vector<8x384xf32>, vector<8x384xf32>, vector<8x384xf32>, vector<8x384xf32>, vector<8x384xf32>, vector<8x384xf32>, vector<8x384xf32>, vector<8x384xf32> -> vector<72x384xf32>
    %c9 = arith.constant 9 : index
    %c0_61 = arith.constant 0 : index
    %c0_62 = arith.constant 0 : index
    %236 = vector.load %arg3[%c9, %c0_61, %c0_62] : memref<18x8x72xf32, #tpu.memory_space<vmem>>, vector<1x8x72xf32>
    %237 = vector.shape_cast %236 : vector<1x8x72xf32> to vector<8x72xf32>
    %cst_63 = arith.constant dense<0.000000e+00> : vector<8x384xf32>
    %238 = tpu.matmul %237, %159, %cst_63 {dimension_numbers = #tpu.dot_dimension_numbers<[1], [0], [0], [1], [0, 0, 1, 1], [], []>} : vector<8x72xf32>, vector<72x384xf32>, vector<8x384xf32> -> vector<8x384xf32>
    %c10 = arith.constant 10 : index
    %c0_64 = arith.constant 0 : index
    %c0_65 = arith.constant 0 : index
    %239 = vector.load %arg3[%c10, %c0_64, %c0_65] : memref<18x8x72xf32, #tpu.memory_space<vmem>>, vector<1x8x72xf32>
    %240 = vector.shape_cast %239 : vector<1x8x72xf32> to vector<8x72xf32>
    %cst_66 = arith.constant dense<0.000000e+00> : vector<8x384xf32>
    %241 = tpu.matmul %240, %195, %cst_66 {dimension_numbers = #tpu.dot_dimension_numbers<[1], [0], [0], [1], [0, 0, 1, 1], [], []>} : vector<8x72xf32>, vector<72x384xf32>, vector<8x384xf32> -> vector<8x384xf32>
    %242 = arith.addf %238, %241 : vector<8x384xf32>
    %c11 = arith.constant 11 : index
    %c0_67 = arith.constant 0 : index
    %c0_68 = arith.constant 0 : index
    %243 = vector.load %arg3[%c11, %c0_67, %c0_68] : memref<18x8x72xf32, #tpu.memory_space<vmem>>, vector<1x8x72xf32>
    %244 = vector.shape_cast %243 : vector<1x8x72xf32> to vector<8x72xf32>
    %cst_69 = arith.constant dense<0.000000e+00> : vector<8x384xf32>
    %245 = tpu.matmul %244, %235, %cst_69 {dimension_numbers = #tpu.dot_dimension_numbers<[1], [0], [0], [1], [0, 0, 1, 1], [], []>} : vector<8x72xf32>, vector<72x384xf32>, vector<8x384xf32> -> vector<8x384xf32>
    %246 = arith.addf %242, %245 : vector<8x384xf32>
    %c5_70 = arith.constant 5 : index
    %c0_71 = arith.constant 0 : index
    %c0_72 = arith.constant 0 : index
    %247 = vector.load %arg5[%c5_70, %c0_71, %c0_72] : memref<9x8x1xf32, #tpu.memory_space<vmem>>, vector<1x8x1xf32>
    %248 = vector.shape_cast %247 : vector<1x8x1xf32> to vector<8x1xf32>
    %249 = vector.broadcast %248 : vector<8x1xf32> to vector<8x384xf32>
    %250 = arith.addf %246, %249 : vector<8x384xf32>
    %251 = vector.broadcast %0 : vector<1x384xf32> to vector<8x384xf32>
    %252 = arith.mulf %250, %251 : vector<8x384xf32>
    %253 = arith.addf %252, %134 : vector<8x384xf32>
    %c2_73 = arith.constant 2 : index
    %c0_74 = arith.constant 0 : index
    %c0_75 = arith.constant 0 : index
    %254 = vector.load %arg4[%c2_73, %c0_74, %c0_75] : memref<9x8x8xf32, #tpu.memory_space<vmem>>, vector<1x8x8xf32>
    %255 = vector.shape_cast %254 : vector<1x8x8xf32> to vector<8x8xf32>
    %cst_76 = arith.constant dense<0.000000e+00> : vector<8x384xf32>
    %256 = tpu.matmul %255, %2, %cst_76 {dimension_numbers = #tpu.dot_dimension_numbers<[1], [0], [0], [1], [0, 0, 1, 1], [], []>} : vector<8x8xf32>, vector<8x384xf32>, vector<8x384xf32> -> vector<8x384xf32>
    %c3_77 = arith.constant 3 : index
    %c0_78 = arith.constant 0 : index
    %c0_79 = arith.constant 0 : index
    %257 = vector.load %arg4[%c3_77, %c0_78, %c0_79] : memref<9x8x8xf32, #tpu.memory_space<vmem>>, vector<1x8x8xf32>
    %258 = vector.shape_cast %257 : vector<1x8x8xf32> to vector<8x8xf32>
    %cst_80 = arith.constant dense<0.000000e+00> : vector<8x384xf32>
    %259 = tpu.matmul %258, %121, %cst_80 {dimension_numbers = #tpu.dot_dimension_numbers<[1], [0], [0], [1], [0, 0, 1, 1], [], []>} : vector<8x8xf32>, vector<8x384xf32>, vector<8x384xf32> -> vector<8x384xf32>
    %260 = arith.addf %256, %259 : vector<8x384xf32>
    %c4_81 = arith.constant 4 : index
    %c0_82 = arith.constant 0 : index
    %c0_83 = arith.constant 0 : index
    %261 = vector.load %arg4[%c4_81, %c0_82, %c0_83] : memref<9x8x8xf32, #tpu.memory_space<vmem>>, vector<1x8x8xf32>
    %262 = vector.shape_cast %261 : vector<1x8x8xf32> to vector<8x8xf32>
    %cst_84 = arith.constant dense<0.000000e+00> : vector<8x384xf32>
    %263 = tpu.matmul %262, %253, %cst_84 {dimension_numbers = #tpu.dot_dimension_numbers<[1], [0], [0], [1], [0, 0, 1, 1], [], []>} : vector<8x8xf32>, vector<8x384xf32>, vector<8x384xf32> -> vector<8x384xf32>
    %264 = arith.addf %260, %263 : vector<8x384xf32>
    %c1_85 = arith.constant 1 : index
    %c0_86 = arith.constant 0 : index
    %c0_87 = arith.constant 0 : index
    %265 = vector.load %arg6[%c1_85, %c0_86, %c0_87] : memref<3x8x1xf32, #tpu.memory_space<vmem>>, vector<1x8x1xf32>
    %266 = vector.shape_cast %265 : vector<1x8x1xf32> to vector<8x1xf32>
    %267 = vector.broadcast %266 : vector<8x1xf32> to vector<8x384xf32>
    %268 = arith.addf %264, %267 : vector<8x384xf32>
    %269 = vector.broadcast %0 : vector<1x384xf32> to vector<8x384xf32>
    %270 = arith.mulf %268, %269 : vector<8x384xf32>
    %271 = vector.extract_strided_slice %270 {offsets = [0, 365], sizes = [8, 19], strides = [1, 1]} : vector<8x384xf32> to vector<8x19xf32>
    %272 = vector.extract_strided_slice %270 {offsets = [0, 0], sizes = [8, 365], strides = [1, 1]} : vector<8x384xf32> to vector<8x365xf32>
    %273 = tpu.concatenate %271, %272 in 1 : vector<8x19xf32>, vector<8x365xf32> -> vector<8x384xf32>
    %274 = vector.extract_strided_slice %270 {offsets = [0, 366], sizes = [8, 18], strides = [1, 1]} : vector<8x384xf32> to vector<8x18xf32>
    %275 = vector.extract_strided_slice %270 {offsets = [0, 0], sizes = [8, 366], strides = [1, 1]} : vector<8x384xf32> to vector<8x366xf32>
    %276 = tpu.concatenate %274, %275 in 1 : vector<8x18xf32>, vector<8x366xf32> -> vector<8x384xf32>
    %277 = vector.extract_strided_slice %270 {offsets = [0, 367], sizes = [8, 17], strides = [1, 1]} : vector<8x384xf32> to vector<8x17xf32>
    %278 = vector.extract_strided_slice %270 {offsets = [0, 0], sizes = [8, 367], strides = [1, 1]} : vector<8x384xf32> to vector<8x367xf32>
    %279 = tpu.concatenate %277, %278 in 1 : vector<8x17xf32>, vector<8x367xf32> -> vector<8x384xf32>
    %280 = vector.extract_strided_slice %270 {offsets = [0, 383], sizes = [8, 1], strides = [1, 1]} : vector<8x384xf32> to vector<8x1xf32>
    %281 = vector.extract_strided_slice %270 {offsets = [0, 0], sizes = [8, 383], strides = [1, 1]} : vector<8x384xf32> to vector<8x383xf32>
    %282 = tpu.concatenate %280, %281 in 1 : vector<8x1xf32>, vector<8x383xf32> -> vector<8x384xf32>
    %283 = vector.extract_strided_slice %270 {offsets = [0, 1], sizes = [8, 383], strides = [1, 1]} : vector<8x384xf32> to vector<8x383xf32>
    %284 = vector.extract_strided_slice %270 {offsets = [0, 0], sizes = [8, 1], strides = [1, 1]} : vector<8x384xf32> to vector<8x1xf32>
    %285 = tpu.concatenate %283, %284 in 1 : vector<8x383xf32>, vector<8x1xf32> -> vector<8x384xf32>
    %286 = vector.extract_strided_slice %270 {offsets = [0, 17], sizes = [8, 367], strides = [1, 1]} : vector<8x384xf32> to vector<8x367xf32>
    %287 = vector.extract_strided_slice %270 {offsets = [0, 0], sizes = [8, 17], strides = [1, 1]} : vector<8x384xf32> to vector<8x17xf32>
    %288 = tpu.concatenate %286, %287 in 1 : vector<8x367xf32>, vector<8x17xf32> -> vector<8x384xf32>
    %289 = vector.extract_strided_slice %270 {offsets = [0, 18], sizes = [8, 366], strides = [1, 1]} : vector<8x384xf32> to vector<8x366xf32>
    %290 = vector.extract_strided_slice %270 {offsets = [0, 0], sizes = [8, 18], strides = [1, 1]} : vector<8x384xf32> to vector<8x18xf32>
    %291 = tpu.concatenate %289, %290 in 1 : vector<8x366xf32>, vector<8x18xf32> -> vector<8x384xf32>
    %292 = vector.extract_strided_slice %270 {offsets = [0, 19], sizes = [8, 365], strides = [1, 1]} : vector<8x384xf32> to vector<8x365xf32>
    %293 = vector.extract_strided_slice %270 {offsets = [0, 0], sizes = [8, 19], strides = [1, 1]} : vector<8x384xf32> to vector<8x19xf32>
    %294 = tpu.concatenate %292, %293 in 1 : vector<8x365xf32>, vector<8x19xf32> -> vector<8x384xf32>
    %295 = tpu.concatenate %273, %276, %279, %282, %270, %285, %288, %291, %294 in 0 : vector<8x384xf32>, vector<8x384xf32>, vector<8x384xf32>, vector<8x384xf32>, vector<8x384xf32>, vector<8x384xf32>, vector<8x384xf32>, vector<8x384xf32>, vector<8x384xf32> -> vector<72x384xf32>
    %c12 = arith.constant 12 : index
    %c0_88 = arith.constant 0 : index
    %c0_89 = arith.constant 0 : index
    %296 = vector.load %arg3[%c12, %c0_88, %c0_89] : memref<18x8x72xf32, #tpu.memory_space<vmem>>, vector<1x8x72xf32>
    %297 = vector.shape_cast %296 : vector<1x8x72xf32> to vector<8x72xf32>
    %cst_90 = arith.constant dense<0.000000e+00> : vector<8x384xf32>
    %298 = tpu.matmul %297, %295, %cst_90 {dimension_numbers = #tpu.dot_dimension_numbers<[1], [0], [0], [1], [0, 0, 1, 1], [], []>} : vector<8x72xf32>, vector<72x384xf32>, vector<8x384xf32> -> vector<8x384xf32>
    %c6_91 = arith.constant 6 : index
    %c0_92 = arith.constant 0 : index
    %c0_93 = arith.constant 0 : index
    %299 = vector.load %arg5[%c6_91, %c0_92, %c0_93] : memref<9x8x1xf32, #tpu.memory_space<vmem>>, vector<1x8x1xf32>
    %300 = vector.shape_cast %299 : vector<1x8x1xf32> to vector<8x1xf32>
    %301 = vector.broadcast %300 : vector<8x1xf32> to vector<8x384xf32>
    %302 = arith.addf %298, %301 : vector<8x384xf32>
    %cst_94 = arith.constant 0.000000e+00 : f32
    %303 = vector.broadcast %cst_94 : f32 to vector<8x384xf32>
    %304 = arith.maximumf %302, %303 : vector<8x384xf32>
    %305 = vector.broadcast %0 : vector<1x384xf32> to vector<8x384xf32>
    %306 = arith.mulf %304, %305 : vector<8x384xf32>
    %307 = vector.extract_strided_slice %306 {offsets = [0, 365], sizes = [8, 19], strides = [1, 1]} : vector<8x384xf32> to vector<8x19xf32>
    %308 = vector.extract_strided_slice %306 {offsets = [0, 0], sizes = [8, 365], strides = [1, 1]} : vector<8x384xf32> to vector<8x365xf32>
    %309 = tpu.concatenate %307, %308 in 1 : vector<8x19xf32>, vector<8x365xf32> -> vector<8x384xf32>
    %310 = vector.extract_strided_slice %306 {offsets = [0, 366], sizes = [8, 18], strides = [1, 1]} : vector<8x384xf32> to vector<8x18xf32>
    %311 = vector.extract_strided_slice %306 {offsets = [0, 0], sizes = [8, 366], strides = [1, 1]} : vector<8x384xf32> to vector<8x366xf32>
    %312 = tpu.concatenate %310, %311 in 1 : vector<8x18xf32>, vector<8x366xf32> -> vector<8x384xf32>
    %313 = vector.extract_strided_slice %306 {offsets = [0, 367], sizes = [8, 17], strides = [1, 1]} : vector<8x384xf32> to vector<8x17xf32>
    %314 = vector.extract_strided_slice %306 {offsets = [0, 0], sizes = [8, 367], strides = [1, 1]} : vector<8x384xf32> to vector<8x367xf32>
    %315 = tpu.concatenate %313, %314 in 1 : vector<8x17xf32>, vector<8x367xf32> -> vector<8x384xf32>
    %316 = vector.extract_strided_slice %306 {offsets = [0, 383], sizes = [8, 1], strides = [1, 1]} : vector<8x384xf32> to vector<8x1xf32>
    %317 = vector.extract_strided_slice %306 {offsets = [0, 0], sizes = [8, 383], strides = [1, 1]} : vector<8x384xf32> to vector<8x383xf32>
    %318 = tpu.concatenate %316, %317 in 1 : vector<8x1xf32>, vector<8x383xf32> -> vector<8x384xf32>
    %319 = vector.extract_strided_slice %306 {offsets = [0, 1], sizes = [8, 383], strides = [1, 1]} : vector<8x384xf32> to vector<8x383xf32>
    %320 = vector.extract_strided_slice %306 {offsets = [0, 0], sizes = [8, 1], strides = [1, 1]} : vector<8x384xf32> to vector<8x1xf32>
    %321 = tpu.concatenate %319, %320 in 1 : vector<8x383xf32>, vector<8x1xf32> -> vector<8x384xf32>
    %322 = vector.extract_strided_slice %306 {offsets = [0, 17], sizes = [8, 367], strides = [1, 1]} : vector<8x384xf32> to vector<8x367xf32>
    %323 = vector.extract_strided_slice %306 {offsets = [0, 0], sizes = [8, 17], strides = [1, 1]} : vector<8x384xf32> to vector<8x17xf32>
    %324 = tpu.concatenate %322, %323 in 1 : vector<8x367xf32>, vector<8x17xf32> -> vector<8x384xf32>
    %325 = vector.extract_strided_slice %306 {offsets = [0, 18], sizes = [8, 366], strides = [1, 1]} : vector<8x384xf32> to vector<8x366xf32>
    %326 = vector.extract_strided_slice %306 {offsets = [0, 0], sizes = [8, 18], strides = [1, 1]} : vector<8x384xf32> to vector<8x18xf32>
    %327 = tpu.concatenate %325, %326 in 1 : vector<8x366xf32>, vector<8x18xf32> -> vector<8x384xf32>
    %328 = vector.extract_strided_slice %306 {offsets = [0, 19], sizes = [8, 365], strides = [1, 1]} : vector<8x384xf32> to vector<8x365xf32>
    %329 = vector.extract_strided_slice %306 {offsets = [0, 0], sizes = [8, 19], strides = [1, 1]} : vector<8x384xf32> to vector<8x19xf32>
    %330 = tpu.concatenate %328, %329 in 1 : vector<8x365xf32>, vector<8x19xf32> -> vector<8x384xf32>
    %331 = tpu.concatenate %309, %312, %315, %318, %306, %321, %324, %327, %330 in 0 : vector<8x384xf32>, vector<8x384xf32>, vector<8x384xf32>, vector<8x384xf32>, vector<8x384xf32>, vector<8x384xf32>, vector<8x384xf32>, vector<8x384xf32>, vector<8x384xf32> -> vector<72x384xf32>
    %c13 = arith.constant 13 : index
    %c0_95 = arith.constant 0 : index
    %c0_96 = arith.constant 0 : index
    %332 = vector.load %arg3[%c13, %c0_95, %c0_96] : memref<18x8x72xf32, #tpu.memory_space<vmem>>, vector<1x8x72xf32>
    %333 = vector.shape_cast %332 : vector<1x8x72xf32> to vector<8x72xf32>
    %cst_97 = arith.constant dense<0.000000e+00> : vector<8x384xf32>
    %334 = tpu.matmul %333, %295, %cst_97 {dimension_numbers = #tpu.dot_dimension_numbers<[1], [0], [0], [1], [0, 0, 1, 1], [], []>} : vector<8x72xf32>, vector<72x384xf32>, vector<8x384xf32> -> vector<8x384xf32>
    %c14 = arith.constant 14 : index
    %c0_98 = arith.constant 0 : index
    %c0_99 = arith.constant 0 : index
    %335 = vector.load %arg3[%c14, %c0_98, %c0_99] : memref<18x8x72xf32, #tpu.memory_space<vmem>>, vector<1x8x72xf32>
    %336 = vector.shape_cast %335 : vector<1x8x72xf32> to vector<8x72xf32>
    %cst_100 = arith.constant dense<0.000000e+00> : vector<8x384xf32>
    %337 = tpu.matmul %336, %331, %cst_100 {dimension_numbers = #tpu.dot_dimension_numbers<[1], [0], [0], [1], [0, 0, 1, 1], [], []>} : vector<8x72xf32>, vector<72x384xf32>, vector<8x384xf32> -> vector<8x384xf32>
    %338 = arith.addf %334, %337 : vector<8x384xf32>
    %c7_101 = arith.constant 7 : index
    %c0_102 = arith.constant 0 : index
    %c0_103 = arith.constant 0 : index
    %339 = vector.load %arg5[%c7_101, %c0_102, %c0_103] : memref<9x8x1xf32, #tpu.memory_space<vmem>>, vector<1x8x1xf32>
    %340 = vector.shape_cast %339 : vector<1x8x1xf32> to vector<8x1xf32>
    %341 = vector.broadcast %340 : vector<8x1xf32> to vector<8x384xf32>
    %342 = arith.addf %338, %341 : vector<8x384xf32>
    %cst_104 = arith.constant 0.000000e+00 : f32
    %343 = vector.broadcast %cst_104 : f32 to vector<8x384xf32>
    %344 = arith.maximumf %342, %343 : vector<8x384xf32>
    %345 = vector.broadcast %0 : vector<1x384xf32> to vector<8x384xf32>
    %346 = arith.mulf %344, %345 : vector<8x384xf32>
    %347 = vector.extract_strided_slice %346 {offsets = [0, 365], sizes = [8, 19], strides = [1, 1]} : vector<8x384xf32> to vector<8x19xf32>
    %348 = vector.extract_strided_slice %346 {offsets = [0, 0], sizes = [8, 365], strides = [1, 1]} : vector<8x384xf32> to vector<8x365xf32>
    %349 = tpu.concatenate %347, %348 in 1 : vector<8x19xf32>, vector<8x365xf32> -> vector<8x384xf32>
    %350 = vector.extract_strided_slice %346 {offsets = [0, 366], sizes = [8, 18], strides = [1, 1]} : vector<8x384xf32> to vector<8x18xf32>
    %351 = vector.extract_strided_slice %346 {offsets = [0, 0], sizes = [8, 366], strides = [1, 1]} : vector<8x384xf32> to vector<8x366xf32>
    %352 = tpu.concatenate %350, %351 in 1 : vector<8x18xf32>, vector<8x366xf32> -> vector<8x384xf32>
    %353 = vector.extract_strided_slice %346 {offsets = [0, 367], sizes = [8, 17], strides = [1, 1]} : vector<8x384xf32> to vector<8x17xf32>
    %354 = vector.extract_strided_slice %346 {offsets = [0, 0], sizes = [8, 367], strides = [1, 1]} : vector<8x384xf32> to vector<8x367xf32>
    %355 = tpu.concatenate %353, %354 in 1 : vector<8x17xf32>, vector<8x367xf32> -> vector<8x384xf32>
    %356 = vector.extract_strided_slice %346 {offsets = [0, 383], sizes = [8, 1], strides = [1, 1]} : vector<8x384xf32> to vector<8x1xf32>
    %357 = vector.extract_strided_slice %346 {offsets = [0, 0], sizes = [8, 383], strides = [1, 1]} : vector<8x384xf32> to vector<8x383xf32>
    %358 = tpu.concatenate %356, %357 in 1 : vector<8x1xf32>, vector<8x383xf32> -> vector<8x384xf32>
    %359 = vector.extract_strided_slice %346 {offsets = [0, 1], sizes = [8, 383], strides = [1, 1]} : vector<8x384xf32> to vector<8x383xf32>
    %360 = vector.extract_strided_slice %346 {offsets = [0, 0], sizes = [8, 1], strides = [1, 1]} : vector<8x384xf32> to vector<8x1xf32>
    %361 = tpu.concatenate %359, %360 in 1 : vector<8x383xf32>, vector<8x1xf32> -> vector<8x384xf32>
    %362 = vector.extract_strided_slice %346 {offsets = [0, 17], sizes = [8, 367], strides = [1, 1]} : vector<8x384xf32> to vector<8x367xf32>
    %363 = vector.extract_strided_slice %346 {offsets = [0, 0], sizes = [8, 17], strides = [1, 1]} : vector<8x384xf32> to vector<8x17xf32>
    %364 = tpu.concatenate %362, %363 in 1 : vector<8x367xf32>, vector<8x17xf32> -> vector<8x384xf32>
    %365 = vector.extract_strided_slice %346 {offsets = [0, 18], sizes = [8, 366], strides = [1, 1]} : vector<8x384xf32> to vector<8x366xf32>
    %366 = vector.extract_strided_slice %346 {offsets = [0, 0], sizes = [8, 18], strides = [1, 1]} : vector<8x384xf32> to vector<8x18xf32>
    %367 = tpu.concatenate %365, %366 in 1 : vector<8x366xf32>, vector<8x18xf32> -> vector<8x384xf32>
    %368 = vector.extract_strided_slice %346 {offsets = [0, 19], sizes = [8, 365], strides = [1, 1]} : vector<8x384xf32> to vector<8x365xf32>
    %369 = vector.extract_strided_slice %346 {offsets = [0, 0], sizes = [8, 19], strides = [1, 1]} : vector<8x384xf32> to vector<8x19xf32>
    %370 = tpu.concatenate %368, %369 in 1 : vector<8x365xf32>, vector<8x19xf32> -> vector<8x384xf32>
    %371 = tpu.concatenate %349, %352, %355, %358, %346, %361, %364, %367, %370 in 0 : vector<8x384xf32>, vector<8x384xf32>, vector<8x384xf32>, vector<8x384xf32>, vector<8x384xf32>, vector<8x384xf32>, vector<8x384xf32>, vector<8x384xf32>, vector<8x384xf32> -> vector<72x384xf32>
    %c15 = arith.constant 15 : index
    %c0_105 = arith.constant 0 : index
    %c0_106 = arith.constant 0 : index
    %372 = vector.load %arg3[%c15, %c0_105, %c0_106] : memref<18x8x72xf32, #tpu.memory_space<vmem>>, vector<1x8x72xf32>
    %373 = vector.shape_cast %372 : vector<1x8x72xf32> to vector<8x72xf32>
    %cst_107 = arith.constant dense<0.000000e+00> : vector<8x384xf32>
    %374 = tpu.matmul %373, %295, %cst_107 {dimension_numbers = #tpu.dot_dimension_numbers<[1], [0], [0], [1], [0, 0, 1, 1], [], []>} : vector<8x72xf32>, vector<72x384xf32>, vector<8x384xf32> -> vector<8x384xf32>
    %c16 = arith.constant 16 : index
    %c0_108 = arith.constant 0 : index
    %c0_109 = arith.constant 0 : index
    %375 = vector.load %arg3[%c16, %c0_108, %c0_109] : memref<18x8x72xf32, #tpu.memory_space<vmem>>, vector<1x8x72xf32>
    %376 = vector.shape_cast %375 : vector<1x8x72xf32> to vector<8x72xf32>
    %cst_110 = arith.constant dense<0.000000e+00> : vector<8x384xf32>
    %377 = tpu.matmul %376, %331, %cst_110 {dimension_numbers = #tpu.dot_dimension_numbers<[1], [0], [0], [1], [0, 0, 1, 1], [], []>} : vector<8x72xf32>, vector<72x384xf32>, vector<8x384xf32> -> vector<8x384xf32>
    %378 = arith.addf %374, %377 : vector<8x384xf32>
    %c17 = arith.constant 17 : index
    %c0_111 = arith.constant 0 : index
    %c0_112 = arith.constant 0 : index
    %379 = vector.load %arg3[%c17, %c0_111, %c0_112] : memref<18x8x72xf32, #tpu.memory_space<vmem>>, vector<1x8x72xf32>
    %380 = vector.shape_cast %379 : vector<1x8x72xf32> to vector<8x72xf32>
    %cst_113 = arith.constant dense<0.000000e+00> : vector<8x384xf32>
    %381 = tpu.matmul %380, %371, %cst_113 {dimension_numbers = #tpu.dot_dimension_numbers<[1], [0], [0], [1], [0, 0, 1, 1], [], []>} : vector<8x72xf32>, vector<72x384xf32>, vector<8x384xf32> -> vector<8x384xf32>
    %382 = arith.addf %378, %381 : vector<8x384xf32>
    %c8_114 = arith.constant 8 : index
    %c0_115 = arith.constant 0 : index
    %c0_116 = arith.constant 0 : index
    %383 = vector.load %arg5[%c8_114, %c0_115, %c0_116] : memref<9x8x1xf32, #tpu.memory_space<vmem>>, vector<1x8x1xf32>
    %384 = vector.shape_cast %383 : vector<1x8x1xf32> to vector<8x1xf32>
    %385 = vector.broadcast %384 : vector<8x1xf32> to vector<8x384xf32>
    %386 = arith.addf %382, %385 : vector<8x384xf32>
    %387 = vector.broadcast %0 : vector<1x384xf32> to vector<8x384xf32>
    %388 = arith.mulf %386, %387 : vector<8x384xf32>
    %389 = arith.addf %388, %270 : vector<8x384xf32>
    %c5_117 = arith.constant 5 : index
    %c0_118 = arith.constant 0 : index
    %c0_119 = arith.constant 0 : index
    %390 = vector.load %arg4[%c5_117, %c0_118, %c0_119] : memref<9x8x8xf32, #tpu.memory_space<vmem>>, vector<1x8x8xf32>
    %391 = vector.shape_cast %390 : vector<1x8x8xf32> to vector<8x8xf32>
    %cst_120 = arith.constant dense<0.000000e+00> : vector<8x384xf32>
    %392 = tpu.matmul %391, %2, %cst_120 {dimension_numbers = #tpu.dot_dimension_numbers<[1], [0], [0], [1], [0, 0, 1, 1], [], []>} : vector<8x8xf32>, vector<8x384xf32>, vector<8x384xf32> -> vector<8x384xf32>
    %c6_121 = arith.constant 6 : index
    %c0_122 = arith.constant 0 : index
    %c0_123 = arith.constant 0 : index
    %393 = vector.load %arg4[%c6_121, %c0_122, %c0_123] : memref<9x8x8xf32, #tpu.memory_space<vmem>>, vector<1x8x8xf32>
    %394 = vector.shape_cast %393 : vector<1x8x8xf32> to vector<8x8xf32>
    %cst_124 = arith.constant dense<0.000000e+00> : vector<8x384xf32>
    %395 = tpu.matmul %394, %121, %cst_124 {dimension_numbers = #tpu.dot_dimension_numbers<[1], [0], [0], [1], [0, 0, 1, 1], [], []>} : vector<8x8xf32>, vector<8x384xf32>, vector<8x384xf32> -> vector<8x384xf32>
    %396 = arith.addf %392, %395 : vector<8x384xf32>
    %c7_125 = arith.constant 7 : index
    %c0_126 = arith.constant 0 : index
    %c0_127 = arith.constant 0 : index
    %397 = vector.load %arg4[%c7_125, %c0_126, %c0_127] : memref<9x8x8xf32, #tpu.memory_space<vmem>>, vector<1x8x8xf32>
    %398 = vector.shape_cast %397 : vector<1x8x8xf32> to vector<8x8xf32>
    %cst_128 = arith.constant dense<0.000000e+00> : vector<8x384xf32>
    %399 = tpu.matmul %398, %253, %cst_128 {dimension_numbers = #tpu.dot_dimension_numbers<[1], [0], [0], [1], [0, 0, 1, 1], [], []>} : vector<8x8xf32>, vector<8x384xf32>, vector<8x384xf32> -> vector<8x384xf32>
    %400 = arith.addf %396, %399 : vector<8x384xf32>
    %c8_129 = arith.constant 8 : index
    %c0_130 = arith.constant 0 : index
    %c0_131 = arith.constant 0 : index
    %401 = vector.load %arg4[%c8_129, %c0_130, %c0_131] : memref<9x8x8xf32, #tpu.memory_space<vmem>>, vector<1x8x8xf32>
    %402 = vector.shape_cast %401 : vector<1x8x8xf32> to vector<8x8xf32>
    %cst_132 = arith.constant dense<0.000000e+00> : vector<8x384xf32>
    %403 = tpu.matmul %402, %389, %cst_132 {dimension_numbers = #tpu.dot_dimension_numbers<[1], [0], [0], [1], [0, 0, 1, 1], [], []>} : vector<8x8xf32>, vector<8x384xf32>, vector<8x384xf32> -> vector<8x384xf32>
    %404 = arith.addf %400, %403 : vector<8x384xf32>
    %c2_133 = arith.constant 2 : index
    %c0_134 = arith.constant 0 : index
    %c0_135 = arith.constant 0 : index
    %405 = vector.load %arg6[%c2_133, %c0_134, %c0_135] : memref<3x8x1xf32, #tpu.memory_space<vmem>>, vector<1x8x1xf32>
    %406 = vector.shape_cast %405 : vector<1x8x1xf32> to vector<8x1xf32>
    %407 = vector.broadcast %406 : vector<8x1xf32> to vector<8x384xf32>
    %408 = arith.addf %404, %407 : vector<8x384xf32>
    %409 = vector.broadcast %0 : vector<1x384xf32> to vector<8x384xf32>
    %410 = arith.mulf %408, %409 : vector<8x384xf32>
    %c0_136 = arith.constant 0 : index
    %c0_137 = arith.constant 0 : index
    %c0_138 = arith.constant 0 : index
    %411 = vector.load %arg7[%c0_136, %c0_137, %c0_138] : memref<1x8x384xf32, #tpu.memory_space<vmem>>, vector<1x8x384xf32>
    %412 = vector.shape_cast %411 : vector<1x8x384xf32> to vector<8x384xf32>
    %413 = vector.shape_cast %410 : vector<8x384xf32> to vector<1x8x384xf32>
    tpu.vector_store %arg7[%c0_136, %c0_137, %c0_138], %413 {strides = array<i32>} : memref<1x8x384xf32, #tpu.memory_space<vmem>>, vector<1x8x384xf32>,
    return
  }
  func.func @transform_0(%arg0: i32) -> (i32, i32, i32) {
    %c0_i32 = arith.constant 0 : i32
    %c0_i32_0 = arith.constant 0 : i32
    %c0_i32_1 = arith.constant 0 : i32
    return %arg0, %c0_i32, %c0_i32_0 : i32, i32, i32
  }
  func.func @transform_1(%arg0: i32) -> (i32, i32) {
    %c0_i32 = arith.constant 0 : i32
    %c0_i32_0 = arith.constant 0 : i32
    %c0_i32_1 = arith.constant 0 : i32
    return %c0_i32, %c0_i32_0 : i32, i32
  }
  func.func @transform_2(%arg0: i32) -> (i32, i32, i32) {
    %c0_i32 = arith.constant 0 : i32
    %c0_i32_0 = arith.constant 0 : i32
    %c0_i32_1 = arith.constant 0 : i32
    %c0_i32_2 = arith.constant 0 : i32
    return %c0_i32, %c0_i32_0, %c0_i32_1 : i32, i32, i32
  }
  func.func @transform_3(%arg0: i32) -> (i32, i32, i32) {
    %c0_i32 = arith.constant 0 : i32
    %c0_i32_0 = arith.constant 0 : i32
    %c0_i32_1 = arith.constant 0 : i32
    %c0_i32_2 = arith.constant 0 : i32
    return %c0_i32, %c0_i32_0, %c0_i32_1 : i32, i32, i32
  }
  func.func @transform_4(%arg0: i32) -> (i32, i32, i32) {
    %c0_i32 = arith.constant 0 : i32
    %c0_i32_0 = arith.constant 0 : i32
    %c0_i32_1 = arith.constant 0 : i32
    %c0_i32_2 = arith.constant 0 : i32
    return %c0_i32, %c0_i32_0, %c0_i32_1 : i32, i32, i32
  }
  func.func @transform_5(%arg0: i32) -> (i32, i32, i32) {
    %c0_i32 = arith.constant 0 : i32
    %c0_i32_0 = arith.constant 0 : i32
    %c0_i32_1 = arith.constant 0 : i32
    %c0_i32_2 = arith.constant 0 : i32
    return %c0_i32, %c0_i32_0, %c0_i32_1 : i32, i32, i32
  }
  func.func @transform_6(%arg0: i32) -> (i32, i32, i32) {
    %c0_i32 = arith.constant 0 : i32
    %c0_i32_0 = arith.constant 0 : i32
    %c0_i32_1 = arith.constant 0 : i32
    return %arg0, %c0_i32, %c0_i32_0 : i32, i32, i32
  }
}

</mosaic_0001>

<llo_original>
// kernel: tpu_custom_call.1
$region0: #{tpu_custom_call.1}
  #allocation0 [shape = 'u32[]', space=smem, size = 0x4, offset = 0x4, fixed_abs, tag = 'smem constant byte address 0x4 - core index']
  #allocation1 [shape = 'u32[144,128]{1,0:T(1,128)}', space=vmem, size = 0x12000, scoped, tag = 'internal scratch']
  %s0 = inlined_call_operand.hbm [shape: f32[8,384], index: 0, kind: input, shape index: {}]
  %s1 = inlined_call_operand.hbm [shape: f32[8,384], index: 1, kind: output, shape index: {}]
  %s2 = sld [smem:[#allocation0]]
  $region18: #{tpu_custom_call.1} parent=0
    _
  %s4 = ssub.s32 1, %s2
  %s5 = scalar_select 0, %s4, %s2
  $region1: #{tpu_custom_call.1} parent=0
    #allocation2 [shape = 'u8[12288]{0}', space=vmem, size = 0x3000, scoped, tag = 'input window, operand 0, single buffered']
    #allocation3 [shape = 's32[1]{0}', space=sflag, size = 0x4, scoped, tag = 'scoped memory for tpu_custom_call.1']
    #allocation4 [shape = 's32[1]{0}', space=sflag, size = 0x4, scoped, tag = 'scoped memory for tpu_custom_call.1']
    #allocation5 [shape = 'u8[12288]{0}', space=vmem, size = 0x3000, scoped, tag = 'output window, operand 0, single buffered']
    %6 = vsyncpa [#allocation3], 0
    %7 = vsyncpa [#allocation4], 0
    // Predicated region
    $region2: #{tpu_custom_call.1} parent=1 // pred_check
      _
    $region3: #{tpu_custom_call.1} parent=1 // pred_check_branch
      %9 = sbr.rel (0) target = $region5
    $region4: #{tpu_custom_call.1} parent=1 // pred_region
      %s11 = ssub.s32 384, 384
      %12 = vsyncadd [#allocation3], %s11
      %s14 = sshll.u32 [#allocation2], 4
      %s15 = int_to_ptr.vmem [resolvable:$true] %s14
      %17 = dma.hbm_to_vmem [thread:$0]  %s0, 384, %s15, [#allocation3]
    $region5: #{tpu_custom_call.1} parent=1 // pred_fallthru
      _
    // Predicated region
    $region6: #{tpu_custom_call.1} parent=1 // pred_check
      _
    $region7: #{tpu_custom_call.1} parent=1 // pred_check_branch
      %19 = sbr.rel (0) target = $region9
    $region8: #{tpu_custom_call.1} parent=1 // pred_region
      %20 = dma.done [#allocation3], 384
    $region9: #{tpu_custom_call.1} parent=1 // pred_fallthru
      _
    %v21 = vld [vmem:[#allocation2] sm:$0xff]
    %v22 = vld [vmem:[#allocation2 + $0x8] sm:$0xff]
    %v23 = vld [vmem:[#allocation2 + $0x10] sm:$0xff]
    %24 = vrot.lane.b32.xlu0 %v21, 19
    %v25 = vpop.permute.xlu0 %24
    %26 = vrot.lane.b32.xlu0 %v22, 19
    %v27 = vpop.permute.xlu0 %26
    %28 = vrot.lane.b32.xlu0 %v23, 19
    %v29 = vpop.permute.xlu0 %28
    %v30 = vlaneseq
    %v31 = vand.u32 %v30, 127
    %vm32 = vcmp.lt.s32.totalorder %v31, 19
    %v33 = vsel %vm32, %v27, %v29
    %v34 = vsel %vm32, %v25, %v27
    %v35 = vsel %vm32, %v29, %v25
    %36 = vst [vmem:[#allocation5] sm:$0xff] %v35
    %37 = vst [vmem:[#allocation5 + $0x8] sm:$0xff] %v34
    %38 = vst [vmem:[#allocation5 + $0x10] sm:$0xff] %v33
    // Predicated region
    $region10: #{tpu_custom_call.1} parent=1 // pred_check
      _
    $region11: #{tpu_custom_call.1} parent=1 // pred_check_branch
      %40 = sbr.rel (0) target = $region13
    $region12: #{tpu_custom_call.1} parent=1 // pred_region
      %s42 = ssub.s32 384, 384
      %43 = vsyncadd [#allocation4], %s42
      %s45 = sshll.u32 [#allocation5], 4
      %s46 = int_to_ptr.vmem [resolvable:$true] %s45
      %48 = dma.vmem_to_hbm [thread:$0]  %s46, 384, %s1, [#allocation4]
    $region13: #{tpu_custom_call.1} parent=1 // pred_fallthru
      _
    // Predicated region
    $region14: #{tpu_custom_call.1} parent=1 // pred_check
      _
    $region15: #{tpu_custom_call.1} parent=1 // pred_check_branch
      %50 = sbr.rel (0) target = $region17
    $region16: #{tpu_custom_call.1} parent=1 // pred_region
      %51 = dma.done [#allocation4], 384
    $region17: #{tpu_custom_call.1} parent=1 // pred_fallthru
      _
    %52 = vsyncpa [#allocation3], 1
    %53 = vsyncpa [#allocation4], 1

// kernel: tpu_custom_call.1
$region0: #{tpu_custom_call.1}
  #allocation0 [shape = 'u32[]', space=smem, size = 0x4, offset = 0x4, fixed_abs, tag = 'smem constant byte address 0x4 - core index']
  #allocation1 [shape = 'u32[144,128]{1,0:T(1,128)}', space=vmem, size = 0x12000, scoped, tag = 'internal scratch']
  %s0 = inlined_call_operand.vmem [shape: f32[2,8,384], index: 0, kind: input, shape index: {}]
  %s1 = inlined_call_operand.vmem [shape: f32[1,384], index: 1, kind: input, shape index: {}]
  %s2 = inlined_call_operand.vmem [shape: f32[18,8,72], index: 2, kind: input, shape index: {}]
  %s3 = inlined_call_operand.vmem [shape: f32[9,8,8], index: 3, kind: input, shape index: {}]
  %s4 = inlined_call_operand.vmem [shape: f32[9,8,1], index: 4, kind: input, shape index: {}]
  %s5 = inlined_call_operand.vmem [shape: f32[3,8,1], index: 5, kind: input, shape index: {}]
  %s6 = inlined_call_operand.hbm [shape: f32[2,8,384], index: 6, kind: output, shape index: {}]
  %s7 = sld [smem:[#allocation0]]
  $region57: #{tpu_custom_call.1} parent=0
    _
  %s9 = ssub.s32 1, %s7
  %s10 = scalar_select 0, %s9, %s7
  $region1: #{tpu_custom_call.1} parent=0
    #allocation2 [shape = 'u8[24576]{0}', space=vmem, size = 0x6000, scoped, tag = 'output window, operand 0']
    #allocation3 [shape = 's32[2]{0}', space=sflag, size = 0x8, scoped, tag = 'scoped memory for tpu_custom_call.1']
    %11 = vsyncpa [#allocation3], 0
    %s12 = scalar_lea.sflag [#allocation3], 1
    %13 = vsyncpa %s12, 0
    loop: start=0, step=1, limit=4
    $region2: #{tpu_custom_call.1} parent=1 // loop_pre_header
      _
    $region3: #{tpu_custom_call.1} parent=1 // loop_header
      %s15 = sphi 0, %s19
      %p16 = scmp.ge.s32.totalorder %s15, 4
      %s25 = sphi 0, %s27
      %s28 = sphi 0, %s25
      %s29 = sphi 0, %s28
      %s45 = sphi 0, %s29
      %s49 = sphi 0, %s49
      %s51 = sphi 0, %s49
      %s52 = sphi 0, %s51
      %s66 = sphi 0, %s52
      %s70 = sphi 0, %s70
      %s72 = sphi 0, %s70
      %s73 = sphi 0, %s72
      %s87 = sphi 0, %s73
      %s91 = sphi 0, %s91
      %s93 = sphi 0, %s91
      %s94 = sphi 0, %s93
      %s108 = sphi 0, %s94
      %s112 = sphi 0, %s112
      %s114 = sphi 0, %s112
      %s115 = sphi 0, %s114
      %s129 = sphi 0, %s115
      %s133 = sphi 0, %s133
      %s135 = sphi 0, %s133
      %s136 = sphi 0, %s135
      %s150 = sphi 0, %s136
      %s156 = sphi 0, %s158
      %s159 = sphi 0, %s156
      %s160 = sphi 0, %s159
      %s176 = sphi 0, %s160
    $region4: #{tpu_custom_call.1} parent=1 // loop_header_branch
      %18 = sbr.rel (%p16) target = $region8
    $region5: #{tpu_custom_call.1} parent=1 // loop_body
      %s20 = ssub.s32 %s15, 1
      %s21 = ssub.s32 %s15, 2
      %s22 = sadd.s32 %s15, 1
      %s23 = ssub.s32 %s15, %s22
      %p24 = scmp.eq.s32.totalorder %s23, 0
      %s26 = sadd.s32 %s25, 1
      %s27 = scalar_select %p24, %s25, %s26
      %p30 = pneg %p24
      %p31 = scmp.eq.s32.totalorder %s15, 1
      %p32 = por %p30, %p31
      %p33 = scmp.ne.s32.totalorder %s25, %s28
      %p34 = scmp.eq.s32.totalorder %s15, 0
      %p35 = por %p33, %p34
      %p36 = scmp.ne.s32.totalorder %s25, %s28
      %p37 = scmp.eq.s32.totalorder %s20, 1
      %p38 = por %p36, %p37
      %p39 = scmp.ne.s32.totalorder %s28, %s29
      %p40 = scmp.eq.s32.totalorder %s20, 0
      %p41 = por %p39, %p40
      %p42 = scmp.ne.s32.totalorder %s28, %s29
      %p43 = scmp.eq.s32.totalorder %s21, 1
      %p44 = por %p42, %p43
      %p46 = scmp.ne.s32.totalorder %s29, %s45
      %p47 = scmp.eq.s32.totalorder %s21, 0
      %p48 = por %p46, %p47
      %s50 = sadd.s32 %s49, 1
      %p53 = scmp.eq.s32.totalorder %s15, 1
      %p54 = scmp.ne.s32.totalorder %s49, %s51
      %p55 = scmp.eq.s32.totalorder %s15, 0
      %p56 = por %p54, %p55
      %p57 = scmp.ne.s32.totalorder %s49, %s51
      %p58 = scmp.eq.s32.totalorder %s20, 1
      %p59 = por %p57, %p58
      %p60 = scmp.ne.s32.totalorder %s51, %s52
      %p61 = scmp.eq.s32.totalorder %s20, 0
      %p62 = por %p60, %p61
      %p63 = scmp.ne.s32.totalorder %s51, %s52
      %p64 = scmp.eq.s32.totalorder %s21, 1
      %p65 = por %p63, %p64
      %p67 = scmp.ne.s32.totalorder %s52, %s66
      %p68 = scmp.eq.s32.totalorder %s21, 0
      %p69 = por %p67, %p68
      %s71 = sadd.s32 %s70, 1
      %p74 = scmp.eq.s32.totalorder %s15, 1
      %p75 = scmp.ne.s32.totalorder %s70, %s72
      %p76 = scmp.eq.s32.totalorder %s15, 0
      %p77 = por %p75, %p76
      %p78 = scmp.ne.s32.totalorder %s70, %s72
      %p79 = scmp.eq.s32.totalorder %s20, 1
      %p80 = por %p78, %p79
      %p81 = scmp.ne.s32.totalorder %s72, %s73
      %p82 = scmp.eq.s32.totalorder %s20, 0
      %p83 = por %p81, %p82
      %p84 = scmp.ne.s32.totalorder %s72, %s73
      %p85 = scmp.eq.s32.totalorder %s21, 1
      %p86 = por %p84, %p85
      %p88 = scmp.ne.s32.totalorder %s73, %s87
      %p89 = scmp.eq.s32.totalorder %s21, 0
      %p90 = por %p88, %p89
      %s92 = sadd.s32 %s91, 1
      %p95 = scmp.eq.s32.totalorder %s15, 1
      %p96 = scmp.ne.s32.totalorder %s91, %s93
      %p97 = scmp.eq.s32.totalorder %s15, 0
      %p98 = por %p96, %p97
      %p99 = scmp.ne.s32.totalorder %s91, %s93
      %p100 = scmp.eq.s32.totalorder %s20, 1
      %p101 = por %p99, %p100
      %p102 = scmp.ne.s32.totalorder %s93, %s94
      %p103 = scmp.eq.s32.totalorder %s20, 0
      %p104 = por %p102, %p103
      %p105 = scmp.ne.s32.totalorder %s93, %s94
      %p106 = scmp.eq.s32.totalorder %s21, 1
      %p107 = por %p105, %p106
      %p109 = scmp.ne.s32.totalorder %s94, %s108
      %p110 = scmp.eq.s32.totalorder %s21, 0
      %p111 = por %p109, %p110
      %s113 = sadd.s32 %s112, 1
      %p116 = scmp.eq.s32.totalorder %s15, 1
      %p117 = scmp.ne.s32.totalorder %s112, %s114
      %p118 = scmp.eq.s32.totalorder %s15, 0
      %p119 = por %p117, %p118
      %p120 = scmp.ne.s32.totalorder %s112, %s114
      %p121 = scmp.eq.s32.totalorder %s20, 1
      %p122 = por %p120, %p121
      %p123 = scmp.ne.s32.totalorder %s114, %s115
      %p124 = scmp.eq.s32.totalorder %s20, 0
      %p125 = por %p123, %p124
      %p126 = scmp.ne.s32.totalorder %s114, %s115
      %p127 = scmp.eq.s32.totalorder %s21, 1
      %p128 = por %p126, %p127
      %p130 = scmp.ne.s32.totalorder %s115, %s129
      %p131 = scmp.eq.s32.totalorder %s21, 0
      %p132 = por %p130, %p131
      %s134 = sadd.s32 %s133, 1
      %p137 = scmp.eq.s32.totalorder %s15, 1
      %p138 = scmp.ne.s32.totalorder %s133, %s135
      %p139 = scmp.eq.s32.totalorder %s15, 0
      %p140 = por %p138, %p139
      %p141 = scmp.ne.s32.totalorder %s133, %s135
      %p142 = scmp.eq.s32.totalorder %s20, 1
      %p143 = por %p141, %p142
      %p144 = scmp.ne.s32.totalorder %s135, %s136
      %p145 = scmp.eq.s32.totalorder %s20, 0
      %p146 = por %p144, %p145
      %p147 = scmp.ne.s32.totalorder %s135, %s136
      %p148 = scmp.eq.s32.totalorder %s21, 1
      %p149 = por %p147, %p148
      %p151 = scmp.ne.s32.totalorder %s136, %s150
      %p152 = scmp.eq.s32.totalorder %s21, 0
      %p153 = por %p151, %p152
      %s154 = ssub.s32 %s15, %s22
      %p155 = scmp.eq.s32.totalorder %s154, 0
      %s157 = sadd.s32 %s156, 1
      %s158 = scalar_select %p155, %s156, %s157
      %p161 = pneg %p155
      %p162 = scmp.eq.s32.totalorder %s15, 1
      %p163 = por %p161, %p162
      %p164 = scmp.ne.s32.totalorder %s156, %s159
      %p165 = scmp.eq.s32.totalorder %s15, 0
      %p166 = por %p164, %p165
      %p167 = scmp.ne.s32.totalorder %s156, %s159
      %p168 = scmp.eq.s32.totalorder %s20, 1
      %p169 = por %p167, %p168
      %p170 = scmp.ne.s32.totalorder %s159, %s160
      %p171 = scmp.eq.s32.totalorder %s20, 0
      %p172 = por %p170, %p171
      %p173 = scmp.ne.s32.totalorder %s159, %s160
      %p174 = scmp.eq.s32.totalorder %s21, 1
      %p175 = por %p173, %p174
      %p177 = scmp.ne.s32.totalorder %s160, %s176
      %p178 = scmp.eq.s32.totalorder %s21, 0
      %p179 = por %p177, %p178
      %p180 = scmp.le.s32.totalorder 1, %s15
      %p181 = scmp.lt.s32.totalorder %s15, 3
      %p182 = pnand %p180, %p181
      %p183 = pneg %p182
      // Predicated region
      $region9: #{tpu_custom_call.1} parent=5 // pred_check
        _
      $region10: #{tpu_custom_call.1} parent=5 // pred_check_branch
        %185 = sbr.rel (%p182) target = $region12
      $region11: #{tpu_custom_call.1} parent=5 // pred_region
        %s186 = ssub.s32 %s15, 1
        // Predicated region
        $region13: #{tpu_custom_call.1} parent=11 // pred_check
          %p187 = pneg %p62
        $region14: #{tpu_custom_call.1} parent=11 // pred_check_branch
          %189 = sbr.rel (%p187) target = $region16
        $region15: #{tpu_custom_call.1} parent=11 // pred_region
          _
        $region16: #{tpu_custom_call.1} parent=11 // pred_fallthru
          _
        // Predicated region
        $region17: #{tpu_custom_call.1} parent=11 // pred_check
          %p190 = pneg %p83
        $region18: #{tpu_custom_call.1} parent=11 // pred_check_branch
          %192 = sbr.rel (%p190) target = $region20
        $region19: #{tpu_custom_call.1} parent=11 // pred_region
          _
        $region20: #{tpu_custom_call.1} parent=11 // pred_fallthru
          _
        // Predicated region
        $region21: #{tpu_custom_call.1} parent=11 // pred_check
          %p193 = pneg %p104
        $region22: #{tpu_custom_call.1} parent=11 // pred_check_branch
          %195 = sbr.rel (%p193) target = $region24
        $region23: #{tpu_custom_call.1} parent=11 // pred_region
          _
        $region24: #{tpu_custom_call.1} parent=11 // pred_fallthru
          _
        // Predicated region
        $region25: #{tpu_custom_call.1} parent=11 // pred_check
          %p196 = pneg %p125
        $region26: #{tpu_custom_call.1} parent=11 // pred_check_branch
          %198 = sbr.rel (%p196) target = $region28
        $region27: #{tpu_custom_call.1} parent=11 // pred_region
          _
        $region28: #{tpu_custom_call.1} parent=11 // pred_fallthru
          _
        // Predicated region
        $region29: #{tpu_custom_call.1} parent=11 // pred_check
          %p199 = pneg %p146
        $region30: #{tpu_custom_call.1} parent=11 // pred_check_branch
          %201 = sbr.rel (%p199) target = $region32
        $region31: #{tpu_custom_call.1} parent=11 // pred_region
          _
        $region32: #{tpu_custom_call.1} parent=11 // pred_fallthru
          _
      $region12: #{tpu_custom_call.1} parent=5 // pred_fallthru
        _
      %p202 = scmp.lt.s32.totalorder %s15, 2
      // Predicated region
      $region33: #{tpu_custom_call.1} parent=5 // pred_check
        %p203 = pneg %p202
      $region34: #{tpu_custom_call.1} parent=5 // pred_check_branch
        %205 = sbr.rel (%p203) target = $region36
      $region35: #{tpu_custom_call.1} parent=5 // pred_region
        // Predicated region
        $region37: #{tpu_custom_call.1} parent=35 // pred_check
          %p206 = pneg %p35
        $region38: #{tpu_custom_call.1} parent=35 // pred_check_branch
          %208 = sbr.rel (%p206) target = $region40
        $region39: #{tpu_custom_call.1} parent=35 // pred_region
          %p209 = scmp.lt.s32.totalorder %s15, 1
          %s210 = scalar_select %p209, %s15, 1
          %s211 = smul.addr %s210, 3
          %s212 = smul.addr %s211, 8
          %s213 = scalar_lea.vmem %s0, %s212
        $region40: #{tpu_custom_call.1} parent=35 // pred_fallthru
          _
      $region36: #{tpu_custom_call.1} parent=5 // pred_fallthru
        _
      %p214 = scmp.le.s32.totalorder 1, %s15
      %p215 = scmp.lt.s32.totalorder %s15, 3
      %p216 = pnand %p214, %p215
      %p217 = pneg %p216
      // Predicated region
      $region41: #{tpu_custom_call.1} parent=5 // pred_check
        _
      $region42: #{tpu_custom_call.1} parent=5 // pred_check_branch
        %219 = sbr.rel (%p216) target = $region44
      $region43: #{tpu_custom_call.1} parent=5 // pred_region
        %s220 = ssub.s32 %s15, 1
        %p221 = scmp.lt.s32.totalorder %s20, 1
        %s222 = scalar_select %p221, %s20, 1
        %s223 = smul.addr %s222, 3
        %s224 = smul.addr %s223, 8
        %s225 = scalar_lea.vmem %s0, %s224
        %p226 = pneg %p41
        %p227 = pneg %p38
        %p228 = pneg %p62
        %p229 = pneg %p59
        %p230 = pneg %p83
        %p231 = pneg %p80
        %p232 = pneg %p104
        %p233 = pneg %p101
        %p234 = pneg %p125
        %p235 = pneg %p122
        %p236 = pneg %p146
        %p237 = pneg %p143
        %p238 = pneg %p172
        %p239 = pneg %p169
        %s240 = sand.u32 %s159, 1
        %s241 = scalar_lea.sflag [#allocation3], %s240
        %s242 = sand.u32 %s159, 1
        %s243 = smul.addr %s242, 24
        %s244 = scalar_lea.vmem [#allocation2], %s243
        %p245 = scmp.lt.s32.totalorder %s20, 1
        %s246 = scalar_select %p245, %s20, 1
        %s247 = smul.addr %s246, 3
        %s248 = smul.addr %s247, 8
        %s249 = scalar_lea.vmem %s0, %s248
        %v250 = vld [vmem:[%s1] sm:$0x7]
        %v251 = vld [vmem:[%s249] sm:$0xff]
        %v252 = vld [vmem:[%s249 + $0x8] sm:$0xff]
        %v253 = vld [vmem:[%s249 + $0x10] sm:$0xff]
        %255 = vrot.lane.b32.xlu0 %v253, 19
        %v256 = vpop.permute.xlu0 %255
        %260 = vrot.lane.b32.xlu0 %v251, 19
        %v261 = vpop.permute.xlu0 %260
        %262 = vrot.lane.b32.xlu0 %v252, 19
        %v263 = vpop.permute.xlu0 %262
        %vm264 = vcmask 154624
        %v265 = vsel %vm264, %v261, %v263
        %v266 = vsel %vm264, %v263, %v256
        %v270 = vsel %vm264, %v256, %v261
        %271 = vrot.lane.b32.xlu0 %v253, 18
        %v272 = vpop.permute.xlu0 %271
        %274 = vrot.lane.b32.xlu0 %v251, 18
        %v275 = vpop.permute.xlu0 %274
        %276 = vrot.lane.b32.xlu0 %v252, 18
        %v277 = vpop.permute.xlu0 %276
        %vm278 = vcmask 146432
        %v279 = vsel %vm278, %v275, %v277
        %v280 = vsel %vm278, %v277, %v272
        %v284 = vsel %vm278, %v272, %v275
        %285 = vrot.lane.b32.xlu0 %v253, 17
        %v286 = vpop.permute.xlu0 %285
        %288 = vrot.lane.b32.xlu0 %v251, 17
        %v289 = vpop.permute.xlu0 %288
        %290 = vrot.lane.b32.xlu0 %v252, 17
        %v291 = vpop.permute.xlu0 %290
        %vm292 = vcmask 138240
        %v293 = vsel %vm292, %v289, %v291
        %v294 = vsel %vm292, %v291, %v286
        %v298 = vsel %vm292, %v286, %v289
        %299 = vrot.lane.b32.xlu0 %v253, 1
        %v300 = vpop.permute.xlu0 %299
        %302 = vrot.lane.b32.xlu0 %v251, 1
        %v303 = vpop.permute.xlu0 %302
        %304 = vrot.lane.b32.xlu0 %v252, 1
        %v305 = vpop.permute.xlu0 %304
        %vm306 = vcmask 7168
        %v307 = vsel %vm306, %v303, %v305
        %v308 = vsel %vm306, %v305, %v300
        %v312 = vsel %vm306, %v300, %v303
        %313 = vrot.lane.b32.xlu0 %v251, 127
        %v314 = vpop.permute.xlu0 %313
        %315 = vrot.lane.b32.xlu0 %v252, 127
        %v316 = vpop.permute.xlu0 %315
        %317 = vrot.lane.b32.xlu0 %v253, 127
        %v318 = vpop.permute.xlu0 %317
        %vm319 = vcmask 1039360
        %v320 = vsel %vm319, %v314, %v316
        %v321 = vsel %vm319, %v316, %v318
        %v326 = vsel %vm319, %v318, %v314
        %327 = vrot.lane.b32.xlu0 %v251, 111
        %v328 = vpop.permute.xlu0 %327
        %329 = vrot.lane.b32.xlu0 %v252, 111
        %v330 = vpop.permute.xlu0 %329
        %331 = vrot.lane.b32.xlu0 %v253, 111
        %v332 = vpop.permute.xlu0 %331
        %vm333 = vcmask 908288
        %v334 = vsel %vm333, %v328, %v330
        %v335 = vsel %vm333, %v330, %v332
        %v340 = vsel %vm333, %v332, %v328
        %341 = vrot.lane.b32.xlu0 %v251, 110
        %v342 = vpop.permute.xlu0 %341
        %343 = vrot.lane.b32.xlu0 %v252, 110
        %v344 = vpop.permute.xlu0 %343
        %345 = vrot.lane.b32.xlu0 %v253, 110
        %v346 = vpop.permute.xlu0 %345
        %vm347 = vcmask 900096
        %v348 = vsel %vm347, %v342, %v344
        %v349 = vsel %vm347, %v344, %v346
        %v354 = vsel %vm347, %v346, %v342
        %355 = vrot.lane.b32.xlu0 %v251, 109
        %v356 = vpop.permute.xlu0 %355
        %357 = vrot.lane.b32.xlu0 %v252, 109
        %v358 = vpop.permute.xlu0 %357
        %359 = vrot.lane.b32.xlu0 %v253, 109
        %v360 = vpop.permute.xlu0 %359
        %vm361 = vcmask 891904
        %v362 = vsel %vm361, %v356, %v358
        %v363 = vsel %vm361, %v358, %v360
        %v368 = vsel %vm361, %v360, %v356
        %v369 = vld [vmem:[%s2] sm:$0xff]
        %v370 = vld [vmem:[%s4] sm:$0xff]
        %372 = vset.pattern.permute.xlu0 0
        %373 = vperm.xlu0 %372, %v370
        %v374 = vpop.permute.xlu0 %373
        %vm376 = vcmask 588800
        %v378 = vsel %vm376, %v369, 0
        %380 = vmatprep.subr.mxu0 %v265
        %381 = vmatpush1.msra.mxu0 %v270
        %382 = vmatprep.subr.mxu0 %v279
        %383 = vmatpush1.msra.mxu0 %v284
        %384 = vmatprep.subr.mxu0 %v293
        %385 = vmatpush1.msra.mxu0 %v298
        %386 = vmatprep.subr.mxu0 %v307
        %387 = vmatpush1.msra.mxu0 %v312
        %388 = vmatprep.subr.mxu0 %v252
        %389 = vmatpush1.msra.mxu0 %v251
        %390 = vmatprep.subr.mxu0 %v321
        %391 = vmatpush1.msra.mxu0 %v320
        %392 = vmatprep.subr.mxu0 %v335
        %393 = vmatpush1.msra.mxu0 %v334
        %394 = vmatprep.subr.mxu0 %v349
        %395 = vmatpush1.msra.mxu0 %v348
        %396 = vmatprep.subr.mxu0 %v363
        %397 = vmatpush1.msra.mxu0 %v362
        %398 = vmatprep.subr.mxu0 0.0
        %399 = vmatpush1.msra.mxu0 0.0
        %400 = vmatprep.subr.mxu0 0.0
        %401 = vmatpush1.msra.mxu0 0.0
        %402 = vmatprep.subr.mxu0 0.0
        %403 = vmatpush1.msra.mxu0 0.0
        %404 = vmatprep.subr.mxu0 0.0
        %405 = vmatpush1.msra.mxu0 0.0
        %406 = vmatprep.subr.mxu0 0.0
        %407 = vmatpush1.msra.mxu0 0.0
        %408 = vmatprep.subr.mxu0 0.0
        %409 = vmatpush1.msra.mxu0 0.0
        %410 = vmatprep.subr.mxu0 0.0
        %411 = vmatpush1.msra.mxu0 0.0
        %412 = vmatprep.subr.mxu0 0.0
        %413 = vmatpush1.msra.mxu0 0.0
        %414 = vmatprep.subr.mxu0 0.0
        %415 = vmatpush1.msra.mxu0 0.0
        %416 = vmatprep.subr.mxu0 0.0
        %417 = vmatpush1.msra.mxu0 0.0
        %418 = vmatprep.subr.mxu0 0.0
        %419 = vmatpush1.msra.mxu0 0.0
        %420 = vmatprep.subr.mxu0 0.0
        %421 = vmatpush1.msra.mxu0 0.0
        %422 = vmatprep.subr.mxu0 0.0
        %423 = vmatpush1.msra.mxu0 0.0
        %424 = vmatprep.subr.mxu0 0.0
        %425 = vmatpush1.msra.mxu0 0.0
        %426 = vmatprep.subr.mxu0 0.0
        %427 = vmatpush1.msra.mxu0 0.0
        %428 = vmatprep.subr.mxu0 0.0
        %429 = vmatpush1.msra.mxu0 0.0
        %430 = vmatprep.subr.mxu0 0.0
        %431 = vmatpush1.msra.mxu0 0.0
        %432 = vmatprep.subr.mxu0 0.0
        %433 = vmatpush1.msra.mxu0 0.0
        %434 = vmatprep.subr.mxu0 0.0
        %435 = vmatpush1.msra.mxu0 0.0
        %436 = vmatprep.subr.mxu0 0.0
        %437 = vmatpush1.msra.mxu0 0.0
        %438 = vmatprep.subr.mxu0 0.0
        %439 = vmatpush1.msra.mxu0 0.0
        %440 = vmatprep.subr.mxu0 0.0
        %441 = vmatpush1.msra.mxu0 0.0
        %442 = vmatprep.subr.mxu0 0.0
        %443 = vmatpush1.msra.mxu0 0.0
        %444 = vmatprep.mubr.f32.mxu0 0.0
        %445 = vmatmul.mubr.f32.gmra.mrb[0].mxu0 %v378
        %v446 = vpop.f32.mrb[0].mxu0
        %v447 = vadd.f32 %v374, %v446
        %v448 = vpop.f32.mrb[0].mxu0
        %v449 = vadd.f32 %v374, %v448
        %450 = vdwg.mxu0
        %451 = vmatprep.subr.mxu0 0.0
        %452 = vmatpush1.msra.mxu0 %v266
        %453 = vmatprep.subr.mxu0 0.0
        %454 = vmatpush1.msra.mxu0 %v280
        %455 = vmatprep.subr.mxu0 0.0
        %456 = vmatpush1.msra.mxu0 %v294
        %457 = vmatprep.subr.mxu0 0.0
        %458 = vmatpush1.msra.mxu0 %v308
        %459 = vmatprep.subr.mxu0 0.0
        %460 = vmatpush1.msra.mxu0 %v253
        %461 = vmatprep.subr.mxu0 0.0
        %462 = vmatpush1.msra.mxu0 %v326
        %463 = vmatprep.subr.mxu0 0.0
        %464 = vmatpush1.msra.mxu0 %v340
        %465 = vmatprep.subr.mxu0 0.0
        %466 = vmatpush1.msra.mxu0 %v354
        %467 = vmatprep.subr.mxu0 0.0
        %468 = vmatpush1.msra.mxu0 %v368
        %469 = vmatprep.subr.mxu0 0.0
        %470 = vmatpush1.msra.mxu0 0.0
        %471 = vmatprep.subr.mxu0 0.0
        %472 = vmatpush1.msra.mxu0 0.0
        %473 = vmatprep.subr.mxu0 0.0
        %474 = vmatpush1.msra.mxu0 0.0
        %475 = vmatprep.subr.mxu0 0.0
        %476 = vmatpush1.msra.mxu0 0.0
        %477 = vmatprep.subr.mxu0 0.0
        %478 = vmatpush1.msra.mxu0 0.0
        %479 = vmatprep.subr.mxu0 0.0
        %480 = vmatpush1.msra.mxu0 0.0
        %481 = vmatprep.subr.mxu0 0.0
        %482 = vmatpush1.msra.mxu0 0.0
        %483 = vmatprep.subr.mxu0 0.0
        %484 = vmatpush1.msra.mxu0 0.0
        %485 = vmatprep.subr.mxu0 0.0
        %486 = vmatpush1.msra.mxu0 0.0
        %487 = vmatprep.subr.mxu0 0.0
        %488 = vmatpush1.msra.mxu0 0.0
        %489 = vmatprep.subr.mxu0 0.0
        %490 = vmatpush1.msra.mxu0 0.0
        %491 = vmatprep.subr.mxu0 0.0
        %492 = vmatpush1.msra.mxu0 0.0
        %493 = vmatprep.subr.mxu0 0.0
        %494 = vmatpush1.msra.mxu0 0.0
        %495 = vmatprep.subr.mxu0 0.0
        %496 = vmatpush1.msra.mxu0 0.0
        %497 = vmatprep.subr.mxu0 0.0
        %498 = vmatpush1.msra.mxu0 0.0
        %499 = vmatprep.subr.mxu0 0.0
        %500 = vmatpush1.msra.mxu0 0.0
        %501 = vmatprep.subr.mxu0 0.0
        %502 = vmatpush1.msra.mxu0 0.0
        %503 = vmatprep.subr.mxu0 0.0
        %504 = vmatpush1.msra.mxu0 0.0
        %505 = vmatprep.subr.mxu0 0.0
        %506 = vmatpush1.msra.mxu0 0.0
        %507 = vmatprep.subr.mxu0 0.0
        %508 = vmatpush1.msra.mxu0 0.0
        %509 = vmatprep.subr.mxu0 0.0
        %510 = vmatpush1.msra.mxu0 0.0
        %511 = vmatprep.subr.mxu0 0.0
        %512 = vmatpush1.msra.mxu0 0.0
        %513 = vmatprep.subr.mxu0 0.0
        %514 = vmatpush1.msra.mxu0 0.0
        %515 = vmatprep.mubr.f32.mxu0 0.0
        %516 = vmatmul.mubr.f32.gmra.mrb[0].mxu0 %v378
        %v517 = vpop.f32.mrb[0].mxu0
        %v518 = vadd.f32 %v374, %v517
        %v519 = vpop.f32.mrb[0].mxu0
        %520 = vdwg.mxu0
        %v521 = vmax.f32 %v447, 0.0
        %v522 = vmax.f32 %v449, 0.0
        %v523 = vmax.f32 %v518, 0.0
        %v525 = vlaneseq
        %v526 = vshrl.u32 %v525, 7
        %v527 = vsub.s32 0, %v526
        %v528 = vrot.slane %v250, %v527
        %v529 = vlaneseq
        %v530 = vshrl.u32 %v529, 7
        %v531 = vsub.s32 1, %v530
        %v532 = vrot.slane %v250, %v531
        %v533 = vlaneseq
        %v534 = vshrl.u32 %v533, 7
        %v535 = vsub.s32 2, %v534
        %v536 = vrot.slane %v250, %v535
        %v540 = vmul.f32 %v521, %v528
        %v541 = vmul.f32 %v522, %v532
        %v542 = vmul.f32 %v523, %v536
        %544 = vrot.lane.b32.xlu0 %v542, 19
        %v545 = vpop.permute.xlu0 %544
        %549 = vrot.lane.b32.xlu0 %v540, 19
        %v550 = vpop.permute.xlu0 %549
        %551 = vrot.lane.b32.xlu0 %v541, 19
        %v552 = vpop.permute.xlu0 %551
        %v553 = vsel %vm264, %v550, %v552
        %v554 = vsel %vm264, %v552, %v545
        %v558 = vsel %vm264, %v545, %v550
        %559 = vrot.lane.b32.xlu0 %v542, 18
        %v560 = vpop.permute.xlu0 %559
        %562 = vrot.lane.b32.xlu0 %v540, 18
        %v563 = vpop.permute.xlu0 %562
        %564 = vrot.lane.b32.xlu0 %v541, 18
        %v565 = vpop.permute.xlu0 %564
        %v566 = vsel %vm278, %v563, %v565
        %v567 = vsel %vm278, %v565, %v560
        %v571 = vsel %vm278, %v560, %v563
        %572 = vrot.lane.b32.xlu0 %v542, 17
        %v573 = vpop.permute.xlu0 %572
        %575 = vrot.lane.b32.xlu0 %v540, 17
        %v576 = vpop.permute.xlu0 %575
        %577 = vrot.lane.b32.xlu0 %v541, 17
        %v578 = vpop.permute.xlu0 %577
        %v579 = vsel %vm292, %v576, %v578
        %v580 = vsel %vm292, %v578, %v573
        %v584 = vsel %vm292, %v573, %v576
        %585 = vrot.lane.b32.xlu0 %v542, 1
        %v586 = vpop.permute.xlu0 %585
        %588 = vrot.lane.b32.xlu0 %v540, 1
        %v589 = vpop.permute.xlu0 %588
        %590 = vrot.lane.b32.xlu0 %v541, 1
        %v591 = vpop.permute.xlu0 %590
        %v592 = vsel %vm306, %v589, %v591
        %v593 = vsel %vm306, %v591, %v586
        %v597 = vsel %vm306, %v586, %v589
        %598 = vrot.lane.b32.xlu0 %v540, 127
        %v599 = vpop.permute.xlu0 %598
        %600 = vrot.lane.b32.xlu0 %v541, 127
        %v601 = vpop.permute.xlu0 %600
        %602 = vrot.lane.b32.xlu0 %v542, 127
        %v603 = vpop.permute.xlu0 %602
        %v604 = vsel %vm319, %v599, %v601
        %v605 = vsel %vm319, %v601, %v603
        %v610 = vsel %vm319, %v603, %v599
        %611 = vrot.lane.b32.xlu0 %v540, 111
        %v612 = vpop.permute.xlu0 %611
        %613 = vrot.lane.b32.xlu0 %v541, 111
        %v614 = vpop.permute.xlu0 %613
        %615 = vrot.lane.b32.xlu0 %v542, 111
        %v616 = vpop.permute.xlu0 %615
        %v617 = vsel %vm333, %v612, %v614
        %v618 = vsel %vm333, %v614, %v616
        %v623 = vsel %vm333, %v616, %v612
        %624 = vrot.lane.b32.xlu0 %v540, 110
        %v625 = vpop.permute.xlu0 %624
        %626 = vrot.lane.b32.xlu0 %v541, 110
        %v627 = vpop.permute.xlu0 %626
        %628 = vrot.lane.b32.xlu0 %v542, 110
        %v629 = vpop.permute.xlu0 %628
        %v630 = vsel %vm347, %v625, %v627
        %v631 = vsel %vm347, %v627, %v629
        %v636 = vsel %vm347, %v629, %v625
        %637 = vrot.lane.b32.xlu0 %v540, 109
        %v638 = vpop.permute.xlu0 %637
        %639 = vrot.lane.b32.xlu0 %v541, 109
        %v640 = vpop.permute.xlu0 %639
        %641 = vrot.lane.b32.xlu0 %v542, 109
        %v642 = vpop.permute.xlu0 %641
        %v643 = vsel %vm361, %v638, %v640
        %v644 = vsel %vm361, %v640, %v642
        %v649 = vsel %vm361, %v642, %v638
        %s650 = scalar_lea.vmem %s2, 8
        %v651 = vld [vmem:[%s650] sm:$0xff]
        %s652 = scalar_lea.vmem %s2, 16
        %v653 = vld [vmem:[%s652] sm:$0xff]
        %v655 = vsel %vm376, %v653, 0
        %657 = vmatprep.subr.mxu0 %v553
        %658 = vmatpush1.msra.mxu0 %v558
        %659 = vmatprep.subr.mxu0 %v566
        %660 = vmatpush1.msra.mxu0 %v571
        %661 = vmatprep.subr.mxu0 %v579
        %662 = vmatpush1.msra.mxu0 %v584
        %663 = vmatprep.subr.mxu0 %v592
        %664 = vmatpush1.msra.mxu0 %v597
        %665 = vmatprep.subr.mxu0 %v541
        %666 = vmatpush1.msra.mxu0 %v540
        %667 = vmatprep.subr.mxu0 %v605
        %668 = vmatpush1.msra.mxu0 %v604
        %669 = vmatprep.subr.mxu0 %v618
        %670 = vmatpush1.msra.mxu0 %v617
        %671 = vmatprep.subr.mxu0 %v631
        %672 = vmatpush1.msra.mxu0 %v630
        %673 = vmatprep.subr.mxu0 %v644
        %674 = vmatpush1.msra.mxu0 %v643
        %675 = vmatprep.subr.mxu0 0.0
        %676 = vmatpush1.msra.mxu0 0.0
        %677 = vmatprep.subr.mxu0 0.0
        %678 = vmatpush1.msra.mxu0 0.0
        %679 = vmatprep.subr.mxu0 0.0
        %680 = vmatpush1.msra.mxu0 0.0
        %681 = vmatprep.subr.mxu0 0.0
        %682 = vmatpush1.msra.mxu0 0.0
        %683 = vmatprep.subr.mxu0 0.0
        %684 = vmatpush1.msra.mxu0 0.0
        %685 = vmatprep.subr.mxu0 0.0
        %686 = vmatpush1.msra.mxu0 0.0
        %687 = vmatprep.subr.mxu0 0.0
        %688 = vmatpush1.msra.mxu0 0.0
        %689 = vmatprep.subr.mxu0 0.0
        %690 = vmatpush1.msra.mxu0 0.0
        %691 = vmatprep.subr.mxu0 0.0
        %692 = vmatpush1.msra.mxu0 0.0
        %693 = vmatprep.subr.mxu0 0.0
        %694 = vmatpush1.msra.mxu0 0.0
        %695 = vmatprep.subr.mxu0 0.0
        %696 = vmatpush1.msra.mxu0 0.0
        %697 = vmatprep.subr.mxu0 0.0
        %698 = vmatpush1.msra.mxu0 0.0
        %699 = vmatprep.subr.mxu0 0.0
        %700 = vmatpush1.msra.mxu0 0.0
        %701 = vmatprep.subr.mxu0 0.0
        %702 = vmatpush1.msra.mxu0 0.0
        %703 = vmatprep.subr.mxu0 0.0
        %704 = vmatpush1.msra.mxu0 0.0
        %705 = vmatprep.subr.mxu0 0.0
        %706 = vmatpush1.msra.mxu0 0.0
        %707 = vmatprep.subr.mxu0 0.0
        %708 = vmatpush1.msra.mxu0 0.0
        %709 = vmatprep.subr.mxu0 0.0
        %710 = vmatpush1.msra.mxu0 0.0
        %711 = vmatprep.subr.mxu0 0.0
        %712 = vmatpush1.msra.mxu0 0.0
        %713 = vmatprep.subr.mxu0 0.0
        %714 = vmatpush1.msra.mxu0 0.0
        %715 = vmatprep.subr.mxu0 0.0
        %716 = vmatpush1.msra.mxu0 0.0
        %717 = vmatprep.subr.mxu0 0.0
        %718 = vmatpush1.msra.mxu0 0.0
        %719 = vmatprep.subr.mxu0 0.0
        %720 = vmatpush1.msra.mxu0 0.0
        %721 = vmatprep.mubr.f32.mxu0 0.0
        %722 = vmatmul.mubr.f32.gmra.mrb[0].mxu0 %v655
        %v723 = vpop.f32.mrb[0].mxu0
        %v724 = vadd.f32 0.0, %v723
        %v725 = vpop.f32.mrb[0].mxu0
        %v726 = vadd.f32 0.0, %v725
        %727 = vdwg.mxu0
        %728 = vmatprep.subr.mxu0 0.0
        %729 = vmatpush1.msra.mxu0 %v554
        %730 = vmatprep.subr.mxu0 0.0
        %731 = vmatpush1.msra.mxu0 %v567
        %732 = vmatprep.subr.mxu0 0.0
        %733 = vmatpush1.msra.mxu0 %v580
        %734 = vmatprep.subr.mxu0 0.0
        %735 = vmatpush1.msra.mxu0 %v593
        %736 = vmatprep.subr.mxu0 0.0
        %737 = vmatpush1.msra.mxu0 %v542
        %738 = vmatprep.subr.mxu0 0.0
        %739 = vmatpush1.msra.mxu0 %v610
        %740 = vmatprep.subr.mxu0 0.0
        %741 = vmatpush1.msra.mxu0 %v623
        %742 = vmatprep.subr.mxu0 0.0
        %743 = vmatpush1.msra.mxu0 %v636
        %744 = vmatprep.subr.mxu0 0.0
        %745 = vmatpush1.msra.mxu0 %v649
        %746 = vmatprep.subr.mxu0 0.0
        %747 = vmatpush1.msra.mxu0 0.0
        %748 = vmatprep.subr.mxu0 0.0
        %749 = vmatpush1.msra.mxu0 0.0
        %750 = vmatprep.subr.mxu0 0.0
        %751 = vmatpush1.msra.mxu0 0.0
        %752 = vmatprep.subr.mxu0 0.0
        %753 = vmatpush1.msra.mxu0 0.0
        %754 = vmatprep.subr.mxu0 0.0
        %755 = vmatpush1.msra.mxu0 0.0
        %756 = vmatprep.subr.mxu0 0.0
        %757 = vmatpush1.msra.mxu0 0.0
        %758 = vmatprep.subr.mxu0 0.0
        %759 = vmatpush1.msra.mxu0 0.0
        %760 = vmatprep.subr.mxu0 0.0
        %761 = vmatpush1.msra.mxu0 0.0
        %762 = vmatprep.subr.mxu0 0.0
        %763 = vmatpush1.msra.mxu0 0.0
        %764 = vmatprep.subr.mxu0 0.0
        %765 = vmatpush1.msra.mxu0 0.0
        %766 = vmatprep.subr.mxu0 0.0
        %767 = vmatpush1.msra.mxu0 0.0
        %768 = vmatprep.subr.mxu0 0.0
        %769 = vmatpush1.msra.mxu0 0.0
        %770 = vmatprep.subr.mxu0 0.0
        %771 = vmatpush1.msra.mxu0 0.0
        %772 = vmatprep.subr.mxu0 0.0
        %773 = vmatpush1.msra.mxu0 0.0
        %774 = vmatprep.subr.mxu0 0.0
        %775 = vmatpush1.msra.mxu0 0.0
        %776 = vmatprep.subr.mxu0 0.0
        %777 = vmatpush1.msra.mxu0 0.0
        %778 = vmatprep.subr.mxu0 0.0
        %779 = vmatpush1.msra.mxu0 0.0
        %780 = vmatprep.subr.mxu0 0.0
        %781 = vmatpush1.msra.mxu0 0.0
        %782 = vmatprep.subr.mxu0 0.0
        %783 = vmatpush1.msra.mxu0 0.0
        %784 = vmatprep.subr.mxu0 0.0
        %785 = vmatpush1.msra.mxu0 0.0
        %786 = vmatprep.subr.mxu0 0.0
        %787 = vmatpush1.msra.mxu0 0.0
        %788 = vmatprep.subr.mxu0 0.0
        %789 = vmatpush1.msra.mxu0 0.0
        %790 = vmatprep.subr.mxu0 0.0
        %791 = vmatpush1.msra.mxu0 0.0
        %792 = vmatprep.mubr.f32.mxu0 0.0
        %793 = vmatmul.mubr.f32.gmra.mrb[0].mxu0 %v655
        %v794 = vpop.f32.mrb[0].mxu0
        %v795 = vadd.f32 0.0, %v794
        %v796 = vpop.f32.mrb[0].mxu0
        %797 = vdwg.mxu0
        %v799 = vsel %vm376, %v651, 0
        %801 = vmatprep.subr.mxu0 %v265
        %802 = vmatpush1.msra.mxu0 %v270
        %803 = vmatprep.subr.mxu0 %v279
        %804 = vmatpush1.msra.mxu0 %v284
        %805 = vmatprep.subr.mxu0 %v293
        %806 = vmatpush1.msra.mxu0 %v298
        %807 = vmatprep.subr.mxu0 %v307
        %808 = vmatpush1.msra.mxu0 %v312
        %809 = vmatprep.subr.mxu0 %v252
        %810 = vmatpush1.msra.mxu0 %v251
        %811 = vmatprep.subr.mxu0 %v321
        %812 = vmatpush1.msra.mxu0 %v320
        %813 = vmatprep.subr.mxu0 %v335
        %814 = vmatpush1.msra.mxu0 %v334
        %815 = vmatprep.subr.mxu0 %v349
        %816 = vmatpush1.msra.mxu0 %v348
        %817 = vmatprep.subr.mxu0 %v363
        %818 = vmatpush1.msra.mxu0 %v362
        %819 = vmatprep.subr.mxu0 0.0
        %820 = vmatpush1.msra.mxu0 0.0
        %821 = vmatprep.subr.mxu0 0.0
        %822 = vmatpush1.msra.mxu0 0.0
        %823 = vmatprep.subr.mxu0 0.0
        %824 = vmatpush1.msra.mxu0 0.0
        %825 = vmatprep.subr.mxu0 0.0
        %826 = vmatpush1.msra.mxu0 0.0
        %827 = vmatprep.subr.mxu0 0.0
        %828 = vmatpush1.msra.mxu0 0.0
        %829 = vmatprep.subr.mxu0 0.0
        %830 = vmatpush1.msra.mxu0 0.0
        %831 = vmatprep.subr.mxu0 0.0
        %832 = vmatpush1.msra.mxu0 0.0
        %833 = vmatprep.subr.mxu0 0.0
        %834 = vmatpush1.msra.mxu0 0.0
        %835 = vmatprep.subr.mxu0 0.0
        %836 = vmatpush1.msra.mxu0 0.0
        %837 = vmatprep.subr.mxu0 0.0
        %838 = vmatpush1.msra.mxu0 0.0
        %839 = vmatprep.subr.mxu0 0.0
        %840 = vmatpush1.msra.mxu0 0.0
        %841 = vmatprep.subr.mxu0 0.0
        %842 = vmatpush1.msra.mxu0 0.0
        %843 = vmatprep.subr.mxu0 0.0
        %844 = vmatpush1.msra.mxu0 0.0
        %845 = vmatprep.subr.mxu0 0.0
        %846 = vmatpush1.msra.mxu0 0.0
        %847 = vmatprep.subr.mxu0 0.0
        %848 = vmatpush1.msra.mxu0 0.0
        %849 = vmatprep.subr.mxu0 0.0
        %850 = vmatpush1.msra.mxu0 0.0
        %851 = vmatprep.subr.mxu0 0.0
        %852 = vmatpush1.msra.mxu0 0.0
        %853 = vmatprep.subr.mxu0 0.0
        %854 = vmatpush1.msra.mxu0 0.0
        %855 = vmatprep.subr.mxu0 0.0
        %856 = vmatpush1.msra.mxu0 0.0
        %857 = vmatprep.subr.mxu0 0.0
        %858 = vmatpush1.msra.mxu0 0.0
        %859 = vmatprep.subr.mxu0 0.0
        %860 = vmatpush1.msra.mxu0 0.0
        %861 = vmatprep.subr.mxu0 0.0
        %862 = vmatpush1.msra.mxu0 0.0
        %863 = vmatprep.subr.mxu0 0.0
        %864 = vmatpush1.msra.mxu0 0.0
        %865 = vmatprep.mubr.f32.mxu0 0.0
        %866 = vmatmul.mubr.f32.gmra.mrb[0].mxu0 %v799
        %v867 = vpop.f32.mrb[0].mxu0
        %v868 = vadd.f32 %v724, %v867
        %v869 = vpop.f32.mrb[0].mxu0
        %v870 = vadd.f32 %v726, %v869
        %871 = vdwg.mxu0
        %872 = vmatprep.subr.mxu0 0.0
        %873 = vmatpush1.msra.mxu0 %v266
        %874 = vmatprep.subr.mxu0 0.0
        %875 = vmatpush1.msra.mxu0 %v280
        %876 = vmatprep.subr.mxu0 0.0
        %877 = vmatpush1.msra.mxu0 %v294
        %878 = vmatprep.subr.mxu0 0.0
        %879 = vmatpush1.msra.mxu0 %v308
        %880 = vmatprep.subr.mxu0 0.0
        %881 = vmatpush1.msra.mxu0 %v253
        %882 = vmatprep.subr.mxu0 0.0
        %883 = vmatpush1.msra.mxu0 %v326
        %884 = vmatprep.subr.mxu0 0.0
        %885 = vmatpush1.msra.mxu0 %v340
        %886 = vmatprep.subr.mxu0 0.0
        %887 = vmatpush1.msra.mxu0 %v354
        %888 = vmatprep.subr.mxu0 0.0
        %889 = vmatpush1.msra.mxu0 %v368
        %890 = vmatprep.subr.mxu0 0.0
        %891 = vmatpush1.msra.mxu0 0.0
        %892 = vmatprep.subr.mxu0 0.0
        %893 = vmatpush1.msra.mxu0 0.0
        %894 = vmatprep.subr.mxu0 0.0
        %895 = vmatpush1.msra.mxu0 0.0
        %896 = vmatprep.subr.mxu0 0.0
        %897 = vmatpush1.msra.mxu0 0.0
        %898 = vmatprep.subr.mxu0 0.0
        %899 = vmatpush1.msra.mxu0 0.0
        %900 = vmatprep.subr.mxu0 0.0
        %901 = vmatpush1.msra.mxu0 0.0
        %902 = vmatprep.subr.mxu0 0.0
        %903 = vmatpush1.msra.mxu0 0.0
        %904 = vmatprep.subr.mxu0 0.0
        %905 = vmatpush1.msra.mxu0 0.0
        %906 = vmatprep.subr.mxu0 0.0
        %907 = vmatpush1.msra.mxu0 0.0
        %908 = vmatprep.subr.mxu0 0.0
        %909 = vmatpush1.msra.mxu0 0.0
        %910 = vmatprep.subr.mxu0 0.0
        %911 = vmatpush1.msra.mxu0 0.0
        %912 = vmatprep.subr.mxu0 0.0
        %913 = vmatpush1.msra.mxu0 0.0
        %914 = vmatprep.subr.mxu0 0.0
        %915 = vmatpush1.msra.mxu0 0.0
        %916 = vmatprep.subr.mxu0 0.0
        %917 = vmatpush1.msra.mxu0 0.0
        %918 = vmatprep.subr.mxu0 0.0
        %919 = vmatpush1.msra.mxu0 0.0
        %920 = vmatprep.subr.mxu0 0.0
        %921 = vmatpush1.msra.mxu0 0.0
        %922 = vmatprep.subr.mxu0 0.0
        %923 = vmatpush1.msra.mxu0 0.0
        %924 = vmatprep.subr.mxu0 0.0
        %925 = vmatpush1.msra.mxu0 0.0
        %926 = vmatprep.subr.mxu0 0.0
        %927 = vmatpush1.msra.mxu0 0.0
        %928 = vmatprep.subr.mxu0 0.0
        %929 = vmatpush1.msra.mxu0 0.0
        %930 = vmatprep.subr.mxu0 0.0
        %931 = vmatpush1.msra.mxu0 0.0
        %932 = vmatprep.subr.mxu0 0.0
        %933 = vmatpush1.msra.mxu0 0.0
        %934 = vmatprep.subr.mxu0 0.0
        %935 = vmatpush1.msra.mxu0 0.0
        %936 = vmatprep.mubr.f32.mxu0 0.0
        %937 = vmatmul.mubr.f32.gmra.mrb[0].mxu0 %v799
        %v938 = vpop.f32.mrb[0].mxu0
        %v939 = vadd.f32 %v795, %v938
        %v940 = vpop.f32.mrb[0].mxu0
        %941 = vdwg.mxu0
        %s942 = scalar_lea.vmem %s4, 8
        %v943 = vld [vmem:[%s942] sm:$0xff]
        %945 = vset.pattern.permute.xlu0 0
        %946 = vperm.xlu0 %945, %v943
        %v947 = vpop.permute.xlu0 %946
        %v949 = vadd.f32 %v868, %v947
        %v950 = vadd.f32 %v870, %v947
        %v951 = vadd.f32 %v939, %v947
        %v952 = vmax.f32 %v949, 0.0
        %v953 = vmax.f32 %v950, 0.0
        %v954 = vmax.f32 %v951, 0.0
        %v955 = vmul.f32 %v952, %v528
        %v956 = vmul.f32 %v953, %v532
        %v957 = vmul.f32 %v954, %v536
        %959 = vrot.lane.b32.xlu0 %v957, 19
        %v960 = vpop.permute.xlu0 %959
        %964 = vrot.lane.b32.xlu0 %v955, 19
        %v965 = vpop.permute.xlu0 %964
        %966 = vrot.lane.b32.xlu0 %v956, 19
        %v967 = vpop.permute.xlu0 %966
        %v968 = vsel %vm264, %v965, %v967
        %v969 = vsel %vm264, %v967, %v960
        %v973 = vsel %vm264, %v960, %v965
        %974 = vrot.lane.b32.xlu0 %v957, 18
        %v975 = vpop.permute.xlu0 %974
        %977 = vrot.lane.b32.xlu0 %v955, 18
        %v978 = vpop.permute.xlu0 %977
        %979 = vrot.lane.b32.xlu0 %v956, 18
        %v980 = vpop.permute.xlu0 %979
        %v981 = vsel %vm278, %v978, %v980
        %v982 = vsel %vm278, %v980, %v975
        %v986 = vsel %vm278, %v975, %v978
        %987 = vrot.lane.b32.xlu0 %v957, 17
        %v988 = vpop.permute.xlu0 %987
        %990 = vrot.lane.b32.xlu0 %v955, 17
        %v991 = vpop.permute.xlu0 %990
        %992 = vrot.lane.b32.xlu0 %v956, 17
        %v993 = vpop.permute.xlu0 %992
        %v994 = vsel %vm292, %v991, %v993
        %v995 = vsel %vm292, %v993, %v988
        %v999 = vsel %vm292, %v988, %v991
        %1000 = vrot.lane.b32.xlu0 %v957, 1
        %v1001 = vpop.permute.xlu0 %1000
        %1003 = vrot.lane.b32.xlu0 %v955, 1
        %v1004 = vpop.permute.xlu0 %1003
        %1005 = vrot.lane.b32.xlu0 %v956, 1
        %v1006 = vpop.permute.xlu0 %1005
        %v1007 = vsel %vm306, %v1004, %v1006
        %v1008 = vsel %vm306, %v1006, %v1001
        %v1012 = vsel %vm306, %v1001, %v1004
        %1013 = vrot.lane.b32.xlu0 %v955, 127
        %v1014 = vpop.permute.xlu0 %1013
        %1015 = vrot.lane.b32.xlu0 %v956, 127
        %v1016 = vpop.permute.xlu0 %1015
        %1017 = vrot.lane.b32.xlu0 %v957, 127
        %v1018 = vpop.permute.xlu0 %1017
        %v1019 = vsel %vm319, %v1014, %v1016
        %v1020 = vsel %vm319, %v1016, %v1018
        %v1025 = vsel %vm319, %v1018, %v1014
        %1026 = vrot.lane.b32.xlu0 %v955, 111
        %v1027 = vpop.permute.xlu0 %1026
        %1028 = vrot.lane.b32.xlu0 %v956, 111
        %v1029 = vpop.permute.xlu0 %1028
        %1030 = vrot.lane.b32.xlu0 %v957, 111
        %v1031 = vpop.permute.xlu0 %1030
        %v1032 = vsel %vm333, %v1027, %v1029
        %v1033 = vsel %vm333, %v1029, %v1031
        %v1038 = vsel %vm333, %v1031, %v1027
        %1039 = vrot.lane.b32.xlu0 %v955, 110
        %v1040 = vpop.permute.xlu0 %1039
        %1041 = vrot.lane.b32.xlu0 %v956, 110
        %v1042 = vpop.permute.xlu0 %1041
        %1043 = vrot.lane.b32.xlu0 %v957, 110
        %v1044 = vpop.permute.xlu0 %1043
        %v1045 = vsel %vm347, %v1040, %v1042
        %v1046 = vsel %vm347, %v1042, %v1044
        %v1051 = vsel %vm347, %v1044, %v1040
        %1052 = vrot.lane.b32.xlu0 %v955, 109
        %v1053 = vpop.permute.xlu0 %1052
        %1054 = vrot.lane.b32.xlu0 %v956, 109
        %v1055 = vpop.permute.xlu0 %1054
        %1056 = vrot.lane.b32.xlu0 %v957, 109
        %v1057 = vpop.permute.xlu0 %1056
        %v1058 = vsel %vm361, %v1053, %v1055
        %v1059 = vsel %vm361, %v1055, %v1057
        %v1064 = vsel %vm361, %v1057, %v1053
        %s1065 = scalar_lea.vmem %s2, 24
        %v1066 = vld [vmem:[%s1065] sm:$0xff]
        %s1067 = scalar_lea.vmem %s2, 32
        %v1068 = vld [vmem:[%s1067] sm:$0xff]
        %v1070 = vsel %vm376, %v1068, 0
        %1072 = vmatprep.subr.mxu0 %v553
        %1073 = vmatpush1.msra.mxu0 %v558
        %1074 = vmatprep.subr.mxu0 %v566
        %1075 = vmatpush1.msra.mxu0 %v571
        %1076 = vmatprep.subr.mxu0 %v579
        %1077 = vmatpush1.msra.mxu0 %v584
        %1078 = vmatprep.subr.mxu0 %v592
        %1079 = vmatpush1.msra.mxu0 %v597
        %1080 = vmatprep.subr.mxu0 %v541
        %1081 = vmatpush1.msra.mxu0 %v540
        %1082 = vmatprep.subr.mxu0 %v605
        %1083 = vmatpush1.msra.mxu0 %v604
        %1084 = vmatprep.subr.mxu0 %v618
        %1085 = vmatpush1.msra.mxu0 %v617
        %1086 = vmatprep.subr.mxu0 %v631
        %1087 = vmatpush1.msra.mxu0 %v630
        %1088 = vmatprep.subr.mxu0 %v644
        %1089 = vmatpush1.msra.mxu0 %v643
        %1090 = vmatprep.subr.mxu0 0.0
        %1091 = vmatpush1.msra.mxu0 0.0
        %1092 = vmatprep.subr.mxu0 0.0
        %1093 = vmatpush1.msra.mxu0 0.0
        %1094 = vmatprep.subr.mxu0 0.0
        %1095 = vmatpush1.msra.mxu0 0.0
        %1096 = vmatprep.subr.mxu0 0.0
        %1097 = vmatpush1.msra.mxu0 0.0
        %1098 = vmatprep.subr.mxu0 0.0
        %1099 = vmatpush1.msra.mxu0 0.0
        %1100 = vmatprep.subr.mxu0 0.0
        %1101 = vmatpush1.msra.mxu0 0.0
        %1102 = vmatprep.subr.mxu0 0.0
        %1103 = vmatpush1.msra.mxu0 0.0
        %1104 = vmatprep.subr.mxu0 0.0
        %1105 = vmatpush1.msra.mxu0 0.0
        %1106 = vmatprep.subr.mxu0 0.0
        %1107 = vmatpush1.msra.mxu0 0.0
        %1108 = vmatprep.subr.mxu0 0.0
        %1109 = vmatpush1.msra.mxu0 0.0
        %1110 = vmatprep.subr.mxu0 0.0
        %1111 = vmatpush1.msra.mxu0 0.0
        %1112 = vmatprep.subr.mxu0 0.0
        %1113 = vmatpush1.msra.mxu0 0.0
        %1114 = vmatprep.subr.mxu0 0.0
        %1115 = vmatpush1.msra.mxu0 0.0
        %1116 = vmatprep.subr.mxu0 0.0
        %1117 = vmatpush1.msra.mxu0 0.0
        %1118 = vmatprep.subr.mxu0 0.0
        %1119 = vmatpush1.msra.mxu0 0.0
        %1120 = vmatprep.subr.mxu0 0.0
        %1121 = vmatpush1.msra.mxu0 0.0
        %1122 = vmatprep.subr.mxu0 0.0
        %1123 = vmatpush1.msra.mxu0 0.0
        %1124 = vmatprep.subr.mxu0 0.0
        %1125 = vmatpush1.msra.mxu0 0.0
        %1126 = vmatprep.subr.mxu0 0.0
        %1127 = vmatpush1.msra.mxu0 0.0
        %1128 = vmatprep.subr.mxu0 0.0
        %1129 = vmatpush1.msra.mxu0 0.0
        %1130 = vmatprep.subr.mxu0 0.0
        %1131 = vmatpush1.msra.mxu0 0.0
        %1132 = vmatprep.subr.mxu0 0.0
        %1133 = vmatpush1.msra.mxu0 0.0
        %1134 = vmatprep.subr.mxu0 0.0
        %1135 = vmatpush1.msra.mxu0 0.0
        %1136 = vmatprep.mubr.f32.mxu0 0.0
        %1137 = vmatmul.mubr.f32.gmra.mrb[0].mxu0 %v1070
        %v1138 = vpop.f32.mrb[0].mxu0
        %v1139 = vadd.f32 0.0, %v1138
        %v1140 = vpop.f32.mrb[0].mxu0
        %v1141 = vadd.f32 0.0, %v1140
        %1142 = vdwg.mxu0
        %1143 = vmatprep.subr.mxu0 0.0
        %1144 = vmatpush1.msra.mxu0 %v554
        %1145 = vmatprep.subr.mxu0 0.0
        %1146 = vmatpush1.msra.mxu0 %v567
        %1147 = vmatprep.subr.mxu0 0.0
        %1148 = vmatpush1.msra.mxu0 %v580
        %1149 = vmatprep.subr.mxu0 0.0
        %1150 = vmatpush1.msra.mxu0 %v593
        %1151 = vmatprep.subr.mxu0 0.0
        %1152 = vmatpush1.msra.mxu0 %v542
        %1153 = vmatprep.subr.mxu0 0.0
        %1154 = vmatpush1.msra.mxu0 %v610
        %1155 = vmatprep.subr.mxu0 0.0
        %1156 = vmatpush1.msra.mxu0 %v623
        %1157 = vmatprep.subr.mxu0 0.0
        %1158 = vmatpush1.msra.mxu0 %v636
        %1159 = vmatprep.subr.mxu0 0.0
        %1160 = vmatpush1.msra.mxu0 %v649
        %1161 = vmatprep.subr.mxu0 0.0
        %1162 = vmatpush1.msra.mxu0 0.0
        %1163 = vmatprep.subr.mxu0 0.0
        %1164 = vmatpush1.msra.mxu0 0.0
        %1165 = vmatprep.subr.mxu0 0.0
        %1166 = vmatpush1.msra.mxu0 0.0
        %1167 = vmatprep.subr.mxu0 0.0
        %1168 = vmatpush1.msra.mxu0 0.0
        %1169 = vmatprep.subr.mxu0 0.0
        %1170 = vmatpush1.msra.mxu0 0.0
        %1171 = vmatprep.subr.mxu0 0.0
        %1172 = vmatpush1.msra.mxu0 0.0
        %1173 = vmatprep.subr.mxu0 0.0
        %1174 = vmatpush1.msra.mxu0 0.0
        %1175 = vmatprep.subr.mxu0 0.0
        %1176 = vmatpush1.msra.mxu0 0.0
        %1177 = vmatprep.subr.mxu0 0.0
        %1178 = vmatpush1.msra.mxu0 0.0
        %1179 = vmatprep.subr.mxu0 0.0
        %1180 = vmatpush1.msra.mxu0 0.0
        %1181 = vmatprep.subr.mxu0 0.0
        %1182 = vmatpush1.msra.mxu0 0.0
        %1183 = vmatprep.subr.mxu0 0.0
        %1184 = vmatpush1.msra.mxu0 0.0
        %1185 = vmatprep.subr.mxu0 0.0
        %1186 = vmatpush1.msra.mxu0 0.0
        %1187 = vmatprep.subr.mxu0 0.0
        %1188 = vmatpush1.msra.mxu0 0.0
        %1189 = vmatprep.subr.mxu0 0.0
        %1190 = vmatpush1.msra.mxu0 0.0
        %1191 = vmatprep.subr.mxu0 0.0
        %1192 = vmatpush1.msra.mxu0 0.0
        %1193 = vmatprep.subr.mxu0 0.0
        %1194 = vmatpush1.msra.mxu0 0.0
        %1195 = vmatprep.subr.mxu0 0.0
        %1196 = vmatpush1.msra.mxu0 0.0
        %1197 = vmatprep.subr.mxu0 0.0
        %1198 = vmatpush1.msra.mxu0 0.0
        %1199 = vmatprep.subr.mxu0 0.0
        %1200 = vmatpush1.msra.mxu0 0.0
        %1201 = vmatprep.subr.mxu0 0.0
        %1202 = vmatpush1.msra.mxu0 0.0
        %1203 = vmatprep.subr.mxu0 0.0
        %1204 = vmatpush1.msra.mxu0 0.0
        %1205 = vmatprep.subr.mxu0 0.0
        %1206 = vmatpush1.msra.mxu0 0.0
        %1207 = vmatprep.mubr.f32.mxu0 0.0
        %1208 = vmatmul.mubr.f32.gmra.mrb[0].mxu0 %v1070
        %v1209 = vpop.f32.mrb[0].mxu0
        %v1210 = vadd.f32 0.0, %v1209
        %v1211 = vpop.f32.mrb[0].mxu0
        %1212 = vdwg.mxu0
        %v1214 = vsel %vm376, %v1066, 0
        %1216 = vmatprep.subr.mxu0 %v265
        %1217 = vmatpush1.msra.mxu0 %v270
        %1218 = vmatprep.subr.mxu0 %v279
        %1219 = vmatpush1.msra.mxu0 %v284
        %1220 = vmatprep.subr.mxu0 %v293
        %1221 = vmatpush1.msra.mxu0 %v298
        %1222 = vmatprep.subr.mxu0 %v307
        %1223 = vmatpush1.msra.mxu0 %v312
        %1224 = vmatprep.subr.mxu0 %v252
        %1225 = vmatpush1.msra.mxu0 %v251
        %1226 = vmatprep.subr.mxu0 %v321
        %1227 = vmatpush1.msra.mxu0 %v320
        %1228 = vmatprep.subr.mxu0 %v335
        %1229 = vmatpush1.msra.mxu0 %v334
        %1230 = vmatprep.subr.mxu0 %v349
        %1231 = vmatpush1.msra.mxu0 %v348
        %1232 = vmatprep.subr.mxu0 %v363
        %1233 = vmatpush1.msra.mxu0 %v362
        %1234 = vmatprep.subr.mxu0 0.0
        %1235 = vmatpush1.msra.mxu0 0.0
        %1236 = vmatprep.subr.mxu0 0.0
        %1237 = vmatpush1.msra.mxu0 0.0
        %1238 = vmatprep.subr.mxu0 0.0
        %1239 = vmatpush1.msra.mxu0 0.0
        %1240 = vmatprep.subr.mxu0 0.0
        %1241 = vmatpush1.msra.mxu0 0.0
        %1242 = vmatprep.subr.mxu0 0.0
        %1243 = vmatpush1.msra.mxu0 0.0
        %1244 = vmatprep.subr.mxu0 0.0
        %1245 = vmatpush1.msra.mxu0 0.0
        %1246 = vmatprep.subr.mxu0 0.0
        %1247 = vmatpush1.msra.mxu0 0.0
        %1248 = vmatprep.subr.mxu0 0.0
        %1249 = vmatpush1.msra.mxu0 0.0
        %1250 = vmatprep.subr.mxu0 0.0
        %1251 = vmatpush1.msra.mxu0 0.0
        %1252 = vmatprep.subr.mxu0 0.0
        %1253 = vmatpush1.msra.mxu0 0.0
        %1254 = vmatprep.subr.mxu0 0.0
        %1255 = vmatpush1.msra.mxu0 0.0
        %1256 = vmatprep.subr.mxu0 0.0
        %1257 = vmatpush1.msra.mxu0 0.0
        %1258 = vmatprep.subr.mxu0 0.0
        %1259 = vmatpush1.msra.mxu0 0.0
        %1260 = vmatprep.subr.mxu0 0.0
        %1261 = vmatpush1.msra.mxu0 0.0
        %1262 = vmatprep.subr.mxu0 0.0
        %1263 = vmatpush1.msra.mxu0 0.0
        %1264 = vmatprep.subr.mxu0 0.0
        %1265 = vmatpush1.msra.mxu0 0.0
        %1266 = vmatprep.subr.mxu0 0.0
        %1267 = vmatpush1.msra.mxu0 0.0
        %1268 = vmatprep.subr.mxu0 0.0
        %1269 = vmatpush1.msra.mxu0 0.0
        %1270 = vmatprep.subr.mxu0 0.0
        %1271 = vmatpush1.msra.mxu0 0.0
        %1272 = vmatprep.subr.mxu0 0.0
        %1273 = vmatpush1.msra.mxu0 0.0
        %1274 = vmatprep.subr.mxu0 0.0
        %1275 = vmatpush1.msra.mxu0 0.0
        %1276 = vmatprep.subr.mxu0 0.0
        %1277 = vmatpush1.msra.mxu0 0.0
        %1278 = vmatprep.subr.mxu0 0.0
        %1279 = vmatpush1.msra.mxu0 0.0
        %1280 = vmatprep.mubr.f32.mxu0 0.0
        %1281 = vmatmul.mubr.f32.gmra.mrb[0].mxu0 %v1214
        %v1282 = vpop.f32.mrb[0].mxu0
        %v1283 = vadd.f32 %v1139, %v1282
        %v1284 = vpop.f32.mrb[0].mxu0
        %v1285 = vadd.f32 %v1141, %v1284
        %1286 = vdwg.mxu0
        %1287 = vmatprep.subr.mxu0 0.0
        %1288 = vmatpush1.msra.mxu0 %v266
        %1289 = vmatprep.subr.mxu0 0.0
        %1290 = vmatpush1.msra.mxu0 %v280
        %1291 = vmatprep.subr.mxu0 0.0
        %1292 = vmatpush1.msra.mxu0 %v294
        %1293 = vmatprep.subr.mxu0 0.0
        %1294 = vmatpush1.msra.mxu0 %v308
        %1295 = vmatprep.subr.mxu0 0.0
        %1296 = vmatpush1.msra.mxu0 %v253
        %1297 = vmatprep.subr.mxu0 0.0
        %1298 = vmatpush1.msra.mxu0 %v326
        %1299 = vmatprep.subr.mxu0 0.0
        %1300 = vmatpush1.msra.mxu0 %v340
        %1301 = vmatprep.subr.mxu0 0.0
        %1302 = vmatpush1.msra.mxu0 %v354
        %1303 = vmatprep.subr.mxu0 0.0
        %1304 = vmatpush1.msra.mxu0 %v368
        %1305 = vmatprep.subr.mxu0 0.0
        %1306 = vmatpush1.msra.mxu0 0.0
        %1307 = vmatprep.subr.mxu0 0.0
        %1308 = vmatpush1.msra.mxu0 0.0
        %1309 = vmatprep.subr.mxu0 0.0
        %1310 = vmatpush1.msra.mxu0 0.0
        %1311 = vmatprep.subr.mxu0 0.0
        %1312 = vmatpush1.msra.mxu0 0.0
        %1313 = vmatprep.subr.mxu0 0.0
        %1314 = vmatpush1.msra.mxu0 0.0
        %1315 = vmatprep.subr.mxu0 0.0
        %1316 = vmatpush1.msra.mxu0 0.0
        %1317 = vmatprep.subr.mxu0 0.0
        %1318 = vmatpush1.msra.mxu0 0.0
        %1319 = vmatprep.subr.mxu0 0.0
        %1320 = vmatpush1.msra.mxu0 0.0
        %1321 = vmatprep.subr.mxu0 0.0
        %1322 = vmatpush1.msra.mxu0 0.0
        %1323 = vmatprep.subr.mxu0 0.0
        %1324 = vmatpush1.msra.mxu0 0.0
        %1325 = vmatprep.subr.mxu0 0.0
        %1326 = vmatpush1.msra.mxu0 0.0
        %1327 = vmatprep.subr.mxu0 0.0
        %1328 = vmatpush1.msra.mxu0 0.0
        %1329 = vmatprep.subr.mxu0 0.0
        %1330 = vmatpush1.msra.mxu0 0.0
        %1331 = vmatprep.subr.mxu0 0.0
        %1332 = vmatpush1.msra.mxu0 0.0
        %1333 = vmatprep.subr.mxu0 0.0
        %1334 = vmatpush1.msra.mxu0 0.0
        %1335 = vmatprep.subr.mxu0 0.0
        %1336 = vmatpush1.msra.mxu0 0.0
        %1337 = vmatprep.subr.mxu0 0.0
        %1338 = vmatpush1.msra.mxu0 0.0
        %1339 = vmatprep.subr.mxu0 0.0
        %1340 = vmatpush1.msra.mxu0 0.0
        %1341 = vmatprep.subr.mxu0 0.0
        %1342 = vmatpush1.msra.mxu0 0.0
        %1343 = vmatprep.subr.mxu0 0.0
        %1344 = vmatpush1.msra.mxu0 0.0
        %1345 = vmatprep.subr.mxu0 0.0
        %1346 = vmatpush1.msra.mxu0 0.0
        %1347 = vmatprep.subr.mxu0 0.0
        %1348 = vmatpush1.msra.mxu0 0.0
        %1349 = vmatprep.subr.mxu0 0.0
        %1350 = vmatpush1.msra.mxu0 0.0
        %1351 = vmatprep.mubr.f32.mxu0 0.0
        %1352 = vmatmul.mubr.f32.gmra.mrb[0].mxu0 %v1214
        %v1353 = vpop.f32.mrb[0].mxu0
        %v1354 = vadd.f32 %v1210, %v1353
        %v1355 = vpop.f32.mrb[0].mxu0
        %1356 = vdwg.mxu0
        %s1357 = scalar_lea.vmem %s2, 40
        %v1358 = vld [vmem:[%s1357] sm:$0xff]
        %v1360 = vsel %vm376, %v1358, 0
        %1362 = vmatprep.subr.mxu0 %v968
        %1363 = vmatpush1.msra.mxu0 %v973
        %1364 = vmatprep.subr.mxu0 %v981
        %1365 = vmatpush1.msra.mxu0 %v986
        %1366 = vmatprep.subr.mxu0 %v994
        %1367 = vmatpush1.msra.mxu0 %v999
        %1368 = vmatprep.subr.mxu0 %v1007
        %1369 = vmatpush1.msra.mxu0 %v1012
        %1370 = vmatprep.subr.mxu0 %v956
        %1371 = vmatpush1.msra.mxu0 %v955
        %1372 = vmatprep.subr.mxu0 %v1020
        %1373 = vmatpush1.msra.mxu0 %v1019
        %1374 = vmatprep.subr.mxu0 %v1033
        %1375 = vmatpush1.msra.mxu0 %v1032
        %1376 = vmatprep.subr.mxu0 %v1046
        %1377 = vmatpush1.msra.mxu0 %v1045
        %1378 = vmatprep.subr.mxu0 %v1059
        %1379 = vmatpush1.msra.mxu0 %v1058
        %1380 = vmatprep.subr.mxu0 0.0
        %1381 = vmatpush1.msra.mxu0 0.0
        %1382 = vmatprep.subr.mxu0 0.0
        %1383 = vmatpush1.msra.mxu0 0.0
        %1384 = vmatprep.subr.mxu0 0.0
        %1385 = vmatpush1.msra.mxu0 0.0
        %1386 = vmatprep.subr.mxu0 0.0
        %1387 = vmatpush1.msra.mxu0 0.0
        %1388 = vmatprep.subr.mxu0 0.0
        %1389 = vmatpush1.msra.mxu0 0.0
        %1390 = vmatprep.subr.mxu0 0.0
        %1391 = vmatpush1.msra.mxu0 0.0
        %1392 = vmatprep.subr.mxu0 0.0
        %1393 = vmatpush1.msra.mxu0 0.0
        %1394 = vmatprep.subr.mxu0 0.0
        %1395 = vmatpush1.msra.mxu0 0.0
        %1396 = vmatprep.subr.mxu0 0.0
        %1397 = vmatpush1.msra.mxu0 0.0
        %1398 = vmatprep.subr.mxu0 0.0
        %1399 = vmatpush1.msra.mxu0 0.0
        %1400 = vmatprep.subr.mxu0 0.0
        %1401 = vmatpush1.msra.mxu0 0.0
        %1402 = vmatprep.subr.mxu0 0.0
        %1403 = vmatpush1.msra.mxu0 0.0
        %1404 = vmatprep.subr.mxu0 0.0
        %1405 = vmatpush1.msra.mxu0 0.0
        %1406 = vmatprep.subr.mxu0 0.0
        %1407 = vmatpush1.msra.mxu0 0.0
        %1408 = vmatprep.subr.mxu0 0.0
        %1409 = vmatpush1.msra.mxu0 0.0
        %1410 = vmatprep.subr.mxu0 0.0
        %1411 = vmatpush1.msra.mxu0 0.0
        %1412 = vmatprep.subr.mxu0 0.0
        %1413 = vmatpush1.msra.mxu0 0.0
        %1414 = vmatprep.subr.mxu0 0.0
        %1415 = vmatpush1.msra.mxu0 0.0
        %1416 = vmatprep.subr.mxu0 0.0
        %1417 = vmatpush1.msra.mxu0 0.0
        %1418 = vmatprep.subr.mxu0 0.0
        %1419 = vmatpush1.msra.mxu0 0.0
        %1420 = vmatprep.subr.mxu0 0.0
        %1421 = vmatpush1.msra.mxu0 0.0
        %1422 = vmatprep.subr.mxu0 0.0
        %1423 = vmatpush1.msra.mxu0 0.0
        %1424 = vmatprep.subr.mxu0 0.0
        %1425 = vmatpush1.msra.mxu0 0.0
        %1426 = vmatprep.mubr.f32.mxu0 0.0
        %1427 = vmatmul.mubr.f32.gmra.mrb[0].mxu0 %v1360
        %v1428 = vpop.f32.mrb[0].mxu0
        %v1429 = vadd.f32 0.0, %v1428
        %v1430 = vpop.f32.mrb[0].mxu0
        %v1431 = vadd.f32 0.0, %v1430
        %1432 = vdwg.mxu0
        %1433 = vmatprep.subr.mxu0 0.0
        %1434 = vmatpush1.msra.mxu0 %v969
        %1435 = vmatprep.subr.mxu0 0.0
        %1436 = vmatpush1.msra.mxu0 %v982
        %1437 = vmatprep.subr.mxu0 0.0
        %1438 = vmatpush1.msra.mxu0 %v995
        %1439 = vmatprep.subr.mxu0 0.0
        %1440 = vmatpush1.msra.mxu0 %v1008
        %1441 = vmatprep.subr.mxu0 0.0
        %1442 = vmatpush1.msra.mxu0 %v957
        %1443 = vmatprep.subr.mxu0 0.0
        %1444 = vmatpush1.msra.mxu0 %v1025
        %1445 = vmatprep.subr.mxu0 0.0
        %1446 = vmatpush1.msra.mxu0 %v1038
        %1447 = vmatprep.subr.mxu0 0.0
        %1448 = vmatpush1.msra.mxu0 %v1051
        %1449 = vmatprep.subr.mxu0 0.0
        %1450 = vmatpush1.msra.mxu0 %v1064
        %1451 = vmatprep.subr.mxu0 0.0
        %1452 = vmatpush1.msra.mxu0 0.0
        %1453 = vmatprep.subr.mxu0 0.0
        %1454 = vmatpush1.msra.mxu0 0.0
        %1455 = vmatprep.subr.mxu0 0.0
        %1456 = vmatpush1.msra.mxu0 0.0
        %1457 = vmatprep.subr.mxu0 0.0
        %1458 = vmatpush1.msra.mxu0 0.0
        %1459 = vmatprep.subr.mxu0 0.0
        %1460 = vmatpush1.msra.mxu0 0.0
        %1461 = vmatprep.subr.mxu0 0.0
        %1462 = vmatpush1.msra.mxu0 0.0
        %1463 = vmatprep.subr.mxu0 0.0
        %1464 = vmatpush1.msra.mxu0 0.0
        %1465 = vmatprep.subr.mxu0 0.0
        %1466 = vmatpush1.msra.mxu0 0.0
        %1467 = vmatprep.subr.mxu0 0.0
        %1468 = vmatpush1.msra.mxu0 0.0
        %1469 = vmatprep.subr.mxu0 0.0
        %1470 = vmatpush1.msra.mxu0 0.0
        %1471 = vmatprep.subr.mxu0 0.0
        %1472 = vmatpush1.msra.mxu0 0.0
        %1473 = vmatprep.subr.mxu0 0.0
        %1474 = vmatpush1.msra.mxu0 0.0
        %1475 = vmatprep.subr.mxu0 0.0
        %1476 = vmatpush1.msra.mxu0 0.0
        %1477 = vmatprep.subr.mxu0 0.0
        %1478 = vmatpush1.msra.mxu0 0.0
        %1479 = vmatprep.subr.mxu0 0.0
        %1480 = vmatpush1.msra.mxu0 0.0
        %1481 = vmatprep.subr.mxu0 0.0
        %1482 = vmatpush1.msra.mxu0 0.0
        %1483 = vmatprep.subr.mxu0 0.0
        %1484 = vmatpush1.msra.mxu0 0.0
        %1485 = vmatprep.subr.mxu0 0.0
        %1486 = vmatpush1.msra.mxu0 0.0
        %1487 = vmatprep.subr.mxu0 0.0
        %1488 = vmatpush1.msra.mxu0 0.0
        %1489 = vmatprep.subr.mxu0 0.0
        %1490 = vmatpush1.msra.mxu0 0.0
        %1491 = vmatprep.subr.mxu0 0.0
        %1492 = vmatpush1.msra.mxu0 0.0
        %1493 = vmatprep.subr.mxu0 0.0
        %1494 = vmatpush1.msra.mxu0 0.0
        %1495 = vmatprep.subr.mxu0 0.0
        %1496 = vmatpush1.msra.mxu0 0.0
        %1497 = vmatprep.mubr.f32.mxu0 0.0
        %1498 = vmatmul.mubr.f32.gmra.mrb[0].mxu0 %v1360
        %v1499 = vpop.f32.mrb[0].mxu0
        %v1500 = vadd.f32 0.0, %v1499
        %v1501 = vpop.f32.mrb[0].mxu0
        %1502 = vdwg.mxu0
        %v1503 = vadd.f32 %v1283, %v1429
        %v1504 = vadd.f32 %v1285, %v1431
        %v1505 = vadd.f32 %v1354, %v1500
        %s1506 = scalar_lea.vmem %s4, 16
        %v1507 = vld [vmem:[%s1506] sm:$0xff]
        %1509 = vset.pattern.permute.xlu0 0
        %1510 = vperm.xlu0 %1509, %v1507
        %v1511 = vpop.permute.xlu0 %1510
        %v1513 = vadd.f32 %v1503, %v1511
        %v1514 = vadd.f32 %v1504, %v1511
        %v1515 = vadd.f32 %v1505, %v1511
        %v1516 = vmul.f32 %v1513, %v528
        %v1517 = vmul.f32 %v1514, %v532
        %v1518 = vmul.f32 %v1515, %v536
        %v1519 = vadd.f32 %v1516, %v251
        %v1520 = vadd.f32 %v1517, %v252
        %v1521 = vadd.f32 %v1518, %v253
        %v1522 = vld [vmem:[%s3] sm:$0xff]
        %s1523 = scalar_lea.vmem %s3, 8
        %v1524 = vld [vmem:[%s1523] sm:$0xff]
        %vm1525 = vcmask 64512
        %v1527 = vsel %vm1525, %v1524, 0
        %1529 = vmatprep.subr.mxu0 %v1520
        %1530 = vmatpush1.msra.mxu0 %v1519
        %1531 = vmatprep.subr.mxu0 0.0
        %1532 = vmatpush1.msra.mxu0 0.0
        %1533 = vmatprep.subr.mxu0 0.0
        %1534 = vmatpush1.msra.mxu0 0.0
        %1535 = vmatprep.subr.mxu0 0.0
        %1536 = vmatpush1.msra.mxu0 0.0
        %1537 = vmatprep.subr.mxu0 0.0
        %1538 = vmatpush1.msra.mxu0 0.0
        %1539 = vmatprep.subr.mxu0 0.0
        %1540 = vmatpush1.msra.mxu0 0.0
        %1541 = vmatprep.subr.mxu0 0.0
        %1542 = vmatpush1.msra.mxu0 0.0
        %1543 = vmatprep.subr.mxu0 0.0
        %1544 = vmatpush1.msra.mxu0 0.0
        %1545 = vmatprep.subr.mxu0 0.0
        %1546 = vmatpush1.msra.mxu0 0.0
        %1547 = vmatprep.subr.mxu0 0.0
        %1548 = vmatpush1.msra.mxu0 0.0
        %1549 = vmatprep.subr.mxu0 0.0
        %1550 = vmatpush1.msra.mxu0 0.0
        %1551 = vmatprep.subr.mxu0 0.0
        %1552 = vmatpush1.msra.mxu0 0.0
        %1553 = vmatprep.subr.mxu0 0.0
        %1554 = vmatpush1.msra.mxu0 0.0
        %1555 = vmatprep.subr.mxu0 0.0
        %1556 = vmatpush1.msra.mxu0 0.0
        %1557 = vmatprep.subr.mxu0 0.0
        %1558 = vmatpush1.msra.mxu0 0.0
        %1559 = vmatprep.subr.mxu0 0.0
        %1560 = vmatpush1.msra.mxu0 0.0
        %1561 = vmatprep.subr.mxu0 0.0
        %1562 = vmatpush1.msra.mxu0 0.0
        %1563 = vmatprep.subr.mxu0 0.0
        %1564 = vmatpush1.msra.mxu0 0.0
        %1565 = vmatprep.subr.mxu0 0.0
        %1566 = vmatpush1.msra.mxu0 0.0
        %1567 = vmatprep.subr.mxu0 0.0
        %1568 = vmatpush1.msra.mxu0 0.0
        %1569 = vmatprep.subr.mxu0 0.0
        %1570 = vmatpush1.msra.mxu0 0.0
        %1571 = vmatprep.subr.mxu0 0.0
        %1572 = vmatpush1.msra.mxu0 0.0
        %1573 = vmatprep.subr.mxu0 0.0
        %1574 = vmatpush1.msra.mxu0 0.0
        %1575 = vmatprep.subr.mxu0 0.0
        %1576 = vmatpush1.msra.mxu0 0.0
        %1577 = vmatprep.subr.mxu0 0.0
        %1578 = vmatpush1.msra.mxu0 0.0
        %1579 = vmatprep.subr.mxu0 0.0
        %1580 = vmatpush1.msra.mxu0 0.0
        %1581 = vmatprep.subr.mxu0 0.0
        %1582 = vmatpush1.msra.mxu0 0.0
        %1583 = vmatprep.subr.mxu0 0.0
        %1584 = vmatpush1.msra.mxu0 0.0
        %1585 = vmatprep.subr.mxu0 0.0
        %1586 = vmatpush1.msra.mxu0 0.0
        %1587 = vmatprep.subr.mxu0 0.0
        %1588 = vmatpush1.msra.mxu0 0.0
        %1589 = vmatprep.subr.mxu0 0.0
        %1590 = vmatpush1.msra.mxu0 0.0
        %1591 = vmatprep.subr.mxu0 0.0
        %1592 = vmatpush1.msra.mxu0 0.0
        %1593 = vmatprep.mubr.f32.mxu0 0.0
        %1594 = vmatmul.mubr.f32.gmra.mrb[0].mxu0 %v1527
        %v1595 = vpop.f32.mrb[0].mxu0
        %v1596 = vadd.f32 0.0, %v1595
        %v1597 = vpop.f32.mrb[0].mxu0
        %v1598 = vadd.f32 0.0, %v1597
        %1599 = vdwg.mxu0
        %1600 = vmatprep.subr.mxu0 0.0
        %1601 = vmatpush1.msra.mxu0 %v1521
        %1602 = vmatprep.subr.mxu0 0.0
        %1603 = vmatpush1.msra.mxu0 0.0
        %1604 = vmatprep.subr.mxu0 0.0
        %1605 = vmatpush1.msra.mxu0 0.0
        %1606 = vmatprep.subr.mxu0 0.0
        %1607 = vmatpush1.msra.mxu0 0.0
        %1608 = vmatprep.subr.mxu0 0.0
        %1609 = vmatpush1.msra.mxu0 0.0
        %1610 = vmatprep.subr.mxu0 0.0
        %1611 = vmatpush1.msra.mxu0 0.0
        %1612 = vmatprep.subr.mxu0 0.0
        %1613 = vmatpush1.msra.mxu0 0.0
        %1614 = vmatprep.subr.mxu0 0.0
        %1615 = vmatpush1.msra.mxu0 0.0
        %1616 = vmatprep.subr.mxu0 0.0
        %1617 = vmatpush1.msra.mxu0 0.0
        %1618 = vmatprep.subr.mxu0 0.0
        %1619 = vmatpush1.msra.mxu0 0.0
        %1620 = vmatprep.subr.mxu0 0.0
        %1621 = vmatpush1.msra.mxu0 0.0
        %1622 = vmatprep.subr.mxu0 0.0
        %1623 = vmatpush1.msra.mxu0 0.0
        %1624 = vmatprep.subr.mxu0 0.0
        %1625 = vmatpush1.msra.mxu0 0.0
        %1626 = vmatprep.subr.mxu0 0.0
        %1627 = vmatpush1.msra.mxu0 0.0
        %1628 = vmatprep.subr.mxu0 0.0
        %1629 = vmatpush1.msra.mxu0 0.0
        %1630 = vmatprep.subr.mxu0 0.0
        %1631 = vmatpush1.msra.mxu0 0.0
        %1632 = vmatprep.subr.mxu0 0.0
        %1633 = vmatpush1.msra.mxu0 0.0
        %1634 = vmatprep.subr.mxu0 0.0
        %1635 = vmatpush1.msra.mxu0 0.0
        %1636 = vmatprep.subr.mxu0 0.0
        %1637 = vmatpush1.msra.mxu0 0.0
        %1638 = vmatprep.subr.mxu0 0.0
        %1639 = vmatpush1.msra.mxu0 0.0
        %1640 = vmatprep.subr.mxu0 0.0
        %1641 = vmatpush1.msra.mxu0 0.0
        %1642 = vmatprep.subr.mxu0 0.0
        %1643 = vmatpush1.msra.mxu0 0.0
        %1644 = vmatprep.subr.mxu0 0.0
        %1645 = vmatpush1.msra.mxu0 0.0
        %1646 = vmatprep.subr.mxu0 0.0
        %1647 = vmatpush1.msra.mxu0 0.0
        %1648 = vmatprep.subr.mxu0 0.0
        %1649 = vmatpush1.msra.mxu0 0.0
        %1650 = vmatprep.subr.mxu0 0.0
        %1651 = vmatpush1.msra.mxu0 0.0
        %1652 = vmatprep.subr.mxu0 0.0
        %1653 = vmatpush1.msra.mxu0 0.0
        %1654 = vmatprep.subr.mxu0 0.0
        %1655 = vmatpush1.msra.mxu0 0.0
        %1656 = vmatprep.subr.mxu0 0.0
        %1657 = vmatpush1.msra.mxu0 0.0
        %1658 = vmatprep.subr.mxu0 0.0
        %1659 = vmatpush1.msra.mxu0 0.0
        %1660 = vmatprep.subr.mxu0 0.0
        %1661 = vmatpush1.msra.mxu0 0.0
        %1662 = vmatprep.subr.mxu0 0.0
        %1663 = vmatpush1.msra.mxu0 0.0
        %1664 = vmatprep.mubr.f32.mxu0 0.0
        %1665 = vmatmul.mubr.f32.gmra.mrb[0].mxu0 %v1527
        %v1666 = vpop.f32.mrb[0].mxu0
        %v1667 = vadd.f32 0.0, %v1666
        %v1668 = vpop.f32.mrb[0].mxu0
        %1669 = vdwg.mxu0
        %v1671 = vsel %vm1525, %v1522, 0
        %1673 = vmatprep.subr.mxu0 %v252
        %1674 = vmatpush1.msra.mxu0 %v251
        %1675 = vmatprep.subr.mxu0 0.0
        %1676 = vmatpush1.msra.mxu0 0.0
        %1677 = vmatprep.subr.mxu0 0.0
        %1678 = vmatpush1.msra.mxu0 0.0
        %1679 = vmatprep.subr.mxu0 0.0
        %1680 = vmatpush1.msra.mxu0 0.0
        %1681 = vmatprep.subr.mxu0 0.0
        %1682 = vmatpush1.msra.mxu0 0.0
        %1683 = vmatprep.subr.mxu0 0.0
        %1684 = vmatpush1.msra.mxu0 0.0
        %1685 = vmatprep.subr.mxu0 0.0
        %1686 = vmatpush1.msra.mxu0 0.0
        %1687 = vmatprep.subr.mxu0 0.0
        %1688 = vmatpush1.msra.mxu0 0.0
        %1689 = vmatprep.subr.mxu0 0.0
        %1690 = vmatpush1.msra.mxu0 0.0
        %1691 = vmatprep.subr.mxu0 0.0
        %1692 = vmatpush1.msra.mxu0 0.0
        %1693 = vmatprep.subr.mxu0 0.0
        %1694 = vmatpush1.msra.mxu0 0.0
        %1695 = vmatprep.subr.mxu0 0.0
        %1696 = vmatpush1.msra.mxu0 0.0
        %1697 = vmatprep.subr.mxu0 0.0
        %1698 = vmatpush1.msra.mxu0 0.0
        %1699 = vmatprep.subr.mxu0 0.0
        %1700 = vmatpush1.msra.mxu0 0.0
        %1701 = vmatprep.subr.mxu0 0.0
        %1702 = vmatpush1.msra.mxu0 0.0
        %1703 = vmatprep.subr.mxu0 0.0
        %1704 = vmatpush1.msra.mxu0 0.0
        %1705 = vmatprep.subr.mxu0 0.0
        %1706 = vmatpush1.msra.mxu0 0.0
        %1707 = vmatprep.subr.mxu0 0.0
        %1708 = vmatpush1.msra.mxu0 0.0
        %1709 = vmatprep.subr.mxu0 0.0
        %1710 = vmatpush1.msra.mxu0 0.0
        %1711 = vmatprep.subr.mxu0 0.0
        %1712 = vmatpush1.msra.mxu0 0.0
        %1713 = vmatprep.subr.mxu0 0.0
        %1714 = vmatpush1.msra.mxu0 0.0
        %1715 = vmatprep.subr.mxu0 0.0
        %1716 = vmatpush1.msra.mxu0 0.0
        %1717 = vmatprep.subr.mxu0 0.0
        %1718 = vmatpush1.msra.mxu0 0.0
        %1719 = vmatprep.subr.mxu0 0.0
        %1720 = vmatpush1.msra.mxu0 0.0
        %1721 = vmatprep.subr.mxu0 0.0
        %1722 = vmatpush1.msra.mxu0 0.0
        %1723 = vmatprep.subr.mxu0 0.0
        %1724 = vmatpush1.msra.mxu0 0.0
        %1725 = vmatprep.subr.mxu0 0.0
        %1726 = vmatpush1.msra.mxu0 0.0
        %1727 = vmatprep.subr.mxu0 0.0
        %1728 = vmatpush1.msra.mxu0 0.0
        %1729 = vmatprep.subr.mxu0 0.0
        %1730 = vmatpush1.msra.mxu0 0.0
        %1731 = vmatprep.subr.mxu0 0.0
        %1732 = vmatpush1.msra.mxu0 0.0
        %1733 = vmatprep.subr.mxu0 0.0
        %1734 = vmatpush1.msra.mxu0 0.0
        %1735 = vmatprep.subr.mxu0 0.0
        %1736 = vmatpush1.msra.mxu0 0.0
        %1737 = vmatprep.mubr.f32.mxu0 0.0
        %1738 = vmatmul.mubr.f32.gmra.mrb[0].mxu0 %v1671
        %v1739 = vpop.f32.mrb[0].mxu0
        %v1740 = vadd.f32 %v1596, %v1739
        %v1741 = vpop.f32.mrb[0].mxu0
        %v1742 = vadd.f32 %v1598, %v1741
        %1743 = vdwg.mxu0
        %1744 = vmatprep.subr.mxu0 0.0
        %1745 = vmatpush1.msra.mxu0 %v253
        %1746 = vmatprep.subr.mxu0 0.0
        %1747 = vmatpush1.msra.mxu0 0.0
        %1748 = vmatprep.subr.mxu0 0.0
        %1749 = vmatpush1.msra.mxu0 0.0
        %1750 = vmatprep.subr.mxu0 0.0
        %1751 = vmatpush1.msra.mxu0 0.0
        %1752 = vmatprep.subr.mxu0 0.0
        %1753 = vmatpush1.msra.mxu0 0.0
        %1754 = vmatprep.subr.mxu0 0.0
        %1755 = vmatpush1.msra.mxu0 0.0
        %1756 = vmatprep.subr.mxu0 0.0
        %1757 = vmatpush1.msra.mxu0 0.0
        %1758 = vmatprep.subr.mxu0 0.0
        %1759 = vmatpush1.msra.mxu0 0.0
        %1760 = vmatprep.subr.mxu0 0.0
        %1761 = vmatpush1.msra.mxu0 0.0
        %1762 = vmatprep.subr.mxu0 0.0
        %1763 = vmatpush1.msra.mxu0 0.0
        %1764 = vmatprep.subr.mxu0 0.0
        %1765 = vmatpush1.msra.mxu0 0.0
        %1766 = vmatprep.subr.mxu0 0.0
        %1767 = vmatpush1.msra.mxu0 0.0
        %1768 = vmatprep.subr.mxu0 0.0
        %1769 = vmatpush1.msra.mxu0 0.0
        %1770 = vmatprep.subr.mxu0 0.0
        %1771 = vmatpush1.msra.mxu0 0.0
        %1772 = vmatprep.subr.mxu0 0.0
        %1773 = vmatpush1.msra.mxu0 0.0
        %1774 = vmatprep.subr.mxu0 0.0
        %1775 = vmatpush1.msra.mxu0 0.0
        %1776 = vmatprep.subr.mxu0 0.0
        %1777 = vmatpush1.msra.mxu0 0.0
        %1778 = vmatprep.subr.mxu0 0.0
        %1779 = vmatpush1.msra.mxu0 0.0
        %1780 = vmatprep.subr.mxu0 0.0
        %1781 = vmatpush1.msra.mxu0 0.0
        %1782 = vmatprep.subr.mxu0 0.0
        %1783 = vmatpush1.msra.mxu0 0.0
        %1784 = vmatprep.subr.mxu0 0.0
        %1785 = vmatpush1.msra.mxu0 0.0
        %1786 = vmatprep.subr.mxu0 0.0
        %1787 = vmatpush1.msra.mxu0 0.0
        %1788 = vmatprep.subr.mxu0 0.0
        %1789 = vmatpush1.msra.mxu0 0.0
        %1790 = vmatprep.subr.mxu0 0.0
        %1791 = vmatpush1.msra.mxu0 0.0
        %1792 = vmatprep.subr.mxu0 0.0
        %1793 = vmatpush1.msra.mxu0 0.0
        %1794 = vmatprep.subr.mxu0 0.0
        %1795 = vmatpush1.msra.mxu0 0.0
        %1796 = vmatprep.subr.mxu0 0.0
        %1797 = vmatpush1.msra.mxu0 0.0
        %1798 = vmatprep.subr.mxu0 0.0
        %1799 = vmatpush1.msra.mxu0 0.0
        %1800 = vmatprep.subr.mxu0 0.0
        %1801 = vmatpush1.msra.mxu0 0.0
        %1802 = vmatprep.subr.mxu0 0.0
        %1803 = vmatpush1.msra.mxu0 0.0
        %1804 = vmatprep.subr.mxu0 0.0
        %1805 = vmatpush1.msra.mxu0 0.0
        %1806 = vmatprep.subr.mxu0 0.0
        %1807 = vmatpush1.msra.mxu0 0.0
        %1808 = vmatprep.mubr.f32.mxu0 0.0
        %1809 = vmatmul.mubr.f32.gmra.mrb[0].mxu0 %v1671
        %v1810 = vpop.f32.mrb[0].mxu0
        %v1811 = vadd.f32 %v1667, %v1810
        %v1812 = vpop.f32.mrb[0].mxu0
        %1813 = vdwg.mxu0
        %v1814 = vld [vmem:[%s5] sm:$0xff]
        %1816 = vset.pattern.permute.xlu0 0
        %1817 = vperm.xlu0 %1816, %v1814
        %v1818 = vpop.permute.xlu0 %1817
        %v1820 = vadd.f32 %v1740, %v1818
        %v1821 = vadd.f32 %v1742, %v1818
        %v1822 = vadd.f32 %v1811, %v1818
        %v1823 = vmul.f32 %v1820, %v528
        %v1824 = vmul.f32 %v1821, %v532
        %v1825 = vmul.f32 %v1822, %v536
        %1827 = vrot.lane.b32.xlu0 %v1825, 19
        %v1828 = vpop.permute.xlu0 %1827
        %1832 = vrot.lane.b32.xlu0 %v1823, 19
        %v1833 = vpop.permute.xlu0 %1832
        %1834 = vrot.lane.b32.xlu0 %v1824, 19
        %v1835 = vpop.permute.xlu0 %1834
        %v1836 = vsel %vm264, %v1833, %v1835
        %v1837 = vsel %vm264, %v1835, %v1828
        %v1841 = vsel %vm264, %v1828, %v1833
        %1842 = vrot.lane.b32.xlu0 %v1825, 18
        %v1843 = vpop.permute.xlu0 %1842
        %1845 = vrot.lane.b32.xlu0 %v1823, 18
        %v1846 = vpop.permute.xlu0 %1845
        %1847 = vrot.lane.b32.xlu0 %v1824, 18
        %v1848 = vpop.permute.xlu0 %1847
        %v1849 = vsel %vm278, %v1846, %v1848
        %v1850 = vsel %vm278, %v1848, %v1843
        %v1854 = vsel %vm278, %v1843, %v1846
        %1855 = vrot.lane.b32.xlu0 %v1825, 17
        %v1856 = vpop.permute.xlu0 %1855
        %1858 = vrot.lane.b32.xlu0 %v1823, 17
        %v1859 = vpop.permute.xlu0 %1858
        %1860 = vrot.lane.b32.xlu0 %v1824, 17
        %v1861 = vpop.permute.xlu0 %1860
        %v1862 = vsel %vm292, %v1859, %v1861
        %v1863 = vsel %vm292, %v1861, %v1856
        %v1867 = vsel %vm292, %v1856, %v1859
        %1868 = vrot.lane.b32.xlu0 %v1825, 1
        %v1869 = vpop.permute.xlu0 %1868
        %1871 = vrot.lane.b32.xlu0 %v1823, 1
        %v1872 = vpop.permute.xlu0 %1871
        %1873 = vrot.lane.b32.xlu0 %v1824, 1
        %v1874 = vpop.permute.xlu0 %1873
        %v1875 = vsel %vm306, %v1872, %v1874
        %v1876 = vsel %vm306, %v1874, %v1869
        %v1880 = vsel %vm306, %v1869, %v1872
        %1881 = vrot.lane.b32.xlu0 %v1823, 127
        %v1882 = vpop.permute.xlu0 %1881
        %1883 = vrot.lane.b32.xlu0 %v1824, 127
        %v1884 = vpop.permute.xlu0 %1883
        %1885 = vrot.lane.b32.xlu0 %v1825, 127
        %v1886 = vpop.permute.xlu0 %1885
        %v1887 = vsel %vm319, %v1882, %v1884
        %v1888 = vsel %vm319, %v1884, %v1886
        %v1893 = vsel %vm319, %v1886, %v1882
        %1894 = vrot.lane.b32.xlu0 %v1823, 111
        %v1895 = vpop.permute.xlu0 %1894
        %1896 = vrot.lane.b32.xlu0 %v1824, 111
        %v1897 = vpop.permute.xlu0 %1896
        %1898 = vrot.lane.b32.xlu0 %v1825, 111
        %v1899 = vpop.permute.xlu0 %1898
        %v1900 = vsel %vm333, %v1895, %v1897
        %v1901 = vsel %vm333, %v1897, %v1899
        %v1906 = vsel %vm333, %v1899, %v1895
        %1907 = vrot.lane.b32.xlu0 %v1823, 110
        %v1908 = vpop.permute.xlu0 %1907
        %1909 = vrot.lane.b32.xlu0 %v1824, 110
        %v1910 = vpop.permute.xlu0 %1909
        %1911 = vrot.lane.b32.xlu0 %v1825, 110
        %v1912 = vpop.permute.xlu0 %1911
        %v1913 = vsel %vm347, %v1908, %v1910
        %v1914 = vsel %vm347, %v1910, %v1912
        %v1919 = vsel %vm347, %v1912, %v1908
        %1920 = vrot.lane.b32.xlu0 %v1823, 109
        %v1921 = vpop.permute.xlu0 %1920
        %1922 = vrot.lane.b32.xlu0 %v1824, 109
        %v1923 = vpop.permute.xlu0 %1922
        %1924 = vrot.lane.b32.xlu0 %v1825, 109
        %v1925 = vpop.permute.xlu0 %1924
        %v1926 = vsel %vm361, %v1921, %v1923
        %v1927 = vsel %vm361, %v1923, %v1925
        %v1932 = vsel %vm361, %v1925, %v1921
        %s1933 = scalar_lea.vmem %s2, 48
        %v1934 = vld [vmem:[%s1933] sm:$0xff]
        %s1935 = scalar_lea.vmem %s4, 24
        %v1936 = vld [vmem:[%s1935] sm:$0xff]
        %1938 = vset.pattern.permute.xlu0 0
        %1939 = vperm.xlu0 %1938, %v1936
        %v1940 = vpop.permute.xlu0 %1939
        %v1943 = vsel %vm376, %v1934, 0
        %1945 = vmatprep.subr.mxu0 %v1836
        %1946 = vmatpush1.msra.mxu0 %v1841
        %1947 = vmatprep.subr.mxu0 %v1849
        %1948 = vmatpush1.msra.mxu0 %v1854
        %1949 = vmatprep.subr.mxu0 %v1862
        %1950 = vmatpush1.msra.mxu0 %v1867
        %1951 = vmatprep.subr.mxu0 %v1875
        %1952 = vmatpush1.msra.mxu0 %v1880
        %1953 = vmatprep.subr.mxu0 %v1824
        %1954 = vmatpush1.msra.mxu0 %v1823
        %1955 = vmatprep.subr.mxu0 %v1888
        %1956 = vmatpush1.msra.mxu0 %v1887
        %1957 = vmatprep.subr.mxu0 %v1901
        %1958 = vmatpush1.msra.mxu0 %v1900
        %1959 = vmatprep.subr.mxu0 %v1914
        %1960 = vmatpush1.msra.mxu0 %v1913
        %1961 = vmatprep.subr.mxu0 %v1927
        %1962 = vmatpush1.msra.mxu0 %v1926
        %1963 = vmatprep.subr.mxu0 0.0
        %1964 = vmatpush1.msra.mxu0 0.0
        %1965 = vmatprep.subr.mxu0 0.0
        %1966 = vmatpush1.msra.mxu0 0.0
        %1967 = vmatprep.subr.mxu0 0.0
        %1968 = vmatpush1.msra.mxu0 0.0
        %1969 = vmatprep.subr.mxu0 0.0
        %1970 = vmatpush1.msra.mxu0 0.0
        %1971 = vmatprep.subr.mxu0 0.0
        %1972 = vmatpush1.msra.mxu0 0.0
        %1973 = vmatprep.subr.mxu0 0.0
        %1974 = vmatpush1.msra.mxu0 0.0
        %1975 = vmatprep.subr.mxu0 0.0
        %1976 = vmatpush1.msra.mxu0 0.0
        %1977 = vmatprep.subr.mxu0 0.0
        %1978 = vmatpush1.msra.mxu0 0.0
        %1979 = vmatprep.subr.mxu0 0.0
        %1980 = vmatpush1.msra.mxu0 0.0
        %1981 = vmatprep.subr.mxu0 0.0
        %1982 = vmatpush1.msra.mxu0 0.0
        %1983 = vmatprep.subr.mxu0 0.0
        %1984 = vmatpush1.msra.mxu0 0.0
        %1985 = vmatprep.subr.mxu0 0.0
        %1986 = vmatpush1.msra.mxu0 0.0
        %1987 = vmatprep.subr.mxu0 0.0
        %1988 = vmatpush1.msra.mxu0 0.0
        %1989 = vmatprep.subr.mxu0 0.0
        %1990 = vmatpush1.msra.mxu0 0.0
        %1991 = vmatprep.subr.mxu0 0.0
        %1992 = vmatpush1.msra.mxu0 0.0
        %1993 = vmatprep.subr.mxu0 0.0
        %1994 = vmatpush1.msra.mxu0 0.0
        %1995 = vmatprep.subr.mxu0 0.0
        %1996 = vmatpush1.msra.mxu0 0.0
        %1997 = vmatprep.subr.mxu0 0.0
        %1998 = vmatpush1.msra.mxu0 0.0
        %1999 = vmatprep.subr.mxu0 0.0
        %2000 = vmatpush1.msra.mxu0 0.0
        %2001 = vmatprep.subr.mxu0 0.0
        %2002 = vmatpush1.msra.mxu0 0.0
        %2003 = vmatprep.subr.mxu0 0.0
        %2004 = vmatpush1.msra.mxu0 0.0
        %2005 = vmatprep.subr.mxu0 0.0
        %2006 = vmatpush1.msra.mxu0 0.0
        %2007 = vmatprep.subr.mxu0 0.0
        %2008 = vmatpush1.msra.mxu0 0.0
        %2009 = vmatprep.mubr.f32.mxu0 0.0
        %2010 = vmatmul.mubr.f32.gmra.mrb[0].mxu0 %v1943
        %v2011 = vpop.f32.mrb[0].mxu0
        %v2012 = vadd.f32 %v1940, %v2011
        %v2013 = vpop.f32.mrb[0].mxu0
        %v2014 = vadd.f32 %v1940, %v2013
        %2015 = vdwg.mxu0
        %2016 = vmatprep.subr.mxu0 0.0
        %2017 = vmatpush1.msra.mxu0 %v1837
        %2018 = vmatprep.subr.mxu0 0.0
        %2019 = vmatpush1.msra.mxu0 %v1850
        %2020 = vmatprep.subr.mxu0 0.0
        %2021 = vmatpush1.msra.mxu0 %v1863
        %2022 = vmatprep.subr.mxu0 0.0
        %2023 = vmatpush1.msra.mxu0 %v1876
        %2024 = vmatprep.subr.mxu0 0.0
        %2025 = vmatpush1.msra.mxu0 %v1825
        %2026 = vmatprep.subr.mxu0 0.0
        %2027 = vmatpush1.msra.mxu0 %v1893
        %2028 = vmatprep.subr.mxu0 0.0
        %2029 = vmatpush1.msra.mxu0 %v1906
        %2030 = vmatprep.subr.mxu0 0.0
        %2031 = vmatpush1.msra.mxu0 %v1919
        %2032 = vmatprep.subr.mxu0 0.0
        %2033 = vmatpush1.msra.mxu0 %v1932
        %2034 = vmatprep.subr.mxu0 0.0
        %2035 = vmatpush1.msra.mxu0 0.0
        %2036 = vmatprep.subr.mxu0 0.0
        %2037 = vmatpush1.msra.mxu0 0.0
        %2038 = vmatprep.subr.mxu0 0.0
        %2039 = vmatpush1.msra.mxu0 0.0
        %2040 = vmatprep.subr.mxu0 0.0
        %2041 = vmatpush1.msra.mxu0 0.0
        %2042 = vmatprep.subr.mxu0 0.0
        %2043 = vmatpush1.msra.mxu0 0.0
        %2044 = vmatprep.subr.mxu0 0.0
        %2045 = vmatpush1.msra.mxu0 0.0
        %2046 = vmatprep.subr.mxu0 0.0
        %2047 = vmatpush1.msra.mxu0 0.0
        %2048 = vmatprep.subr.mxu0 0.0
        %2049 = vmatpush1.msra.mxu0 0.0
        %2050 = vmatprep.subr.mxu0 0.0
        %2051 = vmatpush1.msra.mxu0 0.0
        %2052 = vmatprep.subr.mxu0 0.0
        %2053 = vmatpush1.msra.mxu0 0.0
        %2054 = vmatprep.subr.mxu0 0.0
        %2055 = vmatpush1.msra.mxu0 0.0
        %2056 = vmatprep.subr.mxu0 0.0
        %2057 = vmatpush1.msra.mxu0 0.0
        %2058 = vmatprep.subr.mxu0 0.0
        %2059 = vmatpush1.msra.mxu0 0.0
        %2060 = vmatprep.subr.mxu0 0.0
        %2061 = vmatpush1.msra.mxu0 0.0
        %2062 = vmatprep.subr.mxu0 0.0
        %2063 = vmatpush1.msra.mxu0 0.0
        %2064 = vmatprep.subr.mxu0 0.0
        %2065 = vmatpush1.msra.mxu0 0.0
        %2066 = vmatprep.subr.mxu0 0.0
        %2067 = vmatpush1.msra.mxu0 0.0
        %2068 = vmatprep.subr.mxu0 0.0
        %2069 = vmatpush1.msra.mxu0 0.0
        %2070 = vmatprep.subr.mxu0 0.0
        %2071 = vmatpush1.msra.mxu0 0.0
        %2072 = vmatprep.subr.mxu0 0.0
        %2073 = vmatpush1.msra.mxu0 0.0
        %2074 = vmatprep.subr.mxu0 0.0
        %2075 = vmatpush1.msra.mxu0 0.0
        %2076 = vmatprep.subr.mxu0 0.0
        %2077 = vmatpush1.msra.mxu0 0.0
        %2078 = vmatprep.subr.mxu0 0.0
        %2079 = vmatpush1.msra.mxu0 0.0
        %2080 = vmatprep.mubr.f32.mxu0 0.0
        %2081 = vmatmul.mubr.f32.gmra.mrb[0].mxu0 %v1943
        %v2082 = vpop.f32.mrb[0].mxu0
        %v2083 = vadd.f32 %v1940, %v2082
        %v2084 = vpop.f32.mrb[0].mxu0
        %2085 = vdwg.mxu0
        %v2086 = vmax.f32 %v2012, 0.0
        %v2087 = vmax.f32 %v2014, 0.0
        %v2088 = vmax.f32 %v2083, 0.0
        %v2089 = vmul.f32 %v2086, %v528
        %v2090 = vmul.f32 %v2087, %v532
        %v2091 = vmul.f32 %v2088, %v536
        %2093 = vrot.lane.b32.xlu0 %v2091, 19
        %v2094 = vpop.permute.xlu0 %2093
        %2098 = vrot.lane.b32.xlu0 %v2089, 19
        %v2099 = vpop.permute.xlu0 %2098
        %2100 = vrot.lane.b32.xlu0 %v2090, 19
        %v2101 = vpop.permute.xlu0 %2100
        %v2102 = vsel %vm264, %v2099, %v2101
        %v2103 = vsel %vm264, %v2101, %v2094
        %v2107 = vsel %vm264, %v2094, %v2099
        %2108 = vrot.lane.b32.xlu0 %v2091, 18
        %v2109 = vpop.permute.xlu0 %2108
        %2111 = vrot.lane.b32.xlu0 %v2089, 18
        %v2112 = vpop.permute.xlu0 %2111
        %2113 = vrot.lane.b32.xlu0 %v2090, 18
        %v2114 = vpop.permute.xlu0 %2113
        %v2115 = vsel %vm278, %v2112, %v2114
        %v2116 = vsel %vm278, %v2114, %v2109
        %v2120 = vsel %vm278, %v2109, %v2112
        %2121 = vrot.lane.b32.xlu0 %v2091, 17
        %v2122 = vpop.permute.xlu0 %2121
        %2124 = vrot.lane.b32.xlu0 %v2089, 17
        %v2125 = vpop.permute.xlu0 %2124
        %2126 = vrot.lane.b32.xlu0 %v2090, 17
        %v2127 = vpop.permute.xlu0 %2126
        %v2128 = vsel %vm292, %v2125, %v2127
        %v2129 = vsel %vm292, %v2127, %v2122
        %v2133 = vsel %vm292, %v2122, %v2125
        %2134 = vrot.lane.b32.xlu0 %v2091, 1
        %v2135 = vpop.permute.xlu0 %2134
        %2137 = vrot.lane.b32.xlu0 %v2089, 1
        %v2138 = vpop.permute.xlu0 %2137
        %2139 = vrot.lane.b32.xlu0 %v2090, 1
        %v2140 = vpop.permute.xlu0 %2139
        %v2141 = vsel %vm306, %v2138, %v2140
        %v2142 = vsel %vm306, %v2140, %v2135
        %v2146 = vsel %vm306, %v2135, %v2138
        %2147 = vrot.lane.b32.xlu0 %v2089, 127
        %v2148 = vpop.permute.xlu0 %2147
        %2149 = vrot.lane.b32.xlu0 %v2090, 127
        %v2150 = vpop.permute.xlu0 %2149
        %2151 = vrot.lane.b32.xlu0 %v2091, 127
        %v2152 = vpop.permute.xlu0 %2151
        %v2153 = vsel %vm319, %v2148, %v2150
        %v2154 = vsel %vm319, %v2150, %v2152
        %v2159 = vsel %vm319, %v2152, %v2148
        %2160 = vrot.lane.b32.xlu0 %v2089, 111
        %v2161 = vpop.permute.xlu0 %2160
        %2162 = vrot.lane.b32.xlu0 %v2090, 111
        %v2163 = vpop.permute.xlu0 %2162
        %2164 = vrot.lane.b32.xlu0 %v2091, 111
        %v2165 = vpop.permute.xlu0 %2164
        %v2166 = vsel %vm333, %v2161, %v2163
        %v2167 = vsel %vm333, %v2163, %v2165
        %v2172 = vsel %vm333, %v2165, %v2161
        %2173 = vrot.lane.b32.xlu0 %v2089, 110
        %v2174 = vpop.permute.xlu0 %2173
        %2175 = vrot.lane.b32.xlu0 %v2090, 110
        %v2176 = vpop.permute.xlu0 %2175
        %2177 = vrot.lane.b32.xlu0 %v2091, 110
        %v2178 = vpop.permute.xlu0 %2177
        %v2179 = vsel %vm347, %v2174, %v2176
        %v2180 = vsel %vm347, %v2176, %v2178
        %v2185 = vsel %vm347, %v2178, %v2174
        %2186 = vrot.lane.b32.xlu0 %v2089, 109
        %v2187 = vpop.permute.xlu0 %2186
        %2188 = vrot.lane.b32.xlu0 %v2090, 109
        %v2189 = vpop.permute.xlu0 %2188
        %2190 = vrot.lane.b32.xlu0 %v2091, 109
        %v2191 = vpop.permute.xlu0 %2190
        %v2192 = vsel %vm361, %v2187, %v2189
        %v2193 = vsel %vm361, %v2189, %v2191
        %v2198 = vsel %vm361, %v2191, %v2187
        %s2199 = scalar_lea.vmem %s2, 56
        %v2200 = vld [vmem:[%s2199] sm:$0xff]
        %s2201 = scalar_lea.vmem %s2, 64
        %v2202 = vld [vmem:[%s2201] sm:$0xff]
        %v2204 = vsel %vm376, %v2202, 0
        %2206 = vmatprep.subr.mxu0 %v2102
        %2207 = vmatpush1.msra.mxu0 %v2107
        %2208 = vmatprep.subr.mxu0 %v2115
        %2209 = vmatpush1.msra.mxu0 %v2120
        %2210 = vmatprep.subr.mxu0 %v2128
        %2211 = vmatpush1.msra.mxu0 %v2133
        %2212 = vmatprep.subr.mxu0 %v2141
        %2213 = vmatpush1.msra.mxu0 %v2146
        %2214 = vmatprep.subr.mxu0 %v2090
        %2215 = vmatpush1.msra.mxu0 %v2089
        %2216 = vmatprep.subr.mxu0 %v2154
        %2217 = vmatpush1.msra.mxu0 %v2153
        %2218 = vmatprep.subr.mxu0 %v2167
        %2219 = vmatpush1.msra.mxu0 %v2166
        %2220 = vmatprep.subr.mxu0 %v2180
        %2221 = vmatpush1.msra.mxu0 %v2179
        %2222 = vmatprep.subr.mxu0 %v2193
        %2223 = vmatpush1.msra.mxu0 %v2192
        %2224 = vmatprep.subr.mxu0 0.0
        %2225 = vmatpush1.msra.mxu0 0.0
        %2226 = vmatprep.subr.mxu0 0.0
        %2227 = vmatpush1.msra.mxu0 0.0
        %2228 = vmatprep.subr.mxu0 0.0
        %2229 = vmatpush1.msra.mxu0 0.0
        %2230 = vmatprep.subr.mxu0 0.0
        %2231 = vmatpush1.msra.mxu0 0.0
        %2232 = vmatprep.subr.mxu0 0.0
        %2233 = vmatpush1.msra.mxu0 0.0
        %2234 = vmatprep.subr.mxu0 0.0
        %2235 = vmatpush1.msra.mxu0 0.0
        %2236 = vmatprep.subr.mxu0 0.0
        %2237 = vmatpush1.msra.mxu0 0.0
        %2238 = vmatprep.subr.mxu0 0.0
        %2239 = vmatpush1.msra.mxu0 0.0
        %2240 = vmatprep.subr.mxu0 0.0
        %2241 = vmatpush1.msra.mxu0 0.0
        %2242 = vmatprep.subr.mxu0 0.0
        %2243 = vmatpush1.msra.mxu0 0.0
        %2244 = vmatprep.subr.mxu0 0.0
        %2245 = vmatpush1.msra.mxu0 0.0
        %2246 = vmatprep.subr.mxu0 0.0
        %2247 = vmatpush1.msra.mxu0 0.0
        %2248 = vmatprep.subr.mxu0 0.0
        %2249 = vmatpush1.msra.mxu0 0.0
        %2250 = vmatprep.subr.mxu0 0.0
        %2251 = vmatpush1.msra.mxu0 0.0
        %2252 = vmatprep.subr.mxu0 0.0
        %2253 = vmatpush1.msra.mxu0 0.0
        %2254 = vmatprep.subr.mxu0 0.0
        %2255 = vmatpush1.msra.mxu0 0.0
        %2256 = vmatprep.subr.mxu0 0.0
        %2257 = vmatpush1.msra.mxu0 0.0
        %2258 = vmatprep.subr.mxu0 0.0
        %2259 = vmatpush1.msra.mxu0 0.0
        %2260 = vmatprep.subr.mxu0 0.0
        %2261 = vmatpush1.msra.mxu0 0.0
        %2262 = vmatprep.subr.mxu0 0.0
        %2263 = vmatpush1.msra.mxu0 0.0
        %2264 = vmatprep.subr.mxu0 0.0
        %2265 = vmatpush1.msra.mxu0 0.0
        %2266 = vmatprep.subr.mxu0 0.0
        %2267 = vmatpush1.msra.mxu0 0.0
        %2268 = vmatprep.subr.mxu0 0.0
        %2269 = vmatpush1.msra.mxu0 0.0
        %2270 = vmatprep.mubr.f32.mxu0 0.0
        %2271 = vmatmul.mubr.f32.gmra.mrb[0].mxu0 %v2204
        %v2272 = vpop.f32.mrb[0].mxu0
        %v2273 = vadd.f32 0.0, %v2272
        %v2274 = vpop.f32.mrb[0].mxu0
        %v2275 = vadd.f32 0.0, %v2274
        %2276 = vdwg.mxu0
        %2277 = vmatprep.subr.mxu0 0.0
        %2278 = vmatpush1.msra.mxu0 %v2103
        %2279 = vmatprep.subr.mxu0 0.0
        %2280 = vmatpush1.msra.mxu0 %v2116
        %2281 = vmatprep.subr.mxu0 0.0
        %2282 = vmatpush1.msra.mxu0 %v2129
        %2283 = vmatprep.subr.mxu0 0.0
        %2284 = vmatpush1.msra.mxu0 %v2142
        %2285 = vmatprep.subr.mxu0 0.0
        %2286 = vmatpush1.msra.mxu0 %v2091
        %2287 = vmatprep.subr.mxu0 0.0
        %2288 = vmatpush1.msra.mxu0 %v2159
        %2289 = vmatprep.subr.mxu0 0.0
        %2290 = vmatpush1.msra.mxu0 %v2172
        %2291 = vmatprep.subr.mxu0 0.0
        %2292 = vmatpush1.msra.mxu0 %v2185
        %2293 = vmatprep.subr.mxu0 0.0
        %2294 = vmatpush1.msra.mxu0 %v2198
        %2295 = vmatprep.subr.mxu0 0.0
        %2296 = vmatpush1.msra.mxu0 0.0
        %2297 = vmatprep.subr.mxu0 0.0
        %2298 = vmatpush1.msra.mxu0 0.0
        %2299 = vmatprep.subr.mxu0 0.0
        %2300 = vmatpush1.msra.mxu0 0.0
        %2301 = vmatprep.subr.mxu0 0.0
        %2302 = vmatpush1.msra.mxu0 0.0
        %2303 = vmatprep.subr.mxu0 0.0
        %2304 = vmatpush1.msra.mxu0 0.0
        %2305 = vmatprep.subr.mxu0 0.0
        %2306 = vmatpush1.msra.mxu0 0.0
        %2307 = vmatprep.subr.mxu0 0.0
        %2308 = vmatpush1.msra.mxu0 0.0
        %2309 = vmatprep.subr.mxu0 0.0
        %2310 = vmatpush1.msra.mxu0 0.0
        %2311 = vmatprep.subr.mxu0 0.0
        %2312 = vmatpush1.msra.mxu0 0.0
        %2313 = vmatprep.subr.mxu0 0.0
        %2314 = vmatpush1.msra.mxu0 0.0
        %2315 = vmatprep.subr.mxu0 0.0
        %2316 = vmatpush1.msra.mxu0 0.0
        %2317 = vmatprep.subr.mxu0 0.0
        %2318 = vmatpush1.msra.mxu0 0.0
        %2319 = vmatprep.subr.mxu0 0.0
        %2320 = vmatpush1.msra.mxu0 0.0
        %2321 = vmatprep.subr.mxu0 0.0
        %2322 = vmatpush1.msra.mxu0 0.0
        %2323 = vmatprep.subr.mxu0 0.0
        %2324 = vmatpush1.msra.mxu0 0.0
        %2325 = vmatprep.subr.mxu0 0.0
        %2326 = vmatpush1.msra.mxu0 0.0
        %2327 = vmatprep.subr.mxu0 0.0
        %2328 = vmatpush1.msra.mxu0 0.0
        %2329 = vmatprep.subr.mxu0 0.0
        %2330 = vmatpush1.msra.mxu0 0.0
        %2331 = vmatprep.subr.mxu0 0.0
        %2332 = vmatpush1.msra.mxu0 0.0
        %2333 = vmatprep.subr.mxu0 0.0
        %2334 = vmatpush1.msra.mxu0 0.0
        %2335 = vmatprep.subr.mxu0 0.0
        %2336 = vmatpush1.msra.mxu0 0.0
        %2337 = vmatprep.subr.mxu0 0.0
        %2338 = vmatpush1.msra.mxu0 0.0
        %2339 = vmatprep.subr.mxu0 0.0
        %2340 = vmatpush1.msra.mxu0 0.0
        %2341 = vmatprep.mubr.f32.mxu0 0.0
        %2342 = vmatmul.mubr.f32.gmra.mrb[0].mxu0 %v2204
        %v2343 = vpop.f32.mrb[0].mxu0
        %v2344 = vadd.f32 0.0, %v2343
        %v2345 = vpop.f32.mrb[0].mxu0
        %2346 = vdwg.mxu0
        %v2348 = vsel %vm376, %v2200, 0
        %2350 = vmatprep.subr.mxu0 %v1836
        %2351 = vmatpush1.msra.mxu0 %v1841
        %2352 = vmatprep.subr.mxu0 %v1849
        %2353 = vmatpush1.msra.mxu0 %v1854
        %2354 = vmatprep.subr.mxu0 %v1862
        %2355 = vmatpush1.msra.mxu0 %v1867
        %2356 = vmatprep.subr.mxu0 %v1875
        %2357 = vmatpush1.msra.mxu0 %v1880
        %2358 = vmatprep.subr.mxu0 %v1824
        %2359 = vmatpush1.msra.mxu0 %v1823
        %2360 = vmatprep.subr.mxu0 %v1888
        %2361 = vmatpush1.msra.mxu0 %v1887
        %2362 = vmatprep.subr.mxu0 %v1901
        %2363 = vmatpush1.msra.mxu0 %v1900
        %2364 = vmatprep.subr.mxu0 %v1914
        %2365 = vmatpush1.msra.mxu0 %v1913
        %2366 = vmatprep.subr.mxu0 %v1927
        %2367 = vmatpush1.msra.mxu0 %v1926
        %2368 = vmatprep.subr.mxu0 0.0
        %2369 = vmatpush1.msra.mxu0 0.0
        %2370 = vmatprep.subr.mxu0 0.0
        %2371 = vmatpush1.msra.mxu0 0.0
        %2372 = vmatprep.subr.mxu0 0.0
        %2373 = vmatpush1.msra.mxu0 0.0
        %2374 = vmatprep.subr.mxu0 0.0
        %2375 = vmatpush1.msra.mxu0 0.0
        %2376 = vmatprep.subr.mxu0 0.0
        %2377 = vmatpush1.msra.mxu0 0.0
        %2378 = vmatprep.subr.mxu0 0.0
        %2379 = vmatpush1.msra.mxu0 0.0
        %2380 = vmatprep.subr.mxu0 0.0
        %2381 = vmatpush1.msra.mxu0 0.0
        %2382 = vmatprep.subr.mxu0 0.0
        %2383 = vmatpush1.msra.mxu0 0.0
        %2384 = vmatprep.subr.mxu0 0.0
        %2385 = vmatpush1.msra.mxu0 0.0
        %2386 = vmatprep.subr.mxu0 0.0
        %2387 = vmatpush1.msra.mxu0 0.0
        %2388 = vmatprep.subr.mxu0 0.0
        %2389 = vmatpush1.msra.mxu0 0.0
        %2390 = vmatprep.subr.mxu0 0.0
        %2391 = vmatpush1.msra.mxu0 0.0
        %2392 = vmatprep.subr.mxu0 0.0
        %2393 = vmatpush1.msra.mxu0 0.0
        %2394 = vmatprep.subr.mxu0 0.0
        %2395 = vmatpush1.msra.mxu0 0.0
        %2396 = vmatprep.subr.mxu0 0.0
        %2397 = vmatpush1.msra.mxu0 0.0
        %2398 = vmatprep.subr.mxu0 0.0
        %2399 = vmatpush1.msra.mxu0 0.0
        %2400 = vmatprep.subr.mxu0 0.0
        %2401 = vmatpush1.msra.mxu0 0.0
        %2402 = vmatprep.subr.mxu0 0.0
        %2403 = vmatpush1.msra.mxu0 0.0
        %2404 = vmatprep.subr.mxu0 0.0
        %2405 = vmatpush1.msra.mxu0 0.0
        %2406 = vmatprep.subr.mxu0 0.0
        %2407 = vmatpush1.msra.mxu0 0.0
        %2408 = vmatprep.subr.mxu0 0.0
        %2409 = vmatpush1.msra.mxu0 0.0
        %2410 = vmatprep.subr.mxu0 0.0
        %2411 = vmatpush1.msra.mxu0 0.0
        %2412 = vmatprep.subr.mxu0 0.0
        %2413 = vmatpush1.msra.mxu0 0.0
        %2414 = vmatprep.mubr.f32.mxu0 0.0
        %2415 = vmatmul.mubr.f32.gmra.mrb[0].mxu0 %v2348
        %v2416 = vpop.f32.mrb[0].mxu0
        %v2417 = vadd.f32 %v2273, %v2416
        %v2418 = vpop.f32.mrb[0].mxu0
        %v2419 = vadd.f32 %v2275, %v2418
        %2420 = vdwg.mxu0
        %2421 = vmatprep.subr.mxu0 0.0
        %2422 = vmatpush1.msra.mxu0 %v1837
        %2423 = vmatprep.subr.mxu0 0.0
        %2424 = vmatpush1.msra.mxu0 %v1850
        %2425 = vmatprep.subr.mxu0 0.0
        %2426 = vmatpush1.msra.mxu0 %v1863
        %2427 = vmatprep.subr.mxu0 0.0
        %2428 = vmatpush1.msra.mxu0 %v1876
        %2429 = vmatprep.subr.mxu0 0.0
        %2430 = vmatpush1.msra.mxu0 %v1825
        %2431 = vmatprep.subr.mxu0 0.0
        %2432 = vmatpush1.msra.mxu0 %v1893
        %2433 = vmatprep.subr.mxu0 0.0
        %2434 = vmatpush1.msra.mxu0 %v1906
        %2435 = vmatprep.subr.mxu0 0.0
        %2436 = vmatpush1.msra.mxu0 %v1919
        %2437 = vmatprep.subr.mxu0 0.0
        %2438 = vmatpush1.msra.mxu0 %v1932
        %2439 = vmatprep.subr.mxu0 0.0
        %2440 = vmatpush1.msra.mxu0 0.0
        %2441 = vmatprep.subr.mxu0 0.0
        %2442 = vmatpush1.msra.mxu0 0.0
        %2443 = vmatprep.subr.mxu0 0.0
        %2444 = vmatpush1.msra.mxu0 0.0
        %2445 = vmatprep.subr.mxu0 0.0
        %2446 = vmatpush1.msra.mxu0 0.0
        %2447 = vmatprep.subr.mxu0 0.0
        %2448 = vmatpush1.msra.mxu0 0.0
        %2449 = vmatprep.subr.mxu0 0.0
        %2450 = vmatpush1.msra.mxu0 0.0
        %2451 = vmatprep.subr.mxu0 0.0
        %2452 = vmatpush1.msra.mxu0 0.0
        %2453 = vmatprep.subr.mxu0 0.0
        %2454 = vmatpush1.msra.mxu0 0.0
        %2455 = vmatprep.subr.mxu0 0.0
        %2456 = vmatpush1.msra.mxu0 0.0
        %2457 = vmatprep.subr.mxu0 0.0
        %2458 = vmatpush1.msra.mxu0 0.0
        %2459 = vmatprep.subr.mxu0 0.0
        %2460 = vmatpush1.msra.mxu0 0.0
        %2461 = vmatprep.subr.mxu0 0.0
        %2462 = vmatpush1.msra.mxu0 0.0
        %2463 = vmatprep.subr.mxu0 0.0
        %2464 = vmatpush1.msra.mxu0 0.0
        %2465 = vmatprep.subr.mxu0 0.0
        %2466 = vmatpush1.msra.mxu0 0.0
        %2467 = vmatprep.subr.mxu0 0.0
        %2468 = vmatpush1.msra.mxu0 0.0
        %2469 = vmatprep.subr.mxu0 0.0
        %2470 = vmatpush1.msra.mxu0 0.0
        %2471 = vmatprep.subr.mxu0 0.0
        %2472 = vmatpush1.msra.mxu0 0.0
        %2473 = vmatprep.subr.mxu0 0.0
        %2474 = vmatpush1.msra.mxu0 0.0
        %2475 = vmatprep.subr.mxu0 0.0
        %2476 = vmatpush1.msra.mxu0 0.0
        %2477 = vmatprep.subr.mxu0 0.0
        %2478 = vmatpush1.msra.mxu0 0.0
        %2479 = vmatprep.subr.mxu0 0.0
        %2480 = vmatpush1.msra.mxu0 0.0
        %2481 = vmatprep.subr.mxu0 0.0
        %2482 = vmatpush1.msra.mxu0 0.0
        %2483 = vmatprep.subr.mxu0 0.0
        %2484 = vmatpush1.msra.mxu0 0.0
        %2485 = vmatprep.mubr.f32.mxu0 0.0
        %2486 = vmatmul.mubr.f32.gmra.mrb[0].mxu0 %v2348
        %v2487 = vpop.f32.mrb[0].mxu0
        %v2488 = vadd.f32 %v2344, %v2487
        %v2489 = vpop.f32.mrb[0].mxu0
        %2490 = vdwg.mxu0
        %s2491 = scalar_lea.vmem %s4, 32
        %v2492 = vld [vmem:[%s2491] sm:$0xff]
        %2494 = vset.pattern.permute.xlu0 0
        %2495 = vperm.xlu0 %2494, %v2492
        %v2496 = vpop.permute.xlu0 %2495
        %v2498 = vadd.f32 %v2417, %v2496
        %v2499 = vadd.f32 %v2419, %v2496
        %v2500 = vadd.f32 %v2488, %v2496
        %v2501 = vmax.f32 %v2498, 0.0
        %v2502 = vmax.f32 %v2499, 0.0
        %v2503 = vmax.f32 %v2500, 0.0
        %v2504 = vmul.f32 %v2501, %v528
        %v2505 = vmul.f32 %v2502, %v532
        %v2506 = vmul.f32 %v2503, %v536
        %2508 = vrot.lane.b32.xlu0 %v2506, 19
        %v2509 = vpop.permute.xlu0 %2508
        %2513 = vrot.lane.b32.xlu0 %v2504, 19
        %v2514 = vpop.permute.xlu0 %2513
        %2515 = vrot.lane.b32.xlu0 %v2505, 19
        %v2516 = vpop.permute.xlu0 %2515
        %v2517 = vsel %vm264, %v2514, %v2516
        %v2518 = vsel %vm264, %v2516, %v2509
        %v2522 = vsel %vm264, %v2509, %v2514
        %2523 = vrot.lane.b32.xlu0 %v2506, 18
        %v2524 = vpop.permute.xlu0 %2523
        %2526 = vrot.lane.b32.xlu0 %v2504, 18
        %v2527 = vpop.permute.xlu0 %2526
        %2528 = vrot.lane.b32.xlu0 %v2505, 18
        %v2529 = vpop.permute.xlu0 %2528
        %v2530 = vsel %vm278, %v2527, %v2529
        %v2531 = vsel %vm278, %v2529, %v2524
        %v2535 = vsel %vm278, %v2524, %v2527
        %2536 = vrot.lane.b32.xlu0 %v2506, 17
        %v2537 = vpop.permute.xlu0 %2536
        %2539 = vrot.lane.b32.xlu0 %v2504, 17
        %v2540 = vpop.permute.xlu0 %2539
        %2541 = vrot.lane.b32.xlu0 %v2505, 17
        %v2542 = vpop.permute.xlu0 %2541
        %v2543 = vsel %vm292, %v2540, %v2542
        %v2544 = vsel %vm292, %v2542, %v2537
        %v2548 = vsel %vm292, %v2537, %v2540
        %2549 = vrot.lane.b32.xlu0 %v2506, 1
        %v2550 = vpop.permute.xlu0 %2549
        %2552 = vrot.lane.b32.xlu0 %v2504, 1
        %v2553 = vpop.permute.xlu0 %2552
        %2554 = vrot.lane.b32.xlu0 %v2505, 1
        %v2555 = vpop.permute.xlu0 %2554
        %v2556 = vsel %vm306, %v2553, %v2555
        %v2557 = vsel %vm306, %v2555, %v2550
        %v2561 = vsel %vm306, %v2550, %v2553
        %2562 = vrot.lane.b32.xlu0 %v2504, 127
        %v2563 = vpop.permute.xlu0 %2562
        %2564 = vrot.lane.b32.xlu0 %v2505, 127
        %v2565 = vpop.permute.xlu0 %2564
        %2566 = vrot.lane.b32.xlu0 %v2506, 127
        %v2567 = vpop.permute.xlu0 %2566
        %v2568 = vsel %vm319, %v2563, %v2565
        %v2569 = vsel %vm319, %v2565, %v2567
        %v2574 = vsel %vm319, %v2567, %v2563
        %2575 = vrot.lane.b32.xlu0 %v2504, 111
        %v2576 = vpop.permute.xlu0 %2575
        %2577 = vrot.lane.b32.xlu0 %v2505, 111
        %v2578 = vpop.permute.xlu0 %2577
        %2579 = vrot.lane.b32.xlu0 %v2506, 111
        %v2580 = vpop.permute.xlu0 %2579
        %v2581 = vsel %vm333, %v2576, %v2578
        %v2582 = vsel %vm333, %v2578, %v2580
        %v2587 = vsel %vm333, %v2580, %v2576
        %2588 = vrot.lane.b32.xlu0 %v2504, 110
        %v2589 = vpop.permute.xlu0 %2588
        %2590 = vrot.lane.b32.xlu0 %v2505, 110
        %v2591 = vpop.permute.xlu0 %2590
        %2592 = vrot.lane.b32.xlu0 %v2506, 110
        %v2593 = vpop.permute.xlu0 %2592
        %v2594 = vsel %vm347, %v2589, %v2591
        %v2595 = vsel %vm347, %v2591, %v2593
        %v2600 = vsel %vm347, %v2593, %v2589
        %2601 = vrot.lane.b32.xlu0 %v2504, 109
        %v2602 = vpop.permute.xlu0 %2601
        %2603 = vrot.lane.b32.xlu0 %v2505, 109
        %v2604 = vpop.permute.xlu0 %2603
        %2605 = vrot.lane.b32.xlu0 %v2506, 109
        %v2606 = vpop.permute.xlu0 %2605
        %v2607 = vsel %vm361, %v2602, %v2604
        %v2608 = vsel %vm361, %v2604, %v2606
        %v2613 = vsel %vm361, %v2606, %v2602
        %s2614 = scalar_lea.vmem %s2, 72
        %v2615 = vld [vmem:[%s2614] sm:$0xff]
        %s2616 = scalar_lea.vmem %s2, 80
        %v2617 = vld [vmem:[%s2616] sm:$0xff]
        %v2619 = vsel %vm376, %v2617, 0
        %2621 = vmatprep.subr.mxu0 %v2102
        %2622 = vmatpush1.msra.mxu0 %v2107
        %2623 = vmatprep.subr.mxu0 %v2115
        %2624 = vmatpush1.msra.mxu0 %v2120
        %2625 = vmatprep.subr.mxu0 %v2128
        %2626 = vmatpush1.msra.mxu0 %v2133
        %2627 = vmatprep.subr.mxu0 %v2141
        %2628 = vmatpush1.msra.mxu0 %v2146
        %2629 = vmatprep.subr.mxu0 %v2090
        %2630 = vmatpush1.msra.mxu0 %v2089
        %2631 = vmatprep.subr.mxu0 %v2154
        %2632 = vmatpush1.msra.mxu0 %v2153
        %2633 = vmatprep.subr.mxu0 %v2167
        %2634 = vmatpush1.msra.mxu0 %v2166
        %2635 = vmatprep.subr.mxu0 %v2180
        %2636 = vmatpush1.msra.mxu0 %v2179
        %2637 = vmatprep.subr.mxu0 %v2193
        %2638 = vmatpush1.msra.mxu0 %v2192
        %2639 = vmatprep.subr.mxu0 0.0
        %2640 = vmatpush1.msra.mxu0 0.0
        %2641 = vmatprep.subr.mxu0 0.0
        %2642 = vmatpush1.msra.mxu0 0.0
        %2643 = vmatprep.subr.mxu0 0.0
        %2644 = vmatpush1.msra.mxu0 0.0
        %2645 = vmatprep.subr.mxu0 0.0
        %2646 = vmatpush1.msra.mxu0 0.0
        %2647 = vmatprep.subr.mxu0 0.0
        %2648 = vmatpush1.msra.mxu0 0.0
        %2649 = vmatprep.subr.mxu0 0.0
        %2650 = vmatpush1.msra.mxu0 0.0
        %2651 = vmatprep.subr.mxu0 0.0
        %2652 = vmatpush1.msra.mxu0 0.0
        %2653 = vmatprep.subr.mxu0 0.0
        %2654 = vmatpush1.msra.mxu0 0.0
        %2655 = vmatprep.subr.mxu0 0.0
        %2656 = vmatpush1.msra.mxu0 0.0
        %2657 = vmatprep.subr.mxu0 0.0
        %2658 = vmatpush1.msra.mxu0 0.0
        %2659 = vmatprep.subr.mxu0 0.0
        %2660 = vmatpush1.msra.mxu0 0.0
        %2661 = vmatprep.subr.mxu0 0.0
        %2662 = vmatpush1.msra.mxu0 0.0
        %2663 = vmatprep.subr.mxu0 0.0
        %2664 = vmatpush1.msra.mxu0 0.0
        %2665 = vmatprep.subr.mxu0 0.0
        %2666 = vmatpush1.msra.mxu0 0.0
        %2667 = vmatprep.subr.mxu0 0.0
        %2668 = vmatpush1.msra.mxu0 0.0
        %2669 = vmatprep.subr.mxu0 0.0
        %2670 = vmatpush1.msra.mxu0 0.0
        %2671 = vmatprep.subr.mxu0 0.0
        %2672 = vmatpush1.msra.mxu0 0.0
        %2673 = vmatprep.subr.mxu0 0.0
        %2674 = vmatpush1.msra.mxu0 0.0
        %2675 = vmatprep.subr.mxu0 0.0
        %2676 = vmatpush1.msra.mxu0 0.0
        %2677 = vmatprep.subr.mxu0 0.0
        %2678 = vmatpush1.msra.mxu0 0.0
        %2679 = vmatprep.subr.mxu0 0.0
        %2680 = vmatpush1.msra.mxu0 0.0
        %2681 = vmatprep.subr.mxu0 0.0
        %2682 = vmatpush1.msra.mxu0 0.0
        %2683 = vmatprep.subr.mxu0 0.0
        %2684 = vmatpush1.msra.mxu0 0.0
        %2685 = vmatprep.mubr.f32.mxu0 0.0
        %2686 = vmatmul.mubr.f32.gmra.mrb[0].mxu0 %v2619
        %v2687 = vpop.f32.mrb[0].mxu0
        %v2688 = vadd.f32 0.0, %v2687
        %v2689 = vpop.f32.mrb[0].mxu0
        %v2690 = vadd.f32 0.0, %v2689
        %2691 = vdwg.mxu0
        %2692 = vmatprep.subr.mxu0 0.0
        %2693 = vmatpush1.msra.mxu0 %v2103
        %2694 = vmatprep.subr.mxu0 0.0
        %2695 = vmatpush1.msra.mxu0 %v2116
        %2696 = vmatprep.subr.mxu0 0.0
        %2697 = vmatpush1.msra.mxu0 %v2129
        %2698 = vmatprep.subr.mxu0 0.0
        %2699 = vmatpush1.msra.mxu0 %v2142
        %2700 = vmatprep.subr.mxu0 0.0
        %2701 = vmatpush1.msra.mxu0 %v2091
        %2702 = vmatprep.subr.mxu0 0.0
        %2703 = vmatpush1.msra.mxu0 %v2159
        %2704 = vmatprep.subr.mxu0 0.0
        %2705 = vmatpush1.msra.mxu0 %v2172
        %2706 = vmatprep.subr.mxu0 0.0
        %2707 = vmatpush1.msra.mxu0 %v2185
        %2708 = vmatprep.subr.mxu0 0.0
        %2709 = vmatpush1.msra.mxu0 %v2198
        %2710 = vmatprep.subr.mxu0 0.0
        %2711 = vmatpush1.msra.mxu0 0.0
        %2712 = vmatprep.subr.mxu0 0.0
        %2713 = vmatpush1.msra.mxu0 0.0
        %2714 = vmatprep.subr.mxu0 0.0
        %2715 = vmatpush1.msra.mxu0 0.0
        %2716 = vmatprep.subr.mxu0 0.0
        %2717 = vmatpush1.msra.mxu0 0.0
        %2718 = vmatprep.subr.mxu0 0.0
        %2719 = vmatpush1.msra.mxu0 0.0
        %2720 = vmatprep.subr.mxu0 0.0
        %2721 = vmatpush1.msra.mxu0 0.0
        %2722 = vmatprep.subr.mxu0 0.0
        %2723 = vmatpush1.msra.mxu0 0.0
        %2724 = vmatprep.subr.mxu0 0.0
        %2725 = vmatpush1.msra.mxu0 0.0
        %2726 = vmatprep.subr.mxu0 0.0
        %2727 = vmatpush1.msra.mxu0 0.0
        %2728 = vmatprep.subr.mxu0 0.0
        %2729 = vmatpush1.msra.mxu0 0.0
        %2730 = vmatprep.subr.mxu0 0.0
        %2731 = vmatpush1.msra.mxu0 0.0
        %2732 = vmatprep.subr.mxu0 0.0
        %2733 = vmatpush1.msra.mxu0 0.0
        %2734 = vmatprep.subr.mxu0 0.0
        %2735 = vmatpush1.msra.mxu0 0.0
        %2736 = vmatprep.subr.mxu0 0.0
        %2737 = vmatpush1.msra.mxu0 0.0
        %2738 = vmatprep.subr.mxu0 0.0
        %2739 = vmatpush1.msra.mxu0 0.0
        %2740 = vmatprep.subr.mxu0 0.0
        %2741 = vmatpush1.msra.mxu0 0.0
        %2742 = vmatprep.subr.mxu0 0.0
        %2743 = vmatpush1.msra.mxu0 0.0
        %2744 = vmatprep.subr.mxu0 0.0
        %2745 = vmatpush1.msra.mxu0 0.0
        %2746 = vmatprep.subr.mxu0 0.0
        %2747 = vmatpush1.msra.mxu0 0.0
        %2748 = vmatprep.subr.mxu0 0.0
        %2749 = vmatpush1.msra.mxu0 0.0
        %2750 = vmatprep.subr.mxu0 0.0
        %2751 = vmatpush1.msra.mxu0 0.0
        %2752 = vmatprep.subr.mxu0 0.0
        %2753 = vmatpush1.msra.mxu0 0.0
        %2754 = vmatprep.subr.mxu0 0.0
        %2755 = vmatpush1.msra.mxu0 0.0
        %2756 = vmatprep.mubr.f32.mxu0 0.0
        %2757 = vmatmul.mubr.f32.gmra.mrb[0].mxu0 %v2619
        %v2758 = vpop.f32.mrb[0].mxu0
        %v2759 = vadd.f32 0.0, %v2758
        %v2760 = vpop.f32.mrb[0].mxu0
        %2761 = vdwg.mxu0
        %v2763 = vsel %vm376, %v2615, 0
        %2765 = vmatprep.subr.mxu0 %v1836
        %2766 = vmatpush1.msra.mxu0 %v1841
        %2767 = vmatprep.subr.mxu0 %v1849
        %2768 = vmatpush1.msra.mxu0 %v1854
        %2769 = vmatprep.subr.mxu0 %v1862
        %2770 = vmatpush1.msra.mxu0 %v1867
        %2771 = vmatprep.subr.mxu0 %v1875
        %2772 = vmatpush1.msra.mxu0 %v1880
        %2773 = vmatprep.subr.mxu0 %v1824
        %2774 = vmatpush1.msra.mxu0 %v1823
        %2775 = vmatprep.subr.mxu0 %v1888
        %2776 = vmatpush1.msra.mxu0 %v1887
        %2777 = vmatprep.subr.mxu0 %v1901
        %2778 = vmatpush1.msra.mxu0 %v1900
        %2779 = vmatprep.subr.mxu0 %v1914
        %2780 = vmatpush1.msra.mxu0 %v1913
        %2781 = vmatprep.subr.mxu0 %v1927
        %2782 = vmatpush1.msra.mxu0 %v1926
        %2783 = vmatprep.subr.mxu0 0.0
        %2784 = vmatpush1.msra.mxu0 0.0
        %2785 = vmatprep.subr.mxu0 0.0
        %2786 = vmatpush1.msra.mxu0 0.0
        %2787 = vmatprep.subr.mxu0 0.0
        %2788 = vmatpush1.msra.mxu0 0.0
        %2789 = vmatprep.subr.mxu0 0.0
        %2790 = vmatpush1.msra.mxu0 0.0
        %2791 = vmatprep.subr.mxu0 0.0
        %2792 = vmatpush1.msra.mxu0 0.0
        %2793 = vmatprep.subr.mxu0 0.0
        %2794 = vmatpush1.msra.mxu0 0.0
        %2795 = vmatprep.subr.mxu0 0.0
        %2796 = vmatpush1.msra.mxu0 0.0
        %2797 = vmatprep.subr.mxu0 0.0
        %2798 = vmatpush1.msra.mxu0 0.0
        %2799 = vmatprep.subr.mxu0 0.0
        %2800 = vmatpush1.msra.mxu0 0.0
        %2801 = vmatprep.subr.mxu0 0.0
        %2802 = vmatpush1.msra.mxu0 0.0
        %2803 = vmatprep.subr.mxu0 0.0
        %2804 = vmatpush1.msra.mxu0 0.0
        %2805 = vmatprep.subr.mxu0 0.0
        %2806 = vmatpush1.msra.mxu0 0.0
        %2807 = vmatprep.subr.mxu0 0.0
        %2808 = vmatpush1.msra.mxu0 0.0
        %2809 = vmatprep.subr.mxu0 0.0
        %2810 = vmatpush1.msra.mxu0 0.0
        %2811 = vmatprep.subr.mxu0 0.0
        %2812 = vmatpush1.msra.mxu0 0.0
        %2813 = vmatprep.subr.mxu0 0.0
        %2814 = vmatpush1.msra.mxu0 0.0
        %2815 = vmatprep.subr.mxu0 0.0
        %2816 = vmatpush1.msra.mxu0 0.0
        %2817 = vmatprep.subr.mxu0 0.0
        %2818 = vmatpush1.msra.mxu0 0.0
        %2819 = vmatprep.subr.mxu0 0.0
        %2820 = vmatpush1.msra.mxu0 0.0
        %2821 = vmatprep.subr.mxu0 0.0
        %2822 = vmatpush1.msra.mxu0 0.0
        %2823 = vmatprep.subr.mxu0 0.0
        %2824 = vmatpush1.msra.mxu0 0.0
        %2825 = vmatprep.subr.mxu0 0.0
        %2826 = vmatpush1.msra.mxu0 0.0
        %2827 = vmatprep.subr.mxu0 0.0
        %2828 = vmatpush1.msra.mxu0 0.0
        %2829 = vmatprep.mubr.f32.mxu0 0.0
        %2830 = vmatmul.mubr.f32.gmra.mrb[0].mxu0 %v2763
        %v2831 = vpop.f32.mrb[0].mxu0
        %v2832 = vadd.f32 %v2688, %v2831
        %v2833 = vpop.f32.mrb[0].mxu0
        %v2834 = vadd.f32 %v2690, %v2833
        %2835 = vdwg.mxu0
        %2836 = vmatprep.subr.mxu0 0.0
        %2837 = vmatpush1.msra.mxu0 %v1837
        %2838 = vmatprep.subr.mxu0 0.0
        %2839 = vmatpush1.msra.mxu0 %v1850
        %2840 = vmatprep.subr.mxu0 0.0
        %2841 = vmatpush1.msra.mxu0 %v1863
        %2842 = vmatprep.subr.mxu0 0.0
        %2843 = vmatpush1.msra.mxu0 %v1876
        %2844 = vmatprep.subr.mxu0 0.0
        %2845 = vmatpush1.msra.mxu0 %v1825
        %2846 = vmatprep.subr.mxu0 0.0
        %2847 = vmatpush1.msra.mxu0 %v1893
        %2848 = vmatprep.subr.mxu0 0.0
        %2849 = vmatpush1.msra.mxu0 %v1906
        %2850 = vmatprep.subr.mxu0 0.0
        %2851 = vmatpush1.msra.mxu0 %v1919
        %2852 = vmatprep.subr.mxu0 0.0
        %2853 = vmatpush1.msra.mxu0 %v1932
        %2854 = vmatprep.subr.mxu0 0.0
        %2855 = vmatpush1.msra.mxu0 0.0
        %2856 = vmatprep.subr.mxu0 0.0
        %2857 = vmatpush1.msra.mxu0 0.0
        %2858 = vmatprep.subr.mxu0 0.0
        %2859 = vmatpush1.msra.mxu0 0.0
        %2860 = vmatprep.subr.mxu0 0.0
        %2861 = vmatpush1.msra.mxu0 0.0
        %2862 = vmatprep.subr.mxu0 0.0
        %2863 = vmatpush1.msra.mxu0 0.0
        %2864 = vmatprep.subr.mxu0 0.0
        %2865 = vmatpush1.msra.mxu0 0.0
        %2866 = vmatprep.subr.mxu0 0.0
        %2867 = vmatpush1.msra.mxu0 0.0
        %2868 = vmatprep.subr.mxu0 0.0
        %2869 = vmatpush1.msra.mxu0 0.0
        %2870 = vmatprep.subr.mxu0 0.0
        %2871 = vmatpush1.msra.mxu0 0.0
        %2872 = vmatprep.subr.mxu0 0.0
        %2873 = vmatpush1.msra.mxu0 0.0
        %2874 = vmatprep.subr.mxu0 0.0
        %2875 = vmatpush1.msra.mxu0 0.0
        %2876 = vmatprep.subr.mxu0 0.0
        %2877 = vmatpush1.msra.mxu0 0.0
        %2878 = vmatprep.subr.mxu0 0.0
        %2879 = vmatpush1.msra.mxu0 0.0
        %2880 = vmatprep.subr.mxu0 0.0
        %2881 = vmatpush1.msra.mxu0 0.0
        %2882 = vmatprep.subr.mxu0 0.0
        %2883 = vmatpush1.msra.mxu0 0.0
        %2884 = vmatprep.subr.mxu0 0.0
        %2885 = vmatpush1.msra.mxu0 0.0
        %2886 = vmatprep.subr.mxu0 0.0
        %2887 = vmatpush1.msra.mxu0 0.0
        %2888 = vmatprep.subr.mxu0 0.0
        %2889 = vmatpush1.msra.mxu0 0.0
        %2890 = vmatprep.subr.mxu0 0.0
        %2891 = vmatpush1.msra.mxu0 0.0
        %2892 = vmatprep.subr.mxu0 0.0
        %2893 = vmatpush1.msra.mxu0 0.0
        %2894 = vmatprep.subr.mxu0 0.0
        %2895 = vmatpush1.msra.mxu0 0.0
        %2896 = vmatprep.subr.mxu0 0.0
        %2897 = vmatpush1.msra.mxu0 0.0
        %2898 = vmatprep.subr.mxu0 0.0
        %2899 = vmatpush1.msra.mxu0 0.0
        %2900 = vmatprep.mubr.f32.mxu0 0.0
        %2901 = vmatmul.mubr.f32.gmra.mrb[0].mxu0 %v2763
        %v2902 = vpop.f32.mrb[0].mxu0
        %v2903 = vadd.f32 %v2759, %v2902
        %v2904 = vpop.f32.mrb[0].mxu0
        %2905 = vdwg.mxu0
        %s2906 = scalar_lea.vmem %s2, 88
        %v2907 = vld [vmem:[%s2906] sm:$0xff]
        %v2909 = vsel %vm376, %v2907, 0
        %2911 = vmatprep.subr.mxu0 %v2517
        %2912 = vmatpush1.msra.mxu0 %v2522
        %2913 = vmatprep.subr.mxu0 %v2530
        %2914 = vmatpush1.msra.mxu0 %v2535
        %2915 = vmatprep.subr.mxu0 %v2543
        %2916 = vmatpush1.msra.mxu0 %v2548
        %2917 = vmatprep.subr.mxu0 %v2556
        %2918 = vmatpush1.msra.mxu0 %v2561
        %2919 = vmatprep.subr.mxu0 %v2505
        %2920 = vmatpush1.msra.mxu0 %v2504
        %2921 = vmatprep.subr.mxu0 %v2569
        %2922 = vmatpush1.msra.mxu0 %v2568
        %2923 = vmatprep.subr.mxu0 %v2582
        %2924 = vmatpush1.msra.mxu0 %v2581
        %2925 = vmatprep.subr.mxu0 %v2595
        %2926 = vmatpush1.msra.mxu0 %v2594
        %2927 = vmatprep.subr.mxu0 %v2608
        %2928 = vmatpush1.msra.mxu0 %v2607
        %2929 = vmatprep.subr.mxu0 0.0
        %2930 = vmatpush1.msra.mxu0 0.0
        %2931 = vmatprep.subr.mxu0 0.0
        %2932 = vmatpush1.msra.mxu0 0.0
        %2933 = vmatprep.subr.mxu0 0.0
        %2934 = vmatpush1.msra.mxu0 0.0
        %2935 = vmatprep.subr.mxu0 0.0
        %2936 = vmatpush1.msra.mxu0 0.0
        %2937 = vmatprep.subr.mxu0 0.0
        %2938 = vmatpush1.msra.mxu0 0.0
        %2939 = vmatprep.subr.mxu0 0.0
        %2940 = vmatpush1.msra.mxu0 0.0
        %2941 = vmatprep.subr.mxu0 0.0
        %2942 = vmatpush1.msra.mxu0 0.0
        %2943 = vmatprep.subr.mxu0 0.0
        %2944 = vmatpush1.msra.mxu0 0.0
        %2945 = vmatprep.subr.mxu0 0.0
        %2946 = vmatpush1.msra.mxu0 0.0
        %2947 = vmatprep.subr.mxu0 0.0
        %2948 = vmatpush1.msra.mxu0 0.0
        %2949 = vmatprep.subr.mxu0 0.0
        %2950 = vmatpush1.msra.mxu0 0.0
        %2951 = vmatprep.subr.mxu0 0.0
        %2952 = vmatpush1.msra.mxu0 0.0
        %2953 = vmatprep.subr.mxu0 0.0
        %2954 = vmatpush1.msra.mxu0 0.0
        %2955 = vmatprep.subr.mxu0 0.0
        %2956 = vmatpush1.msra.mxu0 0.0
        %2957 = vmatprep.subr.mxu0 0.0
        %2958 = vmatpush1.msra.mxu0 0.0
        %2959 = vmatprep.subr.mxu0 0.0
        %2960 = vmatpush1.msra.mxu0 0.0
        %2961 = vmatprep.subr.mxu0 0.0
        %2962 = vmatpush1.msra.mxu0 0.0
        %2963 = vmatprep.subr.mxu0 0.0
        %2964 = vmatpush1.msra.mxu0 0.0
        %2965 = vmatprep.subr.mxu0 0.0
        %2966 = vmatpush1.msra.mxu0 0.0
        %2967 = vmatprep.subr.mxu0 0.0
        %2968 = vmatpush1.msra.mxu0 0.0
        %2969 = vmatprep.subr.mxu0 0.0
        %2970 = vmatpush1.msra.mxu0 0.0
        %2971 = vmatprep.subr.mxu0 0.0
        %2972 = vmatpush1.msra.mxu0 0.0
        %2973 = vmatprep.subr.mxu0 0.0
        %2974 = vmatpush1.msra.mxu0 0.0
        %2975 = vmatprep.mubr.f32.mxu0 0.0
        %2976 = vmatmul.mubr.f32.gmra.mrb[0].mxu0 %v2909
        %v2977 = vpop.f32.mrb[0].mxu0
        %v2978 = vadd.f32 0.0, %v2977
        %v2979 = vpop.f32.mrb[0].mxu0
        %v2980 = vadd.f32 0.0, %v2979
        %2981 = vdwg.mxu0
        %2982 = vmatprep.subr.mxu0 0.0
        %2983 = vmatpush1.msra.mxu0 %v2518
        %2984 = vmatprep.subr.mxu0 0.0
        %2985 = vmatpush1.msra.mxu0 %v2531
        %2986 = vmatprep.subr.mxu0 0.0
        %2987 = vmatpush1.msra.mxu0 %v2544
        %2988 = vmatprep.subr.mxu0 0.0
        %2989 = vmatpush1.msra.mxu0 %v2557
        %2990 = vmatprep.subr.mxu0 0.0
        %2991 = vmatpush1.msra.mxu0 %v2506
        %2992 = vmatprep.subr.mxu0 0.0
        %2993 = vmatpush1.msra.mxu0 %v2574
        %2994 = vmatprep.subr.mxu0 0.0
        %2995 = vmatpush1.msra.mxu0 %v2587
        %2996 = vmatprep.subr.mxu0 0.0
        %2997 = vmatpush1.msra.mxu0 %v2600
        %2998 = vmatprep.subr.mxu0 0.0
        %2999 = vmatpush1.msra.mxu0 %v2613
        %3000 = vmatprep.subr.mxu0 0.0
        %3001 = vmatpush1.msra.mxu0 0.0
        %3002 = vmatprep.subr.mxu0 0.0
        %3003 = vmatpush1.msra.mxu0 0.0
        %3004 = vmatprep.subr.mxu0 0.0
        %3005 = vmatpush1.msra.mxu0 0.0
        %3006 = vmatprep.subr.mxu0 0.0
        %3007 = vmatpush1.msra.mxu0 0.0
        %3008 = vmatprep.subr.mxu0 0.0
        %3009 = vmatpush1.msra.mxu0 0.0
        %3010 = vmatprep.subr.mxu0 0.0
        %3011 = vmatpush1.msra.mxu0 0.0
        %3012 = vmatprep.subr.mxu0 0.0
        %3013 = vmatpush1.msra.mxu0 0.0
        %3014 = vmatprep.subr.mxu0 0.0
        %3015 = vmatpush1.msra.mxu0 0.0
        %3016 = vmatprep.subr.mxu0 0.0
        %3017 = vmatpush1.msra.mxu0 0.0
        %3018 = vmatprep.subr.mxu0 0.0
        %3019 = vmatpush1.msra.mxu0 0.0
        %3020 = vmatprep.subr.mxu0 0.0
        %3021 = vmatpush1.msra.mxu0 0.0
        %3022 = vmatprep.subr.mxu0 0.0
        %3023 = vmatpush1.msra.mxu0 0.0
        %3024 = vmatprep.subr.mxu0 0.0
        %3025 = vmatpush1.msra.mxu0 0.0
        %3026 = vmatprep.subr.mxu0 0.0
        %3027 = vmatpush1.msra.mxu0 0.0
        %3028 = vmatprep.subr.mxu0 0.0
        %3029 = vmatpush1.msra.mxu0 0.0
        %3030 = vmatprep.subr.mxu0 0.0
        %3031 = vmatpush1.msra.mxu0 0.0
        %3032 = vmatprep.subr.mxu0 0.0
        %3033 = vmatpush1.msra.mxu0 0.0
        %3034 = vmatprep.subr.mxu0 0.0
        %3035 = vmatpush1.msra.mxu0 0.0
        %3036 = vmatprep.subr.mxu0 0.0
        %3037 = vmatpush1.msra.mxu0 0.0
        %3038 = vmatprep.subr.mxu0 0.0
        %3039 = vmatpush1.msra.mxu0 0.0
        %3040 = vmatprep.subr.mxu0 0.0
        %3041 = vmatpush1.msra.mxu0 0.0
        %3042 = vmatprep.subr.mxu0 0.0
        %3043 = vmatpush1.msra.mxu0 0.0
        %3044 = vmatprep.subr.mxu0 0.0
        %3045 = vmatpush1.msra.mxu0 0.0
        %3046 = vmatprep.mubr.f32.mxu0 0.0
        %3047 = vmatmul.mubr.f32.gmra.mrb[0].mxu0 %v2909
        %v3048 = vpop.f32.mrb[0].mxu0
        %v3049 = vadd.f32 0.0, %v3048
        %v3050 = vpop.f32.mrb[0].mxu0
        %3051 = vdwg.mxu0
        %v3052 = vadd.f32 %v2832, %v2978
        %v3053 = vadd.f32 %v2834, %v2980
        %v3054 = vadd.f32 %v2903, %v3049
        %s3055 = scalar_lea.vmem %s4, 40
        %v3056 = vld [vmem:[%s3055] sm:$0xff]
        %3058 = vset.pattern.permute.xlu0 0
        %3059 = vperm.xlu0 %3058, %v3056
        %v3060 = vpop.permute.xlu0 %3059
        %v3062 = vadd.f32 %v3052, %v3060
        %v3063 = vadd.f32 %v3053, %v3060
        %v3064 = vadd.f32 %v3054, %v3060
        %v3065 = vmul.f32 %v3062, %v528
        %v3066 = vmul.f32 %v3063, %v532
        %v3067 = vmul.f32 %v3064, %v536
        %v3068 = vadd.f32 %v3065, %v1823
        %v3069 = vadd.f32 %v3066, %v1824
        %v3070 = vadd.f32 %v3067, %v1825
        %s3071 = scalar_lea.vmem %s3, 16
        %v3072 = vld [vmem:[%s3071] sm:$0xff]
        %s3073 = scalar_lea.vmem %s3, 24
        %v3074 = vld [vmem:[%s3073] sm:$0xff]
        %v3076 = vsel %vm1525, %v3074, 0
        %3078 = vmatprep.subr.mxu0 %v1520
        %3079 = vmatpush1.msra.mxu0 %v1519
        %3080 = vmatprep.subr.mxu0 0.0
        %3081 = vmatpush1.msra.mxu0 0.0
        %3082 = vmatprep.subr.mxu0 0.0
        %3083 = vmatpush1.msra.mxu0 0.0
        %3084 = vmatprep.subr.mxu0 0.0
        %3085 = vmatpush1.msra.mxu0 0.0
        %3086 = vmatprep.subr.mxu0 0.0
        %3087 = vmatpush1.msra.mxu0 0.0
        %3088 = vmatprep.subr.mxu0 0.0
        %3089 = vmatpush1.msra.mxu0 0.0
        %3090 = vmatprep.subr.mxu0 0.0
        %3091 = vmatpush1.msra.mxu0 0.0
        %3092 = vmatprep.subr.mxu0 0.0
        %3093 = vmatpush1.msra.mxu0 0.0
        %3094 = vmatprep.subr.mxu0 0.0
        %3095 = vmatpush1.msra.mxu0 0.0
        %3096 = vmatprep.subr.mxu0 0.0
        %3097 = vmatpush1.msra.mxu0 0.0
        %3098 = vmatprep.subr.mxu0 0.0
        %3099 = vmatpush1.msra.mxu0 0.0
        %3100 = vmatprep.subr.mxu0 0.0
        %3101 = vmatpush1.msra.mxu0 0.0
        %3102 = vmatprep.subr.mxu0 0.0
        %3103 = vmatpush1.msra.mxu0 0.0
        %3104 = vmatprep.subr.mxu0 0.0
        %3105 = vmatpush1.msra.mxu0 0.0
        %3106 = vmatprep.subr.mxu0 0.0
        %3107 = vmatpush1.msra.mxu0 0.0
        %3108 = vmatprep.subr.mxu0 0.0
        %3109 = vmatpush1.msra.mxu0 0.0
        %3110 = vmatprep.subr.mxu0 0.0
        %3111 = vmatpush1.msra.mxu0 0.0
        %3112 = vmatprep.subr.mxu0 0.0
        %3113 = vmatpush1.msra.mxu0 0.0
        %3114 = vmatprep.subr.mxu0 0.0
        %3115 = vmatpush1.msra.mxu0 0.0
        %3116 = vmatprep.subr.mxu0 0.0
        %3117 = vmatpush1.msra.mxu0 0.0
        %3118 = vmatprep.subr.mxu0 0.0
        %3119 = vmatpush1.msra.mxu0 0.0
        %3120 = vmatprep.subr.mxu0 0.0
        %3121 = vmatpush1.msra.mxu0 0.0
        %3122 = vmatprep.subr.mxu0 0.0
        %3123 = vmatpush1.msra.mxu0 0.0
        %3124 = vmatprep.subr.mxu0 0.0
        %3125 = vmatpush1.msra.mxu0 0.0
        %3126 = vmatprep.subr.mxu0 0.0
        %3127 = vmatpush1.msra.mxu0 0.0
        %3128 = vmatprep.subr.mxu0 0.0
        %3129 = vmatpush1.msra.mxu0 0.0
        %3130 = vmatprep.subr.mxu0 0.0
        %3131 = vmatpush1.msra.mxu0 0.0
        %3132 = vmatprep.subr.mxu0 0.0
        %3133 = vmatpush1.msra.mxu0 0.0
        %3134 = vmatprep.subr.mxu0 0.0
        %3135 = vmatpush1.msra.mxu0 0.0
        %3136 = vmatprep.subr.mxu0 0.0
        %3137 = vmatpush1.msra.mxu0 0.0
        %3138 = vmatprep.subr.mxu0 0.0
        %3139 = vmatpush1.msra.mxu0 0.0
        %3140 = vmatprep.subr.mxu0 0.0
        %3141 = vmatpush1.msra.mxu0 0.0
        %3142 = vmatprep.mubr.f32.mxu0 0.0
        %3143 = vmatmul.mubr.f32.gmra.mrb[0].mxu0 %v3076
        %v3144 = vpop.f32.mrb[0].mxu0
        %v3145 = vadd.f32 0.0, %v3144
        %v3146 = vpop.f32.mrb[0].mxu0
        %v3147 = vadd.f32 0.0, %v3146
        %3148 = vdwg.mxu0
        %3149 = vmatprep.subr.mxu0 0.0
        %3150 = vmatpush1.msra.mxu0 %v1521
        %3151 = vmatprep.subr.mxu0 0.0
        %3152 = vmatpush1.msra.mxu0 0.0
        %3153 = vmatprep.subr.mxu0 0.0
        %3154 = vmatpush1.msra.mxu0 0.0
        %3155 = vmatprep.subr.mxu0 0.0
        %3156 = vmatpush1.msra.mxu0 0.0
        %3157 = vmatprep.subr.mxu0 0.0
        %3158 = vmatpush1.msra.mxu0 0.0
        %3159 = vmatprep.subr.mxu0 0.0
        %3160 = vmatpush1.msra.mxu0 0.0
        %3161 = vmatprep.subr.mxu0 0.0
        %3162 = vmatpush1.msra.mxu0 0.0
        %3163 = vmatprep.subr.mxu0 0.0
        %3164 = vmatpush1.msra.mxu0 0.0
        %3165 = vmatprep.subr.mxu0 0.0
        %3166 = vmatpush1.msra.mxu0 0.0
        %3167 = vmatprep.subr.mxu0 0.0
        %3168 = vmatpush1.msra.mxu0 0.0
        %3169 = vmatprep.subr.mxu0 0.0
        %3170 = vmatpush1.msra.mxu0 0.0
        %3171 = vmatprep.subr.mxu0 0.0
        %3172 = vmatpush1.msra.mxu0 0.0
        %3173 = vmatprep.subr.mxu0 0.0
        %3174 = vmatpush1.msra.mxu0 0.0
        %3175 = vmatprep.subr.mxu0 0.0
        %3176 = vmatpush1.msra.mxu0 0.0
        %3177 = vmatprep.subr.mxu0 0.0
        %3178 = vmatpush1.msra.mxu0 0.0
        %3179 = vmatprep.subr.mxu0 0.0
        %3180 = vmatpush1.msra.mxu0 0.0
        %3181 = vmatprep.subr.mxu0 0.0
        %3182 = vmatpush1.msra.mxu0 0.0
        %3183 = vmatprep.subr.mxu0 0.0
        %3184 = vmatpush1.msra.mxu0 0.0
        %3185 = vmatprep.subr.mxu0 0.0
        %3186 = vmatpush1.msra.mxu0 0.0
        %3187 = vmatprep.subr.mxu0 0.0
        %3188 = vmatpush1.msra.mxu0 0.0
        %3189 = vmatprep.subr.mxu0 0.0
        %3190 = vmatpush1.msra.mxu0 0.0
        %3191 = vmatprep.subr.mxu0 0.0
        %3192 = vmatpush1.msra.mxu0 0.0
        %3193 = vmatprep.subr.mxu0 0.0
        %3194 = vmatpush1.msra.mxu0 0.0
        %3195 = vmatprep.subr.mxu0 0.0
        %3196 = vmatpush1.msra.mxu0 0.0
        %3197 = vmatprep.subr.mxu0 0.0
        %3198 = vmatpush1.msra.mxu0 0.0
        %3199 = vmatprep.subr.mxu0 0.0
        %3200 = vmatpush1.msra.mxu0 0.0
        %3201 = vmatprep.subr.mxu0 0.0
        %3202 = vmatpush1.msra.mxu0 0.0
        %3203 = vmatprep.subr.mxu0 0.0
        %3204 = vmatpush1.msra.mxu0 0.0
        %3205 = vmatprep.subr.mxu0 0.0
        %3206 = vmatpush1.msra.mxu0 0.0
        %3207 = vmatprep.subr.mxu0 0.0
        %3208 = vmatpush1.msra.mxu0 0.0
        %3209 = vmatprep.subr.mxu0 0.0
        %3210 = vmatpush1.msra.mxu0 0.0
        %3211 = vmatprep.subr.mxu0 0.0
        %3212 = vmatpush1.msra.mxu0 0.0
        %3213 = vmatprep.mubr.f32.mxu0 0.0
        %3214 = vmatmul.mubr.f32.gmra.mrb[0].mxu0 %v3076
        %v3215 = vpop.f32.mrb[0].mxu0
        %v3216 = vadd.f32 0.0, %v3215
        %v3217 = vpop.f32.mrb[0].mxu0
        %3218 = vdwg.mxu0
        %v3220 = vsel %vm1525, %v3072, 0
        %3222 = vmatprep.subr.mxu0 %v252
        %3223 = vmatpush1.msra.mxu0 %v251
        %3224 = vmatprep.subr.mxu0 0.0
        %3225 = vmatpush1.msra.mxu0 0.0
        %3226 = vmatprep.subr.mxu0 0.0
        %3227 = vmatpush1.msra.mxu0 0.0
        %3228 = vmatprep.subr.mxu0 0.0
        %3229 = vmatpush1.msra.mxu0 0.0
        %3230 = vmatprep.subr.mxu0 0.0
        %3231 = vmatpush1.msra.mxu0 0.0
        %3232 = vmatprep.subr.mxu0 0.0
        %3233 = vmatpush1.msra.mxu0 0.0
        %3234 = vmatprep.subr.mxu0 0.0
        %3235 = vmatpush1.msra.mxu0 0.0
        %3236 = vmatprep.subr.mxu0 0.0
        %3237 = vmatpush1.msra.mxu0 0.0
        %3238 = vmatprep.subr.mxu0 0.0
        %3239 = vmatpush1.msra.mxu0 0.0
        %3240 = vmatprep.subr.mxu0 0.0
        %3241 = vmatpush1.msra.mxu0 0.0
        %3242 = vmatprep.subr.mxu0 0.0
        %3243 = vmatpush1.msra.mxu0 0.0
        %3244 = vmatprep.subr.mxu0 0.0
        %3245 = vmatpush1.msra.mxu0 0.0
        %3246 = vmatprep.subr.mxu0 0.0
        %3247 = vmatpush1.msra.mxu0 0.0
        %3248 = vmatprep.subr.mxu0 0.0
        %3249 = vmatpush1.msra.mxu0 0.0
        %3250 = vmatprep.subr.mxu0 0.0
        %3251 = vmatpush1.msra.mxu0 0.0
        %3252 = vmatprep.subr.mxu0 0.0
        %3253 = vmatpush1.msra.mxu0 0.0
        %3254 = vmatprep.subr.mxu0 0.0
        %3255 = vmatpush1.msra.mxu0 0.0
        %3256 = vmatprep.subr.mxu0 0.0
        %3257 = vmatpush1.msra.mxu0 0.0
        %3258 = vmatprep.subr.mxu0 0.0
        %3259 = vmatpush1.msra.mxu0 0.0
        %3260 = vmatprep.subr.mxu0 0.0
        %3261 = vmatpush1.msra.mxu0 0.0
        %3262 = vmatprep.subr.mxu0 0.0
        %3263 = vmatpush1.msra.mxu0 0.0
        %3264 = vmatprep.subr.mxu0 0.0
        %3265 = vmatpush1.msra.mxu0 0.0
        %3266 = vmatprep.subr.mxu0 0.0
        %3267 = vmatpush1.msra.mxu0 0.0
        %3268 = vmatprep.subr.mxu0 0.0
        %3269 = vmatpush1.msra.mxu0 0.0
        %3270 = vmatprep.subr.mxu0 0.0
        %3271 = vmatpush1.msra.mxu0 0.0
        %3272 = vmatprep.subr.mxu0 0.0
        %3273 = vmatpush1.msra.mxu0 0.0
        %3274 = vmatprep.subr.mxu0 0.0
        %3275 = vmatpush1.msra.mxu0 0.0
        %3276 = vmatprep.subr.mxu0 0.0
        %3277 = vmatpush1.msra.mxu0 0.0
        %3278 = vmatprep.subr.mxu0 0.0
        %3279 = vmatpush1.msra.mxu0 0.0
        %3280 = vmatprep.subr.mxu0 0.0
        %3281 = vmatpush1.msra.mxu0 0.0
        %3282 = vmatprep.subr.mxu0 0.0
        %3283 = vmatpush1.msra.mxu0 0.0
        %3284 = vmatprep.subr.mxu0 0.0
        %3285 = vmatpush1.msra.mxu0 0.0
        %3286 = vmatprep.mubr.f32.mxu0 0.0
        %3287 = vmatmul.mubr.f32.gmra.mrb[0].mxu0 %v3220
        %v3288 = vpop.f32.mrb[0].mxu0
        %v3289 = vadd.f32 %v3145, %v3288
        %v3290 = vpop.f32.mrb[0].mxu0
        %v3291 = vadd.f32 %v3147, %v3290
        %3292 = vdwg.mxu0
        %3293 = vmatprep.subr.mxu0 0.0
        %3294 = vmatpush1.msra.mxu0 %v253
        %3295 = vmatprep.subr.mxu0 0.0
        %3296 = vmatpush1.msra.mxu0 0.0
        %3297 = vmatprep.subr.mxu0 0.0
        %3298 = vmatpush1.msra.mxu0 0.0
        %3299 = vmatprep.subr.mxu0 0.0
        %3300 = vmatpush1.msra.mxu0 0.0
        %3301 = vmatprep.subr.mxu0 0.0
        %3302 = vmatpush1.msra.mxu0 0.0
        %3303 = vmatprep.subr.mxu0 0.0
        %3304 = vmatpush1.msra.mxu0 0.0
        %3305 = vmatprep.subr.mxu0 0.0
        %3306 = vmatpush1.msra.mxu0 0.0
        %3307 = vmatprep.subr.mxu0 0.0
        %3308 = vmatpush1.msra.mxu0 0.0
        %3309 = vmatprep.subr.mxu0 0.0
        %3310 = vmatpush1.msra.mxu0 0.0
        %3311 = vmatprep.subr.mxu0 0.0
        %3312 = vmatpush1.msra.mxu0 0.0
        %3313 = vmatprep.subr.mxu0 0.0
        %3314 = vmatpush1.msra.mxu0 0.0
        %3315 = vmatprep.subr.mxu0 0.0
        %3316 = vmatpush1.msra.mxu0 0.0
        %3317 = vmatprep.subr.mxu0 0.0
        %3318 = vmatpush1.msra.mxu0 0.0
        %3319 = vmatprep.subr.mxu0 0.0
        %3320 = vmatpush1.msra.mxu0 0.0
        %3321 = vmatprep.subr.mxu0 0.0
        %3322 = vmatpush1.msra.mxu0 0.0
        %3323 = vmatprep.subr.mxu0 0.0
        %3324 = vmatpush1.msra.mxu0 0.0
        %3325 = vmatprep.subr.mxu0 0.0
        %3326 = vmatpush1.msra.mxu0 0.0
        %3327 = vmatprep.subr.mxu0 0.0
        %3328 = vmatpush1.msra.mxu0 0.0
        %3329 = vmatprep.subr.mxu0 0.0
        %3330 = vmatpush1.msra.mxu0 0.0
        %3331 = vmatprep.subr.mxu0 0.0
        %3332 = vmatpush1.msra.mxu0 0.0
        %3333 = vmatprep.subr.mxu0 0.0
        %3334 = vmatpush1.msra.mxu0 0.0
        %3335 = vmatprep.subr.mxu0 0.0
        %3336 = vmatpush1.msra.mxu0 0.0
        %3337 = vmatprep.subr.mxu0 0.0
        %3338 = vmatpush1.msra.mxu0 0.0
        %3339 = vmatprep.subr.mxu0 0.0
        %3340 = vmatpush1.msra.mxu0 0.0
        %3341 = vmatprep.subr.mxu0 0.0
        %3342 = vmatpush1.msra.mxu0 0.0
        %3343 = vmatprep.subr.mxu0 0.0
        %3344 = vmatpush1.msra.mxu0 0.0
        %3345 = vmatprep.subr.mxu0 0.0
        %3346 = vmatpush1.msra.mxu0 0.0
        %3347 = vmatprep.subr.mxu0 0.0
        %3348 = vmatpush1.msra.mxu0 0.0
        %3349 = vmatprep.subr.mxu0 0.0
        %3350 = vmatpush1.msra.mxu0 0.0
        %3351 = vmatprep.subr.mxu0 0.0
        %3352 = vmatpush1.msra.mxu0 0.0
        %3353 = vmatprep.subr.mxu0 0.0
        %3354 = vmatpush1.msra.mxu0 0.0
        %3355 = vmatprep.subr.mxu0 0.0
        %3356 = vmatpush1.msra.mxu0 0.0
        %3357 = vmatprep.mubr.f32.mxu0 0.0
        %3358 = vmatmul.mubr.f32.gmra.mrb[0].mxu0 %v3220
        %v3359 = vpop.f32.mrb[0].mxu0
        %v3360 = vadd.f32 %v3216, %v3359
        %v3361 = vpop.f32.mrb[0].mxu0
        %3362 = vdwg.mxu0
        %s3363 = scalar_lea.vmem %s3, 32
        %v3364 = vld [vmem:[%s3363] sm:$0xff]
        %v3366 = vsel %vm1525, %v3364, 0
        %3368 = vmatprep.subr.mxu0 %v3069
        %3369 = vmatpush1.msra.mxu0 %v3068
        %3370 = vmatprep.subr.mxu0 0.0
        %3371 = vmatpush1.msra.mxu0 0.0
        %3372 = vmatprep.subr.mxu0 0.0
        %3373 = vmatpush1.msra.mxu0 0.0
        %3374 = vmatprep.subr.mxu0 0.0
        %3375 = vmatpush1.msra.mxu0 0.0
        %3376 = vmatprep.subr.mxu0 0.0
        %3377 = vmatpush1.msra.mxu0 0.0
        %3378 = vmatprep.subr.mxu0 0.0
        %3379 = vmatpush1.msra.mxu0 0.0
        %3380 = vmatprep.subr.mxu0 0.0
        %3381 = vmatpush1.msra.mxu0 0.0
        %3382 = vmatprep.subr.mxu0 0.0
        %3383 = vmatpush1.msra.mxu0 0.0
        %3384 = vmatprep.subr.mxu0 0.0
        %3385 = vmatpush1.msra.mxu0 0.0
        %3386 = vmatprep.subr.mxu0 0.0
        %3387 = vmatpush1.msra.mxu0 0.0
        %3388 = vmatprep.subr.mxu0 0.0
        %3389 = vmatpush1.msra.mxu0 0.0
        %3390 = vmatprep.subr.mxu0 0.0
        %3391 = vmatpush1.msra.mxu0 0.0
        %3392 = vmatprep.subr.mxu0 0.0
        %3393 = vmatpush1.msra.mxu0 0.0
        %3394 = vmatprep.subr.mxu0 0.0
        %3395 = vmatpush1.msra.mxu0 0.0
        %3396 = vmatprep.subr.mxu0 0.0
        %3397 = vmatpush1.msra.mxu0 0.0
        %3398 = vmatprep.subr.mxu0 0.0
        %3399 = vmatpush1.msra.mxu0 0.0
        %3400 = vmatprep.subr.mxu0 0.0
        %3401 = vmatpush1.msra.mxu0 0.0
        %3402 = vmatprep.subr.mxu0 0.0
        %3403 = vmatpush1.msra.mxu0 0.0
        %3404 = vmatprep.subr.mxu0 0.0
        %3405 = vmatpush1.msra.mxu0 0.0
        %3406 = vmatprep.subr.mxu0 0.0
        %3407 = vmatpush1.msra.mxu0 0.0
        %3408 = vmatprep.subr.mxu0 0.0
        %3409 = vmatpush1.msra.mxu0 0.0
        %3410 = vmatprep.subr.mxu0 0.0
        %3411 = vmatpush1.msra.mxu0 0.0
        %3412 = vmatprep.subr.mxu0 0.0
        %3413 = vmatpush1.msra.mxu0 0.0
        %3414 = vmatprep.subr.mxu0 0.0
        %3415 = vmatpush1.msra.mxu0 0.0
        %3416 = vmatprep.subr.mxu0 0.0
        %3417 = vmatpush1.msra.mxu0 0.0
        %3418 = vmatprep.subr.mxu0 0.0
        %3419 = vmatpush1.msra.mxu0 0.0
        %3420 = vmatprep.subr.mxu0 0.0
        %3421 = vmatpush1.msra.mxu0 0.0
        %3422 = vmatprep.subr.mxu0 0.0
        %3423 = vmatpush1.msra.mxu0 0.0
        %3424 = vmatprep.subr.mxu0 0.0
        %3425 = vmatpush1.msra.mxu0 0.0
        %3426 = vmatprep.subr.mxu0 0.0
        %3427 = vmatpush1.msra.mxu0 0.0
        %3428 = vmatprep.subr.mxu0 0.0
        %3429 = vmatpush1.msra.mxu0 0.0
        %3430 = vmatprep.subr.mxu0 0.0
        %3431 = vmatpush1.msra.mxu0 0.0
        %3432 = vmatprep.mubr.f32.mxu0 0.0
        %3433 = vmatmul.mubr.f32.gmra.mrb[0].mxu0 %v3366
        %v3434 = vpop.f32.mrb[0].mxu0
        %v3435 = vadd.f32 0.0, %v3434
        %v3436 = vpop.f32.mrb[0].mxu0
        %v3437 = vadd.f32 0.0, %v3436
        %3438 = vdwg.mxu0
        %3439 = vmatprep.subr.mxu0 0.0
        %3440 = vmatpush1.msra.mxu0 %v3070
        %3441 = vmatprep.subr.mxu0 0.0
        %3442 = vmatpush1.msra.mxu0 0.0
        %3443 = vmatprep.subr.mxu0 0.0
        %3444 = vmatpush1.msra.mxu0 0.0
        %3445 = vmatprep.subr.mxu0 0.0
        %3446 = vmatpush1.msra.mxu0 0.0
        %3447 = vmatprep.subr.mxu0 0.0
        %3448 = vmatpush1.msra.mxu0 0.0
        %3449 = vmatprep.subr.mxu0 0.0
        %3450 = vmatpush1.msra.mxu0 0.0
        %3451 = vmatprep.subr.mxu0 0.0
        %3452 = vmatpush1.msra.mxu0 0.0
        %3453 = vmatprep.subr.mxu0 0.0
        %3454 = vmatpush1.msra.mxu0 0.0
        %3455 = vmatprep.subr.mxu0 0.0
        %3456 = vmatpush1.msra.mxu0 0.0
        %3457 = vmatprep.subr.mxu0 0.0
        %3458 = vmatpush1.msra.mxu0 0.0
        %3459 = vmatprep.subr.mxu0 0.0
        %3460 = vmatpush1.msra.mxu0 0.0
        %3461 = vmatprep.subr.mxu0 0.0
        %3462 = vmatpush1.msra.mxu0 0.0
        %3463 = vmatprep.subr.mxu0 0.0
        %3464 = vmatpush1.msra.mxu0 0.0
        %3465 = vmatprep.subr.mxu0 0.0
        %3466 = vmatpush1.msra.mxu0 0.0
        %3467 = vmatprep.subr.mxu0 0.0
        %3468 = vmatpush1.msra.mxu0 0.0
        %3469 = vmatprep.subr.mxu0 0.0
        %3470 = vmatpush1.msra.mxu0 0.0
        %3471 = vmatprep.subr.mxu0 0.0
        %3472 = vmatpush1.msra.mxu0 0.0
        %3473 = vmatprep.subr.mxu0 0.0
        %3474 = vmatpush1.msra.mxu0 0.0
        %3475 = vmatprep.subr.mxu0 0.0
        %3476 = vmatpush1.msra.mxu0 0.0
        %3477 = vmatprep.subr.mxu0 0.0
        %3478 = vmatpush1.msra.mxu0 0.0
        %3479 = vmatprep.subr.mxu0 0.0
        %3480 = vmatpush1.msra.mxu0 0.0
        %3481 = vmatprep.subr.mxu0 0.0
        %3482 = vmatpush1.msra.mxu0 0.0
        %3483 = vmatprep.subr.mxu0 0.0
        %3484 = vmatpush1.msra.mxu0 0.0
        %3485 = vmatprep.subr.mxu0 0.0
        %3486 = vmatpush1.msra.mxu0 0.0
        %3487 = vmatprep.subr.mxu0 0.0
        %3488 = vmatpush1.msra.mxu0 0.0
        %3489 = vmatprep.subr.mxu0 0.0
        %3490 = vmatpush1.msra.mxu0 0.0
        %3491 = vmatprep.subr.mxu0 0.0
        %3492 = vmatpush1.msra.mxu0 0.0
        %3493 = vmatprep.subr.mxu0 0.0
        %3494 = vmatpush1.msra.mxu0 0.0
        %3495 = vmatprep.subr.mxu0 0.0
        %3496 = vmatpush1.msra.mxu0 0.0
        %3497 = vmatprep.subr.mxu0 0.0
        %3498 = vmatpush1.msra.mxu0 0.0
        %3499 = vmatprep.subr.mxu0 0.0
        %3500 = vmatpush1.msra.mxu0 0.0
        %3501 = vmatprep.subr.mxu0 0.0
        %3502 = vmatpush1.msra.mxu0 0.0
        %3503 = vmatprep.mubr.f32.mxu0 0.0
        %3504 = vmatmul.mubr.f32.gmra.mrb[0].mxu0 %v3366
        %v3505 = vpop.f32.mrb[0].mxu0
        %v3506 = vadd.f32 0.0, %v3505
        %v3507 = vpop.f32.mrb[0].mxu0
        %3508 = vdwg.mxu0
        %v3509 = vadd.f32 %v3289, %v3435
        %v3510 = vadd.f32 %v3291, %v3437
        %v3511 = vadd.f32 %v3360, %v3506
        %s3512 = scalar_lea.vmem %s5, 8
        %v3513 = vld [vmem:[%s3512] sm:$0xff]
        %3515 = vset.pattern.permute.xlu0 0
        %3516 = vperm.xlu0 %3515, %v3513
        %v3517 = vpop.permute.xlu0 %3516
        %v3519 = vadd.f32 %v3509, %v3517
        %v3520 = vadd.f32 %v3510, %v3517
        %v3521 = vadd.f32 %v3511, %v3517
        %v3522 = vmul.f32 %v3519, %v528
        %v3523 = vmul.f32 %v3520, %v532
        %v3524 = vmul.f32 %v3521, %v536
        %3526 = vrot.lane.b32.xlu0 %v3524, 19
        %v3527 = vpop.permute.xlu0 %3526
        %3531 = vrot.lane.b32.xlu0 %v3522, 19
        %v3532 = vpop.permute.xlu0 %3531
        %3533 = vrot.lane.b32.xlu0 %v3523, 19
        %v3534 = vpop.permute.xlu0 %3533
        %v3535 = vsel %vm264, %v3532, %v3534
        %v3536 = vsel %vm264, %v3534, %v3527
        %v3540 = vsel %vm264, %v3527, %v3532
        %3541 = vrot.lane.b32.xlu0 %v3524, 18
        %v3542 = vpop.permute.xlu0 %3541
        %3544 = vrot.lane.b32.xlu0 %v3522, 18
        %v3545 = vpop.permute.xlu0 %3544
        %3546 = vrot.lane.b32.xlu0 %v3523, 18
        %v3547 = vpop.permute.xlu0 %3546
        %v3548 = vsel %vm278, %v3545, %v3547
        %v3549 = vsel %vm278, %v3547, %v3542
        %v3553 = vsel %vm278, %v3542, %v3545
        %3554 = vrot.lane.b32.xlu0 %v3524, 17
        %v3555 = vpop.permute.xlu0 %3554
        %3557 = vrot.lane.b32.xlu0 %v3522, 17
        %v3558 = vpop.permute.xlu0 %3557
        %3559 = vrot.lane.b32.xlu0 %v3523, 17
        %v3560 = vpop.permute.xlu0 %3559
        %v3561 = vsel %vm292, %v3558, %v3560
        %v3562 = vsel %vm292, %v3560, %v3555
        %v3566 = vsel %vm292, %v3555, %v3558
        %3567 = vrot.lane.b32.xlu0 %v3524, 1
        %v3568 = vpop.permute.xlu0 %3567
        %3570 = vrot.lane.b32.xlu0 %v3522, 1
        %v3571 = vpop.permute.xlu0 %3570
        %3572 = vrot.lane.b32.xlu0 %v3523, 1
        %v3573 = vpop.permute.xlu0 %3572
        %v3574 = vsel %vm306, %v3571, %v3573
        %v3575 = vsel %vm306, %v3573, %v3568
        %v3579 = vsel %vm306, %v3568, %v3571
        %3580 = vrot.lane.b32.xlu0 %v3522, 127
        %v3581 = vpop.permute.xlu0 %3580
        %3582 = vrot.lane.b32.xlu0 %v3523, 127
        %v3583 = vpop.permute.xlu0 %3582
        %3584 = vrot.lane.b32.xlu0 %v3524, 127
        %v3585 = vpop.permute.xlu0 %3584
        %v3586 = vsel %vm319, %v3581, %v3583
        %v3587 = vsel %vm319, %v3583, %v3585
        %v3592 = vsel %vm319, %v3585, %v3581
        %3593 = vrot.lane.b32.xlu0 %v3522, 111
        %v3594 = vpop.permute.xlu0 %3593
        %3595 = vrot.lane.b32.xlu0 %v3523, 111
        %v3596 = vpop.permute.xlu0 %3595
        %3597 = vrot.lane.b32.xlu0 %v3524, 111
        %v3598 = vpop.permute.xlu0 %3597
        %v3599 = vsel %vm333, %v3594, %v3596
        %v3600 = vsel %vm333, %v3596, %v3598
        %v3605 = vsel %vm333, %v3598, %v3594
        %3606 = vrot.lane.b32.xlu0 %v3522, 110
        %v3607 = vpop.permute.xlu0 %3606
        %3608 = vrot.lane.b32.xlu0 %v3523, 110
        %v3609 = vpop.permute.xlu0 %3608
        %3610 = vrot.lane.b32.xlu0 %v3524, 110
        %v3611 = vpop.permute.xlu0 %3610
        %v3612 = vsel %vm347, %v3607, %v3609
        %v3613 = vsel %vm347, %v3609, %v3611
        %v3618 = vsel %vm347, %v3611, %v3607
        %3619 = vrot.lane.b32.xlu0 %v3522, 109
        %v3620 = vpop.permute.xlu0 %3619
        %3621 = vrot.lane.b32.xlu0 %v3523, 109
        %v3622 = vpop.permute.xlu0 %3621
        %3623 = vrot.lane.b32.xlu0 %v3524, 109
        %v3624 = vpop.permute.xlu0 %3623
        %v3625 = vsel %vm361, %v3620, %v3622
        %v3626 = vsel %vm361, %v3622, %v3624
        %v3631 = vsel %vm361, %v3624, %v3620
        %s3632 = scalar_lea.vmem %s2, 96
        %v3633 = vld [vmem:[%s3632] sm:$0xff]
        %s3634 = scalar_lea.vmem %s4, 48
        %v3635 = vld [vmem:[%s3634] sm:$0xff]
        %3637 = vset.pattern.permute.xlu0 0
        %3638 = vperm.xlu0 %3637, %v3635
        %v3639 = vpop.permute.xlu0 %3638
        %v3642 = vsel %vm376, %v3633, 0
        %3644 = vmatprep.subr.mxu0 %v3535
        %3645 = vmatpush1.msra.mxu0 %v3540
        %3646 = vmatprep.subr.mxu0 %v3548
        %3647 = vmatpush1.msra.mxu0 %v3553
        %3648 = vmatprep.subr.mxu0 %v3561
        %3649 = vmatpush1.msra.mxu0 %v3566
        %3650 = vmatprep.subr.mxu0 %v3574
        %3651 = vmatpush1.msra.mxu0 %v3579
        %3652 = vmatprep.subr.mxu0 %v3523
        %3653 = vmatpush1.msra.mxu0 %v3522
        %3654 = vmatprep.subr.mxu0 %v3587
        %3655 = vmatpush1.msra.mxu0 %v3586
        %3656 = vmatprep.subr.mxu0 %v3600
        %3657 = vmatpush1.msra.mxu0 %v3599
        %3658 = vmatprep.subr.mxu0 %v3613
        %3659 = vmatpush1.msra.mxu0 %v3612
        %3660 = vmatprep.subr.mxu0 %v3626
        %3661 = vmatpush1.msra.mxu0 %v3625
        %3662 = vmatprep.subr.mxu0 0.0
        %3663 = vmatpush1.msra.mxu0 0.0
        %3664 = vmatprep.subr.mxu0 0.0
        %3665 = vmatpush1.msra.mxu0 0.0
        %3666 = vmatprep.subr.mxu0 0.0
        %3667 = vmatpush1.msra.mxu0 0.0
        %3668 = vmatprep.subr.mxu0 0.0
        %3669 = vmatpush1.msra.mxu0 0.0
        %3670 = vmatprep.subr.mxu0 0.0
        %3671 = vmatpush1.msra.mxu0 0.0
        %3672 = vmatprep.subr.mxu0 0.0
        %3673 = vmatpush1.msra.mxu0 0.0
        %3674 = vmatprep.subr.mxu0 0.0
        %3675 = vmatpush1.msra.mxu0 0.0
        %3676 = vmatprep.subr.mxu0 0.0
        %3677 = vmatpush1.msra.mxu0 0.0
        %3678 = vmatprep.subr.mxu0 0.0
        %3679 = vmatpush1.msra.mxu0 0.0
        %3680 = vmatprep.subr.mxu0 0.0
        %3681 = vmatpush1.msra.mxu0 0.0
        %3682 = vmatprep.subr.mxu0 0.0
        %3683 = vmatpush1.msra.mxu0 0.0
        %3684 = vmatprep.subr.mxu0 0.0
        %3685 = vmatpush1.msra.mxu0 0.0
        %3686 = vmatprep.subr.mxu0 0.0
        %3687 = vmatpush1.msra.mxu0 0.0
        %3688 = vmatprep.subr.mxu0 0.0
        %3689 = vmatpush1.msra.mxu0 0.0
        %3690 = vmatprep.subr.mxu0 0.0
        %3691 = vmatpush1.msra.mxu0 0.0
        %3692 = vmatprep.subr.mxu0 0.0
        %3693 = vmatpush1.msra.mxu0 0.0
        %3694 = vmatprep.subr.mxu0 0.0
        %3695 = vmatpush1.msra.mxu0 0.0
        %3696 = vmatprep.subr.mxu0 0.0
        %3697 = vmatpush1.msra.mxu0 0.0
        %3698 = vmatprep.subr.mxu0 0.0
        %3699 = vmatpush1.msra.mxu0 0.0
        %3700 = vmatprep.subr.mxu0 0.0
        %3701 = vmatpush1.msra.mxu0 0.0
        %3702 = vmatprep.subr.mxu0 0.0
        %3703 = vmatpush1.msra.mxu0 0.0
        %3704 = vmatprep.subr.mxu0 0.0
        %3705 = vmatpush1.msra.mxu0 0.0
        %3706 = vmatprep.subr.mxu0 0.0
        %3707 = vmatpush1.msra.mxu0 0.0
        %3708 = vmatprep.mubr.f32.mxu0 0.0
        %3709 = vmatmul.mubr.f32.gmra.mrb[0].mxu0 %v3642
        %v3710 = vpop.f32.mrb[0].mxu0
        %v3711 = vadd.f32 %v3639, %v3710
        %v3712 = vpop.f32.mrb[0].mxu0
        %v3713 = vadd.f32 %v3639, %v3712
        %3714 = vdwg.mxu0
        %3715 = vmatprep.subr.mxu0 0.0
        %3716 = vmatpush1.msra.mxu0 %v3536
        %3717 = vmatprep.subr.mxu0 0.0
        %3718 = vmatpush1.msra.mxu0 %v3549
        %3719 = vmatprep.subr.mxu0 0.0
        %3720 = vmatpush1.msra.mxu0 %v3562
        %3721 = vmatprep.subr.mxu0 0.0
        %3722 = vmatpush1.msra.mxu0 %v3575
        %3723 = vmatprep.subr.mxu0 0.0
        %3724 = vmatpush1.msra.mxu0 %v3524
        %3725 = vmatprep.subr.mxu0 0.0
        %3726 = vmatpush1.msra.mxu0 %v3592
        %3727 = vmatprep.subr.mxu0 0.0
        %3728 = vmatpush1.msra.mxu0 %v3605
        %3729 = vmatprep.subr.mxu0 0.0
        %3730 = vmatpush1.msra.mxu0 %v3618
        %3731 = vmatprep.subr.mxu0 0.0
        %3732 = vmatpush1.msra.mxu0 %v3631
        %3733 = vmatprep.subr.mxu0 0.0
        %3734 = vmatpush1.msra.mxu0 0.0
        %3735 = vmatprep.subr.mxu0 0.0
        %3736 = vmatpush1.msra.mxu0 0.0
        %3737 = vmatprep.subr.mxu0 0.0
        %3738 = vmatpush1.msra.mxu0 0.0
        %3739 = vmatprep.subr.mxu0 0.0
        %3740 = vmatpush1.msra.mxu0 0.0
        %3741 = vmatprep.subr.mxu0 0.0
        %3742 = vmatpush1.msra.mxu0 0.0
        %3743 = vmatprep.subr.mxu0 0.0
        %3744 = vmatpush1.msra.mxu0 0.0
        %3745 = vmatprep.subr.mxu0 0.0
        %3746 = vmatpush1.msra.mxu0 0.0
        %3747 = vmatprep.subr.mxu0 0.0
        %3748 = vmatpush1.msra.mxu0 0.0
        %3749 = vmatprep.subr.mxu0 0.0
        %3750 = vmatpush1.msra.mxu0 0.0
        %3751 = vmatprep.subr.mxu0 0.0
        %3752 = vmatpush1.msra.mxu0 0.0
        %3753 = vmatprep.subr.mxu0 0.0
        %3754 = vmatpush1.msra.mxu0 0.0
        %3755 = vmatprep.subr.mxu0 0.0
        %3756 = vmatpush1.msra.mxu0 0.0
        %3757 = vmatprep.subr.mxu0 0.0
        %3758 = vmatpush1.msra.mxu0 0.0
        %3759 = vmatprep.subr.mxu0 0.0
        %3760 = vmatpush1.msra.mxu0 0.0
        %3761 = vmatprep.subr.mxu0 0.0
        %3762 = vmatpush1.msra.mxu0 0.0
        %3763 = vmatprep.subr.mxu0 0.0
        %3764 = vmatpush1.msra.mxu0 0.0
        %3765 = vmatprep.subr.mxu0 0.0
        %3766 = vmatpush1.msra.mxu0 0.0
        %3767 = vmatprep.subr.mxu0 0.0
        %3768 = vmatpush1.msra.mxu0 0.0
        %3769 = vmatprep.subr.mxu0 0.0
        %3770 = vmatpush1.msra.mxu0 0.0
        %3771 = vmatprep.subr.mxu0 0.0
        %3772 = vmatpush1.msra.mxu0 0.0
        %3773 = vmatprep.subr.mxu0 0.0
        %3774 = vmatpush1.msra.mxu0 0.0
        %3775 = vmatprep.subr.mxu0 0.0
        %3776 = vmatpush1.msra.mxu0 0.0
        %3777 = vmatprep.subr.mxu0 0.0
        %3778 = vmatpush1.msra.mxu0 0.0
        %3779 = vmatprep.mubr.f32.mxu0 0.0
        %3780 = vmatmul.mubr.f32.gmra.mrb[0].mxu0 %v3642
        %v3781 = vpop.f32.mrb[0].mxu0
        %v3782 = vadd.f32 %v3639, %v3781
        %v3783 = vpop.f32.mrb[0].mxu0
        %3784 = vdwg.mxu0
        %v3785 = vmax.f32 %v3711, 0.0
        %v3786 = vmax.f32 %v3713, 0.0
        %v3787 = vmax.f32 %v3782, 0.0
        %v3788 = vmul.f32 %v3785, %v528
        %v3789 = vmul.f32 %v3786, %v532
        %v3790 = vmul.f32 %v3787, %v536
        %3792 = vrot.lane.b32.xlu0 %v3790, 19
        %v3793 = vpop.permute.xlu0 %3792
        %3797 = vrot.lane.b32.xlu0 %v3788, 19
        %v3798 = vpop.permute.xlu0 %3797
        %3799 = vrot.lane.b32.xlu0 %v3789, 19
        %v3800 = vpop.permute.xlu0 %3799
        %v3801 = vsel %vm264, %v3798, %v3800
        %v3802 = vsel %vm264, %v3800, %v3793
        %v3806 = vsel %vm264, %v3793, %v3798
        %3807 = vrot.lane.b32.xlu0 %v3790, 18
        %v3808 = vpop.permute.xlu0 %3807
        %3810 = vrot.lane.b32.xlu0 %v3788, 18
        %v3811 = vpop.permute.xlu0 %3810
        %3812 = vrot.lane.b32.xlu0 %v3789, 18
        %v3813 = vpop.permute.xlu0 %3812
        %v3814 = vsel %vm278, %v3811, %v3813
        %v3815 = vsel %vm278, %v3813, %v3808
        %v3819 = vsel %vm278, %v3808, %v3811
        %3820 = vrot.lane.b32.xlu0 %v3790, 17
        %v3821 = vpop.permute.xlu0 %3820
        %3823 = vrot.lane.b32.xlu0 %v3788, 17
        %v3824 = vpop.permute.xlu0 %3823
        %3825 = vrot.lane.b32.xlu0 %v3789, 17
        %v3826 = vpop.permute.xlu0 %3825
        %v3827 = vsel %vm292, %v3824, %v3826
        %v3828 = vsel %vm292, %v3826, %v3821
        %v3832 = vsel %vm292, %v3821, %v3824
        %3833 = vrot.lane.b32.xlu0 %v3790, 1
        %v3834 = vpop.permute.xlu0 %3833
        %3836 = vrot.lane.b32.xlu0 %v3788, 1
        %v3837 = vpop.permute.xlu0 %3836
        %3838 = vrot.lane.b32.xlu0 %v3789, 1
        %v3839 = vpop.permute.xlu0 %3838
        %v3840 = vsel %vm306, %v3837, %v3839
        %v3841 = vsel %vm306, %v3839, %v3834
        %v3845 = vsel %vm306, %v3834, %v3837
        %3846 = vrot.lane.b32.xlu0 %v3788, 127
        %v3847 = vpop.permute.xlu0 %3846
        %3848 = vrot.lane.b32.xlu0 %v3789, 127
        %v3849 = vpop.permute.xlu0 %3848
        %3850 = vrot.lane.b32.xlu0 %v3790, 127
        %v3851 = vpop.permute.xlu0 %3850
        %v3852 = vsel %vm319, %v3847, %v3849
        %v3853 = vsel %vm319, %v3849, %v3851
        %v3858 = vsel %vm319, %v3851, %v3847
        %3859 = vrot.lane.b32.xlu0 %v3788, 111
        %v3860 = vpop.permute.xlu0 %3859
        %3861 = vrot.lane.b32.xlu0 %v3789, 111
        %v3862 = vpop.permute.xlu0 %3861
        %3863 = vrot.lane.b32.xlu0 %v3790, 111
        %v3864 = vpop.permute.xlu0 %3863
        %v3865 = vsel %vm333, %v3860, %v3862
        %v3866 = vsel %vm333, %v3862, %v3864
        %v3871 = vsel %vm333, %v3864, %v3860
        %3872 = vrot.lane.b32.xlu0 %v3788, 110
        %v3873 = vpop.permute.xlu0 %3872
        %3874 = vrot.lane.b32.xlu0 %v3789, 110
        %v3875 = vpop.permute.xlu0 %3874
        %3876 = vrot.lane.b32.xlu0 %v3790, 110
        %v3877 = vpop.permute.xlu0 %3876
        %v3878 = vsel %vm347, %v3873, %v3875
        %v3879 = vsel %vm347, %v3875, %v3877
        %v3884 = vsel %vm347, %v3877, %v3873
        %3885 = vrot.lane.b32.xlu0 %v3788, 109
        %v3886 = vpop.permute.xlu0 %3885
        %3887 = vrot.lane.b32.xlu0 %v3789, 109
        %v3888 = vpop.permute.xlu0 %3887
        %3889 = vrot.lane.b32.xlu0 %v3790, 109
        %v3890 = vpop.permute.xlu0 %3889
        %v3891 = vsel %vm361, %v3886, %v3888
        %v3892 = vsel %vm361, %v3888, %v3890
        %v3897 = vsel %vm361, %v3890, %v3886
        %s3898 = scalar_lea.vmem %s2, 104
        %v3899 = vld [vmem:[%s3898] sm:$0xff]
        %s3900 = scalar_lea.vmem %s2, 112
        %v3901 = vld [vmem:[%s3900] sm:$0xff]
        %v3903 = vsel %vm376, %v3901, 0
        %3905 = vmatprep.subr.mxu0 %v3801
        %3906 = vmatpush1.msra.mxu0 %v3806
        %3907 = vmatprep.subr.mxu0 %v3814
        %3908 = vmatpush1.msra.mxu0 %v3819
        %3909 = vmatprep.subr.mxu0 %v3827
        %3910 = vmatpush1.msra.mxu0 %v3832
        %3911 = vmatprep.subr.mxu0 %v3840
        %3912 = vmatpush1.msra.mxu0 %v3845
        %3913 = vmatprep.subr.mxu0 %v3789
        %3914 = vmatpush1.msra.mxu0 %v3788
        %3915 = vmatprep.subr.mxu0 %v3853
        %3916 = vmatpush1.msra.mxu0 %v3852
        %3917 = vmatprep.subr.mxu0 %v3866
        %3918 = vmatpush1.msra.mxu0 %v3865
        %3919 = vmatprep.subr.mxu0 %v3879
        %3920 = vmatpush1.msra.mxu0 %v3878
        %3921 = vmatprep.subr.mxu0 %v3892
        %3922 = vmatpush1.msra.mxu0 %v3891
        %3923 = vmatprep.subr.mxu0 0.0
        %3924 = vmatpush1.msra.mxu0 0.0
        %3925 = vmatprep.subr.mxu0 0.0
        %3926 = vmatpush1.msra.mxu0 0.0
        %3927 = vmatprep.subr.mxu0 0.0
        %3928 = vmatpush1.msra.mxu0 0.0
        %3929 = vmatprep.subr.mxu0 0.0
        %3930 = vmatpush1.msra.mxu0 0.0
        %3931 = vmatprep.subr.mxu0 0.0
        %3932 = vmatpush1.msra.mxu0 0.0
        %3933 = vmatprep.subr.mxu0 0.0
        %3934 = vmatpush1.msra.mxu0 0.0
        %3935 = vmatprep.subr.mxu0 0.0
        %3936 = vmatpush1.msra.mxu0 0.0
        %3937 = vmatprep.subr.mxu0 0.0
        %3938 = vmatpush1.msra.mxu0 0.0
        %3939 = vmatprep.subr.mxu0 0.0
        %3940 = vmatpush1.msra.mxu0 0.0
        %3941 = vmatprep.subr.mxu0 0.0
        %3942 = vmatpush1.msra.mxu0 0.0
        %3943 = vmatprep.subr.mxu0 0.0
        %3944 = vmatpush1.msra.mxu0 0.0
        %3945 = vmatprep.subr.mxu0 0.0
        %3946 = vmatpush1.msra.mxu0 0.0
        %3947 = vmatprep.subr.mxu0 0.0
        %3948 = vmatpush1.msra.mxu0 0.0
        %3949 = vmatprep.subr.mxu0 0.0
        %3950 = vmatpush1.msra.mxu0 0.0
        %3951 = vmatprep.subr.mxu0 0.0
        %3952 = vmatpush1.msra.mxu0 0.0
        %3953 = vmatprep.subr.mxu0 0.0
        %3954 = vmatpush1.msra.mxu0 0.0
        %3955 = vmatprep.subr.mxu0 0.0
        %3956 = vmatpush1.msra.mxu0 0.0
        %3957 = vmatprep.subr.mxu0 0.0
        %3958 = vmatpush1.msra.mxu0 0.0
        %3959 = vmatprep.subr.mxu0 0.0
        %3960 = vmatpush1.msra.mxu0 0.0
        %3961 = vmatprep.subr.mxu0 0.0
        %3962 = vmatpush1.msra.mxu0 0.0
        %3963 = vmatprep.subr.mxu0 0.0
        %3964 = vmatpush1.msra.mxu0 0.0
        %3965 = vmatprep.subr.mxu0 0.0
        %3966 = vmatpush1.msra.mxu0 0.0
        %3967 = vmatprep.subr.mxu0 0.0
        %3968 = vmatpush1.msra.mxu0 0.0
        %3969 = vmatprep.mubr.f32.mxu0 0.0
        %3970 = vmatmul.mubr.f32.gmra.mrb[0].mxu0 %v3903
        %v3971 = vpop.f32.mrb[0].mxu0
        %v3972 = vadd.f32 0.0, %v3971
        %v3973 = vpop.f32.mrb[0].mxu0
        %v3974 = vadd.f32 0.0, %v3973
        %3975 = vdwg.mxu0
        %3976 = vmatprep.subr.mxu0 0.0
        %3977 = vmatpush1.msra.mxu0 %v3802
        %3978 = vmatprep.subr.mxu0 0.0
        %3979 = vmatpush1.msra.mxu0 %v3815
        %3980 = vmatprep.subr.mxu0 0.0
        %3981 = vmatpush1.msra.mxu0 %v3828
        %3982 = vmatprep.subr.mxu0 0.0
        %3983 = vmatpush1.msra.mxu0 %v3841
        %3984 = vmatprep.subr.mxu0 0.0
        %3985 = vmatpush1.msra.mxu0 %v3790
        %3986 = vmatprep.subr.mxu0 0.0
        %3987 = vmatpush1.msra.mxu0 %v3858
        %3988 = vmatprep.subr.mxu0 0.0
        %3989 = vmatpush1.msra.mxu0 %v3871
        %3990 = vmatprep.subr.mxu0 0.0
        %3991 = vmatpush1.msra.mxu0 %v3884
        %3992 = vmatprep.subr.mxu0 0.0
        %3993 = vmatpush1.msra.mxu0 %v3897
        %3994 = vmatprep.subr.mxu0 0.0
        %3995 = vmatpush1.msra.mxu0 0.0
        %3996 = vmatprep.subr.mxu0 0.0
        %3997 = vmatpush1.msra.mxu0 0.0
        %3998 = vmatprep.subr.mxu0 0.0
        %3999 = vmatpush1.msra.mxu0 0.0
        %4000 = vmatprep.subr.mxu0 0.0
        %4001 = vmatpush1.msra.mxu0 0.0
        %4002 = vmatprep.subr.mxu0 0.0
        %4003 = vmatpush1.msra.mxu0 0.0
        %4004 = vmatprep.subr.mxu0 0.0
        %4005 = vmatpush1.msra.mxu0 0.0
        %4006 = vmatprep.subr.mxu0 0.0
        %4007 = vmatpush1.msra.mxu0 0.0
        %4008 = vmatprep.subr.mxu0 0.0
        %4009 = vmatpush1.msra.mxu0 0.0
        %4010 = vmatprep.subr.mxu0 0.0
        %4011 = vmatpush1.msra.mxu0 0.0
        %4012 = vmatprep.subr.mxu0 0.0
        %4013 = vmatpush1.msra.mxu0 0.0
        %4014 = vmatprep.subr.mxu0 0.0
        %4015 = vmatpush1.msra.mxu0 0.0
        %4016 = vmatprep.subr.mxu0 0.0
        %4017 = vmatpush1.msra.mxu0 0.0
        %4018 = vmatprep.subr.mxu0 0.0
        %4019 = vmatpush1.msra.mxu0 0.0
        %4020 = vmatprep.subr.mxu0 0.0
        %4021 = vmatpush1.msra.mxu0 0.0
        %4022 = vmatprep.subr.mxu0 0.0
        %4023 = vmatpush1.msra.mxu0 0.0
        %4024 = vmatprep.subr.mxu0 0.0
        %4025 = vmatpush1.msra.mxu0 0.0
        %4026 = vmatprep.subr.mxu0 0.0
        %4027 = vmatpush1.msra.mxu0 0.0
        %4028 = vmatprep.subr.mxu0 0.0
        %4029 = vmatpush1.msra.mxu0 0.0
        %4030 = vmatprep.subr.mxu0 0.0
        %4031 = vmatpush1.msra.mxu0 0.0
        %4032 = vmatprep.subr.mxu0 0.0
        %4033 = vmatpush1.msra.mxu0 0.0
        %4034 = vmatprep.subr.mxu0 0.0
        %4035 = vmatpush1.msra.mxu0 0.0
        %4036 = vmatprep.subr.mxu0 0.0
        %4037 = vmatpush1.msra.mxu0 0.0
        %4038 = vmatprep.subr.mxu0 0.0
        %4039 = vmatpush1.msra.mxu0 0.0
        %4040 = vmatprep.mubr.f32.mxu0 0.0
        %4041 = vmatmul.mubr.f32.gmra.mrb[0].mxu0 %v3903
        %v4042 = vpop.f32.mrb[0].mxu0
        %v4043 = vadd.f32 0.0, %v4042
        %v4044 = vpop.f32.mrb[0].mxu0
        %4045 = vdwg.mxu0
        %v4047 = vsel %vm376, %v3899, 0
        %4049 = vmatprep.subr.mxu0 %v3535
        %4050 = vmatpush1.msra.mxu0 %v3540
        %4051 = vmatprep.subr.mxu0 %v3548
        %4052 = vmatpush1.msra.mxu0 %v3553
        %4053 = vmatprep.subr.mxu0 %v3561
        %4054 = vmatpush1.msra.mxu0 %v3566
        %4055 = vmatprep.subr.mxu0 %v3574
        %4056 = vmatpush1.msra.mxu0 %v3579
        %4057 = vmatprep.subr.mxu0 %v3523
        %4058 = vmatpush1.msra.mxu0 %v3522
        %4059 = vmatprep.subr.mxu0 %v3587
        %4060 = vmatpush1.msra.mxu0 %v3586
        %4061 = vmatprep.subr.mxu0 %v3600
        %4062 = vmatpush1.msra.mxu0 %v3599
        %4063 = vmatprep.subr.mxu0 %v3613
        %4064 = vmatpush1.msra.mxu0 %v3612
        %4065 = vmatprep.subr.mxu0 %v3626
        %4066 = vmatpush1.msra.mxu0 %v3625
        %4067 = vmatprep.subr.mxu0 0.0
        %4068 = vmatpush1.msra.mxu0 0.0
        %4069 = vmatprep.subr.mxu0 0.0
        %4070 = vmatpush1.msra.mxu0 0.0
        %4071 = vmatprep.subr.mxu0 0.0
        %4072 = vmatpush1.msra.mxu0 0.0
        %4073 = vmatprep.subr.mxu0 0.0
        %4074 = vmatpush1.msra.mxu0 0.0
        %4075 = vmatprep.subr.mxu0 0.0
        %4076 = vmatpush1.msra.mxu0 0.0
        %4077 = vmatprep.subr.mxu0 0.0
        %4078 = vmatpush1.msra.mxu0 0.0
        %4079 = vmatprep.subr.mxu0 0.0
        %4080 = vmatpush1.msra.mxu0 0.0
        %4081 = vmatprep.subr.mxu0 0.0
        %4082 = vmatpush1.msra.mxu0 0.0
        %4083 = vmatprep.subr.mxu0 0.0
        %4084 = vmatpush1.msra.mxu0 0.0
        %4085 = vmatprep.subr.mxu0 0.0
        %4086 = vmatpush1.msra.mxu0 0.0
        %4087 = vmatprep.subr.mxu0 0.0
        %4088 = vmatpush1.msra.mxu0 0.0
        %4089 = vmatprep.subr.mxu0 0.0
        %4090 = vmatpush1.msra.mxu0 0.0
        %4091 = vmatprep.subr.mxu0 0.0
        %4092 = vmatpush1.msra.mxu0 0.0
        %4093 = vmatprep.subr.mxu0 0.0
        %4094 = vmatpush1.msra.mxu0 0.0
        %4095 = vmatprep.subr.mxu0 0.0
        %4096 = vmatpush1.msra.mxu0 0.0
        %4097 = vmatprep.subr.mxu0 0.0
        %4098 = vmatpush1.msra.mxu0 0.0
        %4099 = vmatprep.subr.mxu0 0.0
        %4100 = vmatpush1.msra.mxu0 0.0
        %4101 = vmatprep.subr.mxu0 0.0
        %4102 = vmatpush1.msra.mxu0 0.0
        %4103 = vmatprep.subr.mxu0 0.0
        %4104 = vmatpush1.msra.mxu0 0.0
        %4105 = vmatprep.subr.mxu0 0.0
        %4106 = vmatpush1.msra.mxu0 0.0
        %4107 = vmatprep.subr.mxu0 0.0
        %4108 = vmatpush1.msra.mxu0 0.0
        %4109 = vmatprep.subr.mxu0 0.0
        %4110 = vmatpush1.msra.mxu0 0.0
        %4111 = vmatprep.subr.mxu0 0.0
        %4112 = vmatpush1.msra.mxu0 0.0
        %4113 = vmatprep.mubr.f32.mxu0 0.0
        %4114 = vmatmul.mubr.f32.gmra.mrb[0].mxu0 %v4047
        %v4115 = vpop.f32.mrb[0].mxu0
        %v4116 = vadd.f32 %v3972, %v4115
        %v4117 = vpop.f32.mrb[0].mxu0
        %v4118 = vadd.f32 %v3974, %v4117
        %4119 = vdwg.mxu0
        %4120 = vmatprep.subr.mxu0 0.0
        %4121 = vmatpush1.msra.mxu0 %v3536
        %4122 = vmatprep.subr.mxu0 0.0
        %4123 = vmatpush1.msra.mxu0 %v3549
        %4124 = vmatprep.subr.mxu0 0.0
        %4125 = vmatpush1.msra.mxu0 %v3562
        %4126 = vmatprep.subr.mxu0 0.0
        %4127 = vmatpush1.msra.mxu0 %v3575
        %4128 = vmatprep.subr.mxu0 0.0
        %4129 = vmatpush1.msra.mxu0 %v3524
        %4130 = vmatprep.subr.mxu0 0.0
        %4131 = vmatpush1.msra.mxu0 %v3592
        %4132 = vmatprep.subr.mxu0 0.0
        %4133 = vmatpush1.msra.mxu0 %v3605
        %4134 = vmatprep.subr.mxu0 0.0
        %4135 = vmatpush1.msra.mxu0 %v3618
        %4136 = vmatprep.subr.mxu0 0.0
        %4137 = vmatpush1.msra.mxu0 %v3631
        %4138 = vmatprep.subr.mxu0 0.0
        %4139 = vmatpush1.msra.mxu0 0.0
        %4140 = vmatprep.subr.mxu0 0.0
        %4141 = vmatpush1.msra.mxu0 0.0
        %4142 = vmatprep.subr.mxu0 0.0
        %4143 = vmatpush1.msra.mxu0 0.0
        %4144 = vmatprep.subr.mxu0 0.0
        %4145 = vmatpush1.msra.mxu0 0.0
        %4146 = vmatprep.subr.mxu0 0.0
        %4147 = vmatpush1.msra.mxu0 0.0
        %4148 = vmatprep.subr.mxu0 0.0
        %4149 = vmatpush1.msra.mxu0 0.0
        %4150 = vmatprep.subr.mxu0 0.0
        %4151 = vmatpush1.msra.mxu0 0.0
        %4152 = vmatprep.subr.mxu0 0.0
        %4153 = vmatpush1.msra.mxu0 0.0
        %4154 = vmatprep.subr.mxu0 0.0
        %4155 = vmatpush1.msra.mxu0 0.0
        %4156 = vmatprep.subr.mxu0 0.0
        %4157 = vmatpush1.msra.mxu0 0.0
        %4158 = vmatprep.subr.mxu0 0.0
        %4159 = vmatpush1.msra.mxu0 0.0
        %4160 = vmatprep.subr.mxu0 0.0
        %4161 = vmatpush1.msra.mxu0 0.0
        %4162 = vmatprep.subr.mxu0 0.0
        %4163 = vmatpush1.msra.mxu0 0.0
        %4164 = vmatprep.subr.mxu0 0.0
        %4165 = vmatpush1.msra.mxu0 0.0
        %4166 = vmatprep.subr.mxu0 0.0
        %4167 = vmatpush1.msra.mxu0 0.0
        %4168 = vmatprep.subr.mxu0 0.0
        %4169 = vmatpush1.msra.mxu0 0.0
        %4170 = vmatprep.subr.mxu0 0.0
        %4171 = vmatpush1.msra.mxu0 0.0
        %4172 = vmatprep.subr.mxu0 0.0
        %4173 = vmatpush1.msra.mxu0 0.0
        %4174 = vmatprep.subr.mxu0 0.0
        %4175 = vmatpush1.msra.mxu0 0.0
        %4176 = vmatprep.subr.mxu0 0.0
        %4177 = vmatpush1.msra.mxu0 0.0
        %4178 = vmatprep.subr.mxu0 0.0
        %4179 = vmatpush1.msra.mxu0 0.0
        %4180 = vmatprep.subr.mxu0 0.0
        %4181 = vmatpush1.msra.mxu0 0.0
        %4182 = vmatprep.subr.mxu0 0.0
        %4183 = vmatpush1.msra.mxu0 0.0
        %4184 = vmatprep.mubr.f32.mxu0 0.0
        %4185 = vmatmul.mubr.f32.gmra.mrb[0].mxu0 %v4047
        %v4186 = vpop.f32.mrb[0].mxu0
        %v4187 = vadd.f32 %v4043, %v4186
        %v4188 = vpop.f32.mrb[0].mxu0
        %4189 = vdwg.mxu0
        %s4190 = scalar_lea.vmem %s4, 56
        %v4191 = vld [vmem:[%s4190] sm:$0xff]
        %4193 = vset.pattern.permute.xlu0 0
        %4194 = vperm.xlu0 %4193, %v4191
        %v4195 = vpop.permute.xlu0 %4194
        %v4197 = vadd.f32 %v4116, %v4195
        %v4198 = vadd.f32 %v4118, %v4195
        %v4199 = vadd.f32 %v4187, %v4195
        %v4200 = vmax.f32 %v4197, 0.0
        %v4201 = vmax.f32 %v4198, 0.0
        %v4202 = vmax.f32 %v4199, 0.0
        %v4203 = vmul.f32 %v4200, %v528
        %v4204 = vmul.f32 %v4201, %v532
        %v4205 = vmul.f32 %v4202, %v536
        %4207 = vrot.lane.b32.xlu0 %v4205, 19
        %v4208 = vpop.permute.xlu0 %4207
        %4212 = vrot.lane.b32.xlu0 %v4203, 19
        %v4213 = vpop.permute.xlu0 %4212
        %4214 = vrot.lane.b32.xlu0 %v4204, 19
        %v4215 = vpop.permute.xlu0 %4214
        %v4216 = vsel %vm264, %v4213, %v4215
        %v4217 = vsel %vm264, %v4215, %v4208
        %v4221 = vsel %vm264, %v4208, %v4213
        %4222 = vrot.lane.b32.xlu0 %v4205, 18
        %v4223 = vpop.permute.xlu0 %4222
        %4225 = vrot.lane.b32.xlu0 %v4203, 18
        %v4226 = vpop.permute.xlu0 %4225
        %4227 = vrot.lane.b32.xlu0 %v4204, 18
        %v4228 = vpop.permute.xlu0 %4227
        %v4229 = vsel %vm278, %v4226, %v4228
        %v4230 = vsel %vm278, %v4228, %v4223
        %v4234 = vsel %vm278, %v4223, %v4226
        %4235 = vrot.lane.b32.xlu0 %v4205, 17
        %v4236 = vpop.permute.xlu0 %4235
        %4238 = vrot.lane.b32.xlu0 %v4203, 17
        %v4239 = vpop.permute.xlu0 %4238
        %4240 = vrot.lane.b32.xlu0 %v4204, 17
        %v4241 = vpop.permute.xlu0 %4240
        %v4242 = vsel %vm292, %v4239, %v4241
        %v4243 = vsel %vm292, %v4241, %v4236
        %v4247 = vsel %vm292, %v4236, %v4239
        %4248 = vrot.lane.b32.xlu0 %v4205, 1
        %v4249 = vpop.permute.xlu0 %4248
        %4251 = vrot.lane.b32.xlu0 %v4203, 1
        %v4252 = vpop.permute.xlu0 %4251
        %4253 = vrot.lane.b32.xlu0 %v4204, 1
        %v4254 = vpop.permute.xlu0 %4253
        %v4255 = vsel %vm306, %v4252, %v4254
        %v4256 = vsel %vm306, %v4254, %v4249
        %v4260 = vsel %vm306, %v4249, %v4252
        %4261 = vrot.lane.b32.xlu0 %v4203, 127
        %v4262 = vpop.permute.xlu0 %4261
        %4263 = vrot.lane.b32.xlu0 %v4204, 127
        %v4264 = vpop.permute.xlu0 %4263
        %4265 = vrot.lane.b32.xlu0 %v4205, 127
        %v4266 = vpop.permute.xlu0 %4265
        %v4267 = vsel %vm319, %v4262, %v4264
        %v4268 = vsel %vm319, %v4264, %v4266
        %v4273 = vsel %vm319, %v4266, %v4262
        %4274 = vrot.lane.b32.xlu0 %v4203, 111
        %v4275 = vpop.permute.xlu0 %4274
        %4276 = vrot.lane.b32.xlu0 %v4204, 111
        %v4277 = vpop.permute.xlu0 %4276
        %4278 = vrot.lane.b32.xlu0 %v4205, 111
        %v4279 = vpop.permute.xlu0 %4278
        %v4280 = vsel %vm333, %v4275, %v4277
        %v4281 = vsel %vm333, %v4277, %v4279
        %v4286 = vsel %vm333, %v4279, %v4275
        %4287 = vrot.lane.b32.xlu0 %v4203, 110
        %v4288 = vpop.permute.xlu0 %4287
        %4289 = vrot.lane.b32.xlu0 %v4204, 110
        %v4290 = vpop.permute.xlu0 %4289
        %4291 = vrot.lane.b32.xlu0 %v4205, 110
        %v4292 = vpop.permute.xlu0 %4291
        %v4293 = vsel %vm347, %v4288, %v4290
        %v4294 = vsel %vm347, %v4290, %v4292
        %v4299 = vsel %vm347, %v4292, %v4288
        %4300 = vrot.lane.b32.xlu0 %v4203, 109
        %v4301 = vpop.permute.xlu0 %4300
        %4302 = vrot.lane.b32.xlu0 %v4204, 109
        %v4303 = vpop.permute.xlu0 %4302
        %4304 = vrot.lane.b32.xlu0 %v4205, 109
        %v4305 = vpop.permute.xlu0 %4304
        %v4306 = vsel %vm361, %v4301, %v4303
        %v4307 = vsel %vm361, %v4303, %v4305
        %v4312 = vsel %vm361, %v4305, %v4301
        %s4313 = scalar_lea.vmem %s2, 120
        %v4314 = vld [vmem:[%s4313] sm:$0xff]
        %s4315 = scalar_lea.vmem %s2, 128
        %v4316 = vld [vmem:[%s4315] sm:$0xff]
        %v4318 = vsel %vm376, %v4316, 0
        %4320 = vmatprep.subr.mxu0 %v3801
        %4321 = vmatpush1.msra.mxu0 %v3806
        %4322 = vmatprep.subr.mxu0 %v3814
        %4323 = vmatpush1.msra.mxu0 %v3819
        %4324 = vmatprep.subr.mxu0 %v3827
        %4325 = vmatpush1.msra.mxu0 %v3832
        %4326 = vmatprep.subr.mxu0 %v3840
        %4327 = vmatpush1.msra.mxu0 %v3845
        %4328 = vmatprep.subr.mxu0 %v3789
        %4329 = vmatpush1.msra.mxu0 %v3788
        %4330 = vmatprep.subr.mxu0 %v3853
        %4331 = vmatpush1.msra.mxu0 %v3852
        %4332 = vmatprep.subr.mxu0 %v3866
        %4333 = vmatpush1.msra.mxu0 %v3865
        %4334 = vmatprep.subr.mxu0 %v3879
        %4335 = vmatpush1.msra.mxu0 %v3878
        %4336 = vmatprep.subr.mxu0 %v3892
        %4337 = vmatpush1.msra.mxu0 %v3891
        %4338 = vmatprep.subr.mxu0 0.0
        %4339 = vmatpush1.msra.mxu0 0.0
        %4340 = vmatprep.subr.mxu0 0.0
        %4341 = vmatpush1.msra.mxu0 0.0
        %4342 = vmatprep.subr.mxu0 0.0
        %4343 = vmatpush1.msra.mxu0 0.0
        %4344 = vmatprep.subr.mxu0 0.0
        %4345 = vmatpush1.msra.mxu0 0.0
        %4346 = vmatprep.subr.mxu0 0.0
        %4347 = vmatpush1.msra.mxu0 0.0
        %4348 = vmatprep.subr.mxu0 0.0
        %4349 = vmatpush1.msra.mxu0 0.0
        %4350 = vmatprep.subr.mxu0 0.0
        %4351 = vmatpush1.msra.mxu0 0.0
        %4352 = vmatprep.subr.mxu0 0.0
        %4353 = vmatpush1.msra.mxu0 0.0
        %4354 = vmatprep.subr.mxu0 0.0
        %4355 = vmatpush1.msra.mxu0 0.0
        %4356 = vmatprep.subr.mxu0 0.0
        %4357 = vmatpush1.msra.mxu0 0.0
        %4358 = vmatprep.subr.mxu0 0.0
        %4359 = vmatpush1.msra.mxu0 0.0
        %4360 = vmatprep.subr.mxu0 0.0
        %4361 = vmatpush1.msra.mxu0 0.0
        %4362 = vmatprep.subr.mxu0 0.0
        %4363 = vmatpush1.msra.mxu0 0.0
        %4364 = vmatprep.subr.mxu0 0.0
        %4365 = vmatpush1.msra.mxu0 0.0
        %4366 = vmatprep.subr.mxu0 0.0
        %4367 = vmatpush1.msra.mxu0 0.0
        %4368 = vmatprep.subr.mxu0 0.0
        %4369 = vmatpush1.msra.mxu0 0.0
        %4370 = vmatprep.subr.mxu0 0.0
        %4371 = vmatpush1.msra.mxu0 0.0
        %4372 = vmatprep.subr.mxu0 0.0
        %4373 = vmatpush1.msra.mxu0 0.0
        %4374 = vmatprep.subr.mxu0 0.0
        %4375 = vmatpush1.msra.mxu0 0.0
        %4376 = vmatprep.subr.mxu0 0.0
        %4377 = vmatpush1.msra.mxu0 0.0
        %4378 = vmatprep.subr.mxu0 0.0
        %4379 = vmatpush1.msra.mxu0 0.0
        %4380 = vmatprep.subr.mxu0 0.0
        %4381 = vmatpush1.msra.mxu0 0.0
        %4382 = vmatprep.subr.mxu0 0.0
        %4383 = vmatpush1.msra.mxu0 0.0
        %4384 = vmatprep.mubr.f32.mxu0 0.0
        %4385 = vmatmul.mubr.f32.gmra.mrb[0].mxu0 %v4318
        %v4386 = vpop.f32.mrb[0].mxu0
        %v4387 = vadd.f32 0.0, %v4386
        %v4388 = vpop.f32.mrb[0].mxu0
        %v4389 = vadd.f32 0.0, %v4388
        %4390 = vdwg.mxu0
        %4391 = vmatprep.subr.mxu0 0.0
        %4392 = vmatpush1.msra.mxu0 %v3802
        %4393 = vmatprep.subr.mxu0 0.0
        %4394 = vmatpush1.msra.mxu0 %v3815
        %4395 = vmatprep.subr.mxu0 0.0
        %4396 = vmatpush1.msra.mxu0 %v3828
        %4397 = vmatprep.subr.mxu0 0.0
        %4398 = vmatpush1.msra.mxu0 %v3841
        %4399 = vmatprep.subr.mxu0 0.0
        %4400 = vmatpush1.msra.mxu0 %v3790
        %4401 = vmatprep.subr.mxu0 0.0
        %4402 = vmatpush1.msra.mxu0 %v3858
        %4403 = vmatprep.subr.mxu0 0.0
        %4404 = vmatpush1.msra.mxu0 %v3871
        %4405 = vmatprep.subr.mxu0 0.0
        %4406 = vmatpush1.msra.mxu0 %v3884
        %4407 = vmatprep.subr.mxu0 0.0
        %4408 = vmatpush1.msra.mxu0 %v3897
        %4409 = vmatprep.subr.mxu0 0.0
        %4410 = vmatpush1.msra.mxu0 0.0
        %4411 = vmatprep.subr.mxu0 0.0
        %4412 = vmatpush1.msra.mxu0 0.0
        %4413 = vmatprep.subr.mxu0 0.0
        %4414 = vmatpush1.msra.mxu0 0.0
        %4415 = vmatprep.subr.mxu0 0.0
        %4416 = vmatpush1.msra.mxu0 0.0
        %4417 = vmatprep.subr.mxu0 0.0
        %4418 = vmatpush1.msra.mxu0 0.0
        %4419 = vmatprep.subr.mxu0 0.0
        %4420 = vmatpush1.msra.mxu0 0.0
        %4421 = vmatprep.subr.mxu0 0.0
        %4422 = vmatpush1.msra.mxu0 0.0
        %4423 = vmatprep.subr.mxu0 0.0
        %4424 = vmatpush1.msra.mxu0 0.0
        %4425 = vmatprep.subr.mxu0 0.0
        %4426 = vmatpush1.msra.mxu0 0.0
        %4427 = vmatprep.subr.mxu0 0.0
        %4428 = vmatpush1.msra.mxu0 0.0
        %4429 = vmatprep.subr.mxu0 0.0
        %4430 = vmatpush1.msra.mxu0 0.0
        %4431 = vmatprep.subr.mxu0 0.0
        %4432 = vmatpush1.msra.mxu0 0.0
        %4433 = vmatprep.subr.mxu0 0.0
        %4434 = vmatpush1.msra.mxu0 0.0
        %4435 = vmatprep.subr.mxu0 0.0
        %4436 = vmatpush1.msra.mxu0 0.0
        %4437 = vmatprep.subr.mxu0 0.0
        %4438 = vmatpush1.msra.mxu0 0.0
        %4439 = vmatprep.subr.mxu0 0.0
        %4440 = vmatpush1.msra.mxu0 0.0
        %4441 = vmatprep.subr.mxu0 0.0
        %4442 = vmatpush1.msra.mxu0 0.0
        %4443 = vmatprep.subr.mxu0 0.0
        %4444 = vmatpush1.msra.mxu0 0.0
        %4445 = vmatprep.subr.mxu0 0.0
        %4446 = vmatpush1.msra.mxu0 0.0
        %4447 = vmatprep.subr.mxu0 0.0
        %4448 = vmatpush1.msra.mxu0 0.0
        %4449 = vmatprep.subr.mxu0 0.0
        %4450 = vmatpush1.msra.mxu0 0.0
        %4451 = vmatprep.subr.mxu0 0.0
        %4452 = vmatpush1.msra.mxu0 0.0
        %4453 = vmatprep.subr.mxu0 0.0
        %4454 = vmatpush1.msra.mxu0 0.0
        %4455 = vmatprep.mubr.f32.mxu0 0.0
        %4456 = vmatmul.mubr.f32.gmra.mrb[0].mxu0 %v4318
        %v4457 = vpop.f32.mrb[0].mxu0
        %v4458 = vadd.f32 0.0, %v4457
        %v4459 = vpop.f32.mrb[0].mxu0
        %4460 = vdwg.mxu0
        %v4462 = vsel %vm376, %v4314, 0
        %4464 = vmatprep.subr.mxu0 %v3535
        %4465 = vmatpush1.msra.mxu0 %v3540
        %4466 = vmatprep.subr.mxu0 %v3548
        %4467 = vmatpush1.msra.mxu0 %v3553
        %4468 = vmatprep.subr.mxu0 %v3561
        %4469 = vmatpush1.msra.mxu0 %v3566
        %4470 = vmatprep.subr.mxu0 %v3574
        %4471 = vmatpush1.msra.mxu0 %v3579
        %4472 = vmatprep.subr.mxu0 %v3523
        %4473 = vmatpush1.msra.mxu0 %v3522
        %4474 = vmatprep.subr.mxu0 %v3587
        %4475 = vmatpush1.msra.mxu0 %v3586
        %4476 = vmatprep.subr.mxu0 %v3600
        %4477 = vmatpush1.msra.mxu0 %v3599
        %4478 = vmatprep.subr.mxu0 %v3613
        %4479 = vmatpush1.msra.mxu0 %v3612
        %4480 = vmatprep.subr.mxu0 %v3626
        %4481 = vmatpush1.msra.mxu0 %v3625
        %4482 = vmatprep.subr.mxu0 0.0
        %4483 = vmatpush1.msra.mxu0 0.0
        %4484 = vmatprep.subr.mxu0 0.0
        %4485 = vmatpush1.msra.mxu0 0.0
        %4486 = vmatprep.subr.mxu0 0.0
        %4487 = vmatpush1.msra.mxu0 0.0
        %4488 = vmatprep.subr.mxu0 0.0
        %4489 = vmatpush1.msra.mxu0 0.0
        %4490 = vmatprep.subr.mxu0 0.0
        %4491 = vmatpush1.msra.mxu0 0.0
        %4492 = vmatprep.subr.mxu0 0.0
        %4493 = vmatpush1.msra.mxu0 0.0
        %4494 = vmatprep.subr.mxu0 0.0
        %4495 = vmatpush1.msra.mxu0 0.0
        %4496 = vmatprep.subr.mxu0 0.0
        %4497 = vmatpush1.msra.mxu0 0.0
        %4498 = vmatprep.subr.mxu0 0.0
        %4499 = vmatpush1.msra.mxu0 0.0
        %4500 = vmatprep.subr.mxu0 0.0
        %4501 = vmatpush1.msra.mxu0 0.0
        %4502 = vmatprep.subr.mxu0 0.0
        %4503 = vmatpush1.msra.mxu0 0.0
        %4504 = vmatprep.subr.mxu0 0.0
        %4505 = vmatpush1.msra.mxu0 0.0
        %4506 = vmatprep.subr.mxu0 0.0
        %4507 = vmatpush1.msra.mxu0 0.0
        %4508 = vmatprep.subr.mxu0 0.0
        %4509 = vmatpush1.msra.mxu0 0.0
        %4510 = vmatprep.subr.mxu0 0.0
        %4511 = vmatpush1.msra.mxu0 0.0
        %4512 = vmatprep.subr.mxu0 0.0
        %4513 = vmatpush1.msra.mxu0 0.0
        %4514 = vmatprep.subr.mxu0 0.0
        %4515 = vmatpush1.msra.mxu0 0.0
        %4516 = vmatprep.subr.mxu0 0.0
        %4517 = vmatpush1.msra.mxu0 0.0
        %4518 = vmatprep.subr.mxu0 0.0
        %4519 = vmatpush1.msra.mxu0 0.0
        %4520 = vmatprep.subr.mxu0 0.0
        %4521 = vmatpush1.msra.mxu0 0.0
        %4522 = vmatprep.subr.mxu0 0.0
        %4523 = vmatpush1.msra.mxu0 0.0
        %4524 = vmatprep.subr.mxu0 0.0
        %4525 = vmatpush1.msra.mxu0 0.0
        %4526 = vmatprep.subr.mxu0 0.0
        %4527 = vmatpush1.msra.mxu0 0.0
        %4528 = vmatprep.mubr.f32.mxu0 0.0
        %4529 = vmatmul.mubr.f32.gmra.mrb[0].mxu0 %v4462
        %v4530 = vpop.f32.mrb[0].mxu0
        %v4531 = vadd.f32 %v4387, %v4530
        %v4532 = vpop.f32.mrb[0].mxu0
        %v4533 = vadd.f32 %v4389, %v4532
        %4534 = vdwg.mxu0
        %4535 = vmatprep.subr.mxu0 0.0
        %4536 = vmatpush1.msra.mxu0 %v3536
        %4537 = vmatprep.subr.mxu0 0.0
        %4538 = vmatpush1.msra.mxu0 %v3549
        %4539 = vmatprep.subr.mxu0 0.0
        %4540 = vmatpush1.msra.mxu0 %v3562
        %4541 = vmatprep.subr.mxu0 0.0
        %4542 = vmatpush1.msra.mxu0 %v3575
        %4543 = vmatprep.subr.mxu0 0.0
        %4544 = vmatpush1.msra.mxu0 %v3524
        %4545 = vmatprep.subr.mxu0 0.0
        %4546 = vmatpush1.msra.mxu0 %v3592
        %4547 = vmatprep.subr.mxu0 0.0
        %4548 = vmatpush1.msra.mxu0 %v3605
        %4549 = vmatprep.subr.mxu0 0.0
        %4550 = vmatpush1.msra.mxu0 %v3618
        %4551 = vmatprep.subr.mxu0 0.0
        %4552 = vmatpush1.msra.mxu0 %v3631
        %4553 = vmatprep.subr.mxu0 0.0
        %4554 = vmatpush1.msra.mxu0 0.0
        %4555 = vmatprep.subr.mxu0 0.0
        %4556 = vmatpush1.msra.mxu0 0.0
        %4557 = vmatprep.subr.mxu0 0.0
        %4558 = vmatpush1.msra.mxu0 0.0
        %4559 = vmatprep.subr.mxu0 0.0
        %4560 = vmatpush1.msra.mxu0 0.0
        %4561 = vmatprep.subr.mxu0 0.0
        %4562 = vmatpush1.msra.mxu0 0.0
        %4563 = vmatprep.subr.mxu0 0.0
        %4564 = vmatpush1.msra.mxu0 0.0
        %4565 = vmatprep.subr.mxu0 0.0
        %4566 = vmatpush1.msra.mxu0 0.0
        %4567 = vmatprep.subr.mxu0 0.0
        %4568 = vmatpush1.msra.mxu0 0.0
        %4569 = vmatprep.subr.mxu0 0.0
        %4570 = vmatpush1.msra.mxu0 0.0
        %4571 = vmatprep.subr.mxu0 0.0
        %4572 = vmatpush1.msra.mxu0 0.0
        %4573 = vmatprep.subr.mxu0 0.0
        %4574 = vmatpush1.msra.mxu0 0.0
        %4575 = vmatprep.subr.mxu0 0.0
        %4576 = vmatpush1.msra.mxu0 0.0
        %4577 = vmatprep.subr.mxu0 0.0
        %4578 = vmatpush1.msra.mxu0 0.0
        %4579 = vmatprep.subr.mxu0 0.0
        %4580 = vmatpush1.msra.mxu0 0.0
        %4581 = vmatprep.subr.mxu0 0.0
        %4582 = vmatpush1.msra.mxu0 0.0
        %4583 = vmatprep.subr.mxu0 0.0
        %4584 = vmatpush1.msra.mxu0 0.0
        %4585 = vmatprep.subr.mxu0 0.0
        %4586 = vmatpush1.msra.mxu0 0.0
        %4587 = vmatprep.subr.mxu0 0.0
        %4588 = vmatpush1.msra.mxu0 0.0
        %4589 = vmatprep.subr.mxu0 0.0
        %4590 = vmatpush1.msra.mxu0 0.0
        %4591 = vmatprep.subr.mxu0 0.0
        %4592 = vmatpush1.msra.mxu0 0.0
        %4593 = vmatprep.subr.mxu0 0.0
        %4594 = vmatpush1.msra.mxu0 0.0
        %4595 = vmatprep.subr.mxu0 0.0
        %4596 = vmatpush1.msra.mxu0 0.0
        %4597 = vmatprep.subr.mxu0 0.0
        %4598 = vmatpush1.msra.mxu0 0.0
        %4599 = vmatprep.mubr.f32.mxu0 0.0
        %4600 = vmatmul.mubr.f32.gmra.mrb[0].mxu0 %v4462
        %v4601 = vpop.f32.mrb[0].mxu0
        %v4602 = vadd.f32 %v4458, %v4601
        %v4603 = vpop.f32.mrb[0].mxu0
        %4604 = vdwg.mxu0
        %s4605 = scalar_lea.vmem %s2, 136
        %v4606 = vld [vmem:[%s4605] sm:$0xff]
        %v4608 = vsel %vm376, %v4606, 0
        %4610 = vmatprep.subr.mxu0 %v4216
        %4611 = vmatpush1.msra.mxu0 %v4221
        %4612 = vmatprep.subr.mxu0 %v4229
        %4613 = vmatpush1.msra.mxu0 %v4234
        %4614 = vmatprep.subr.mxu0 %v4242
        %4615 = vmatpush1.msra.mxu0 %v4247
        %4616 = vmatprep.subr.mxu0 %v4255
        %4617 = vmatpush1.msra.mxu0 %v4260
        %4618 = vmatprep.subr.mxu0 %v4204
        %4619 = vmatpush1.msra.mxu0 %v4203
        %4620 = vmatprep.subr.mxu0 %v4268
        %4621 = vmatpush1.msra.mxu0 %v4267
        %4622 = vmatprep.subr.mxu0 %v4281
        %4623 = vmatpush1.msra.mxu0 %v4280
        %4624 = vmatprep.subr.mxu0 %v4294
        %4625 = vmatpush1.msra.mxu0 %v4293
        %4626 = vmatprep.subr.mxu0 %v4307
        %4627 = vmatpush1.msra.mxu0 %v4306
        %4628 = vmatprep.subr.mxu0 0.0
        %4629 = vmatpush1.msra.mxu0 0.0
        %4630 = vmatprep.subr.mxu0 0.0
        %4631 = vmatpush1.msra.mxu0 0.0
        %4632 = vmatprep.subr.mxu0 0.0
        %4633 = vmatpush1.msra.mxu0 0.0
        %4634 = vmatprep.subr.mxu0 0.0
        %4635 = vmatpush1.msra.mxu0 0.0
        %4636 = vmatprep.subr.mxu0 0.0
        %4637 = vmatpush1.msra.mxu0 0.0
        %4638 = vmatprep.subr.mxu0 0.0
        %4639 = vmatpush1.msra.mxu0 0.0
        %4640 = vmatprep.subr.mxu0 0.0
        %4641 = vmatpush1.msra.mxu0 0.0
        %4642 = vmatprep.subr.mxu0 0.0
        %4643 = vmatpush1.msra.mxu0 0.0
        %4644 = vmatprep.subr.mxu0 0.0
        %4645 = vmatpush1.msra.mxu0 0.0
        %4646 = vmatprep.subr.mxu0 0.0
        %4647 = vmatpush1.msra.mxu0 0.0
        %4648 = vmatprep.subr.mxu0 0.0
        %4649 = vmatpush1.msra.mxu0 0.0
        %4650 = vmatprep.subr.mxu0 0.0
        %4651 = vmatpush1.msra.mxu0 0.0
        %4652 = vmatprep.subr.mxu0 0.0
        %4653 = vmatpush1.msra.mxu0 0.0
        %4654 = vmatprep.subr.mxu0 0.0
        %4655 = vmatpush1.msra.mxu0 0.0
        %4656 = vmatprep.subr.mxu0 0.0
        %4657 = vmatpush1.msra.mxu0 0.0
        %4658 = vmatprep.subr.mxu0 0.0
        %4659 = vmatpush1.msra.mxu0 0.0
        %4660 = vmatprep.subr.mxu0 0.0
        %4661 = vmatpush1.msra.mxu0 0.0
        %4662 = vmatprep.subr.mxu0 0.0
        %4663 = vmatpush1.msra.mxu0 0.0
        %4664 = vmatprep.subr.mxu0 0.0
        %4665 = vmatpush1.msra.mxu0 0.0
        %4666 = vmatprep.subr.mxu0 0.0
        %4667 = vmatpush1.msra.mxu0 0.0
        %4668 = vmatprep.subr.mxu0 0.0
        %4669 = vmatpush1.msra.mxu0 0.0
        %4670 = vmatprep.subr.mxu0 0.0
        %4671 = vmatpush1.msra.mxu0 0.0
        %4672 = vmatprep.subr.mxu0 0.0
        %4673 = vmatpush1.msra.mxu0 0.0
        %4674 = vmatprep.mubr.f32.mxu0 0.0
        %4675 = vmatmul.mubr.f32.gmra.mrb[0].mxu0 %v4608
        %v4676 = vpop.f32.mrb[0].mxu0
        %v4677 = vadd.f32 0.0, %v4676
        %v4678 = vpop.f32.mrb[0].mxu0
        %v4679 = vadd.f32 0.0, %v4678
        %4680 = vdwg.mxu0
        %4681 = vmatprep.subr.mxu0 0.0
        %4682 = vmatpush1.msra.mxu0 %v4217
        %4683 = vmatprep.subr.mxu0 0.0
        %4684 = vmatpush1.msra.mxu0 %v4230
        %4685 = vmatprep.subr.mxu0 0.0
        %4686 = vmatpush1.msra.mxu0 %v4243
        %4687 = vmatprep.subr.mxu0 0.0
        %4688 = vmatpush1.msra.mxu0 %v4256
        %4689 = vmatprep.subr.mxu0 0.0
        %4690 = vmatpush1.msra.mxu0 %v4205
        %4691 = vmatprep.subr.mxu0 0.0
        %4692 = vmatpush1.msra.mxu0 %v4273
        %4693 = vmatprep.subr.mxu0 0.0
        %4694 = vmatpush1.msra.mxu0 %v4286
        %4695 = vmatprep.subr.mxu0 0.0
        %4696 = vmatpush1.msra.mxu0 %v4299
        %4697 = vmatprep.subr.mxu0 0.0
        %4698 = vmatpush1.msra.mxu0 %v4312
        %4699 = vmatprep.subr.mxu0 0.0
        %4700 = vmatpush1.msra.mxu0 0.0
        %4701 = vmatprep.subr.mxu0 0.0
        %4702 = vmatpush1.msra.mxu0 0.0
        %4703 = vmatprep.subr.mxu0 0.0
        %4704 = vmatpush1.msra.mxu0 0.0
        %4705 = vmatprep.subr.mxu0 0.0
        %4706 = vmatpush1.msra.mxu0 0.0
        %4707 = vmatprep.subr.mxu0 0.0
        %4708 = vmatpush1.msra.mxu0 0.0
        %4709 = vmatprep.subr.mxu0 0.0
        %4710 = vmatpush1.msra.mxu0 0.0
        %4711 = vmatprep.subr.mxu0 0.0
        %4712 = vmatpush1.msra.mxu0 0.0
        %4713 = vmatprep.subr.mxu0 0.0
        %4714 = vmatpush1.msra.mxu0 0.0
        %4715 = vmatprep.subr.mxu0 0.0
        %4716 = vmatpush1.msra.mxu0 0.0
        %4717 = vmatprep.subr.mxu0 0.0
        %4718 = vmatpush1.msra.mxu0 0.0
        %4719 = vmatprep.subr.mxu0 0.0
        %4720 = vmatpush1.msra.mxu0 0.0
        %4721 = vmatprep.subr.mxu0 0.0
        %4722 = vmatpush1.msra.mxu0 0.0
        %4723 = vmatprep.subr.mxu0 0.0
        %4724 = vmatpush1.msra.mxu0 0.0
        %4725 = vmatprep.subr.mxu0 0.0
        %4726 = vmatpush1.msra.mxu0 0.0
        %4727 = vmatprep.subr.mxu0 0.0
        %4728 = vmatpush1.msra.mxu0 0.0
        %4729 = vmatprep.subr.mxu0 0.0
        %4730 = vmatpush1.msra.mxu0 0.0
        %4731 = vmatprep.subr.mxu0 0.0
        %4732 = vmatpush1.msra.mxu0 0.0
        %4733 = vmatprep.subr.mxu0 0.0
        %4734 = vmatpush1.msra.mxu0 0.0
        %4735 = vmatprep.subr.mxu0 0.0
        %4736 = vmatpush1.msra.mxu0 0.0
        %4737 = vmatprep.subr.mxu0 0.0
        %4738 = vmatpush1.msra.mxu0 0.0
        %4739 = vmatprep.subr.mxu0 0.0
        %4740 = vmatpush1.msra.mxu0 0.0
        %4741 = vmatprep.subr.mxu0 0.0
        %4742 = vmatpush1.msra.mxu0 0.0
        %4743 = vmatprep.subr.mxu0 0.0
        %4744 = vmatpush1.msra.mxu0 0.0
        %4745 = vmatprep.mubr.f32.mxu0 0.0
        %4746 = vmatmul.mubr.f32.gmra.mrb[0].mxu0 %v4608
        %v4747 = vpop.f32.mrb[0].mxu0
        %v4748 = vadd.f32 0.0, %v4747
        %v4749 = vpop.f32.mrb[0].mxu0
        %4750 = vdwg.mxu0
        %v4751 = vadd.f32 %v4531, %v4677
        %v4752 = vadd.f32 %v4533, %v4679
        %v4753 = vadd.f32 %v4602, %v4748
        %s4754 = scalar_lea.vmem %s4, 64
        %v4755 = vld [vmem:[%s4754] sm:$0xff]
        %4757 = vset.pattern.permute.xlu0 0
        %4758 = vperm.xlu0 %4757, %v4755
        %v4759 = vpop.permute.xlu0 %4758
        %v4761 = vadd.f32 %v4751, %v4759
        %v4762 = vadd.f32 %v4752, %v4759
        %v4763 = vadd.f32 %v4753, %v4759
        %v4764 = vmul.f32 %v4761, %v528
        %v4765 = vmul.f32 %v4762, %v532
        %v4766 = vmul.f32 %v4763, %v536
        %v4767 = vadd.f32 %v4764, %v3522
        %v4768 = vadd.f32 %v4765, %v3523
        %v4769 = vadd.f32 %v4766, %v3524
        %s4770 = scalar_lea.vmem %s3, 40
        %v4771 = vld [vmem:[%s4770] sm:$0xff]
        %s4772 = scalar_lea.vmem %s3, 48
        %v4773 = vld [vmem:[%s4772] sm:$0xff]
        %v4775 = vsel %vm1525, %v4773, 0
        %4777 = vmatprep.subr.mxu0 %v1520
        %4778 = vmatpush1.msra.mxu0 %v1519
        %4779 = vmatprep.subr.mxu0 0.0
        %4780 = vmatpush1.msra.mxu0 0.0
        %4781 = vmatprep.subr.mxu0 0.0
        %4782 = vmatpush1.msra.mxu0 0.0
        %4783 = vmatprep.subr.mxu0 0.0
        %4784 = vmatpush1.msra.mxu0 0.0
        %4785 = vmatprep.subr.mxu0 0.0
        %4786 = vmatpush1.msra.mxu0 0.0
        %4787 = vmatprep.subr.mxu0 0.0
        %4788 = vmatpush1.msra.mxu0 0.0
        %4789 = vmatprep.subr.mxu0 0.0
        %4790 = vmatpush1.msra.mxu0 0.0
        %4791 = vmatprep.subr.mxu0 0.0
        %4792 = vmatpush1.msra.mxu0 0.0
        %4793 = vmatprep.subr.mxu0 0.0
        %4794 = vmatpush1.msra.mxu0 0.0
        %4795 = vmatprep.subr.mxu0 0.0
        %4796 = vmatpush1.msra.mxu0 0.0
        %4797 = vmatprep.subr.mxu0 0.0
        %4798 = vmatpush1.msra.mxu0 0.0
        %4799 = vmatprep.subr.mxu0 0.0
        %4800 = vmatpush1.msra.mxu0 0.0
        %4801 = vmatprep.subr.mxu0 0.0
        %4802 = vmatpush1.msra.mxu0 0.0
        %4803 = vmatprep.subr.mxu0 0.0
        %4804 = vmatpush1.msra.mxu0 0.0
        %4805 = vmatprep.subr.mxu0 0.0
        %4806 = vmatpush1.msra.mxu0 0.0
        %4807 = vmatprep.subr.mxu0 0.0
        %4808 = vmatpush1.msra.mxu0 0.0
        %4809 = vmatprep.subr.mxu0 0.0
        %4810 = vmatpush1.msra.mxu0 0.0
        %4811 = vmatprep.subr.mxu0 0.0
        %4812 = vmatpush1.msra.mxu0 0.0
        %4813 = vmatprep.subr.mxu0 0.0
        %4814 = vmatpush1.msra.mxu0 0.0
        %4815 = vmatprep.subr.mxu0 0.0
        %4816 = vmatpush1.msra.mxu0 0.0
        %4817 = vmatprep.subr.mxu0 0.0
        %4818 = vmatpush1.msra.mxu0 0.0
        %4819 = vmatprep.subr.mxu0 0.0
        %4820 = vmatpush1.msra.mxu0 0.0
        %4821 = vmatprep.subr.mxu0 0.0
        %4822 = vmatpush1.msra.mxu0 0.0
        %4823 = vmatprep.subr.mxu0 0.0
        %4824 = vmatpush1.msra.mxu0 0.0
        %4825 = vmatprep.subr.mxu0 0.0
        %4826 = vmatpush1.msra.mxu0 0.0
        %4827 = vmatprep.subr.mxu0 0.0
        %4828 = vmatpush1.msra.mxu0 0.0
        %4829 = vmatprep.subr.mxu0 0.0
        %4830 = vmatpush1.msra.mxu0 0.0
        %4831 = vmatprep.subr.mxu0 0.0
        %4832 = vmatpush1.msra.mxu0 0.0
        %4833 = vmatprep.subr.mxu0 0.0
        %4834 = vmatpush1.msra.mxu0 0.0
        %4835 = vmatprep.subr.mxu0 0.0
        %4836 = vmatpush1.msra.mxu0 0.0
        %4837 = vmatprep.subr.mxu0 0.0
        %4838 = vmatpush1.msra.mxu0 0.0
        %4839 = vmatprep.subr.mxu0 0.0
        %4840 = vmatpush1.msra.mxu0 0.0
        %4841 = vmatprep.mubr.f32.mxu0 0.0
        %4842 = vmatmul.mubr.f32.gmra.mrb[0].mxu0 %v4775
        %v4843 = vpop.f32.mrb[0].mxu0
        %v4844 = vadd.f32 0.0, %v4843
        %v4845 = vpop.f32.mrb[0].mxu0
        %v4846 = vadd.f32 0.0, %v4845
        %4847 = vdwg.mxu0
        %4848 = vmatprep.subr.mxu0 0.0
        %4849 = vmatpush1.msra.mxu0 %v1521
        %4850 = vmatprep.subr.mxu0 0.0
        %4851 = vmatpush1.msra.mxu0 0.0
        %4852 = vmatprep.subr.mxu0 0.0
        %4853 = vmatpush1.msra.mxu0 0.0
        %4854 = vmatprep.subr.mxu0 0.0
        %4855 = vmatpush1.msra.mxu0 0.0
        %4856 = vmatprep.subr.mxu0 0.0
        %4857 = vmatpush1.msra.mxu0 0.0
        %4858 = vmatprep.subr.mxu0 0.0
        %4859 = vmatpush1.msra.mxu0 0.0
        %4860 = vmatprep.subr.mxu0 0.0
        %4861 = vmatpush1.msra.mxu0 0.0
        %4862 = vmatprep.subr.mxu0 0.0
        %4863 = vmatpush1.msra.mxu0 0.0
        %4864 = vmatprep.subr.mxu0 0.0
        %4865 = vmatpush1.msra.mxu0 0.0
        %4866 = vmatprep.subr.mxu0 0.0
        %4867 = vmatpush1.msra.mxu0 0.0
        %4868 = vmatprep.subr.mxu0 0.0
        %4869 = vmatpush1.msra.mxu0 0.0
        %4870 = vmatprep.subr.mxu0 0.0
        %4871 = vmatpush1.msra.mxu0 0.0
        %4872 = vmatprep.subr.mxu0 0.0
        %4873 = vmatpush1.msra.mxu0 0.0
        %4874 = vmatprep.subr.mxu0 0.0
        %4875 = vmatpush1.msra.mxu0 0.0
        %4876 = vmatprep.subr.mxu0 0.0
        %4877 = vmatpush1.msra.mxu0 0.0
        %4878 = vmatprep.subr.mxu0 0.0
        %4879 = vmatpush1.msra.mxu0 0.0
        %4880 = vmatprep.subr.mxu0 0.0
        %4881 = vmatpush1.msra.mxu0 0.0
        %4882 = vmatprep.subr.mxu0 0.0
        %4883 = vmatpush1.msra.mxu0 0.0
        %4884 = vmatprep.subr.mxu0 0.0
        %4885 = vmatpush1.msra.mxu0 0.0
        %4886 = vmatprep.subr.mxu0 0.0
        %4887 = vmatpush1.msra.mxu0 0.0
        %4888 = vmatprep.subr.mxu0 0.0
        %4889 = vmatpush1.msra.mxu0 0.0
        %4890 = vmatprep.subr.mxu0 0.0
        %4891 = vmatpush1.msra.mxu0 0.0
        %4892 = vmatprep.subr.mxu0 0.0
        %4893 = vmatpush1.msra.mxu0 0.0
        %4894 = vmatprep.subr.mxu0 0.0
        %4895 = vmatpush1.msra.mxu0 0.0
        %4896 = vmatprep.subr.mxu0 0.0
        %4897 = vmatpush1.msra.mxu0 0.0
        %4898 = vmatprep.subr.mxu0 0.0
        %4899 = vmatpush1.msra.mxu0 0.0
        %4900 = vmatprep.subr.mxu0 0.0
        %4901 = vmatpush1.msra.mxu0 0.0
        %4902 = vmatprep.subr.mxu0 0.0
        %4903 = vmatpush1.msra.mxu0 0.0
        %4904 = vmatprep.subr.mxu0 0.0
        %4905 = vmatpush1.msra.mxu0 0.0
        %4906 = vmatprep.subr.mxu0 0.0
        %4907 = vmatpush1.msra.mxu0 0.0
        %4908 = vmatprep.subr.mxu0 0.0
        %4909 = vmatpush1.msra.mxu0 0.0
        %4910 = vmatprep.subr.mxu0 0.0
        %4911 = vmatpush1.msra.mxu0 0.0
        %4912 = vmatprep.mubr.f32.mxu0 0.0
        %4913 = vmatmul.mubr.f32.gmra.mrb[0].mxu0 %v4775
        %v4914 = vpop.f32.mrb[0].mxu0
        %v4915 = vadd.f32 0.0, %v4914
        %v4916 = vpop.f32.mrb[0].mxu0
        %4917 = vdwg.mxu0
        %v4919 = vsel %vm1525, %v4771, 0
        %4921 = vmatprep.subr.mxu0 %v252
        %4922 = vmatpush1.msra.mxu0 %v251
        %4923 = vmatprep.subr.mxu0 0.0
        %4924 = vmatpush1.msra.mxu0 0.0
        %4925 = vmatprep.subr.mxu0 0.0
        %4926 = vmatpush1.msra.mxu0 0.0
        %4927 = vmatprep.subr.mxu0 0.0
        %4928 = vmatpush1.msra.mxu0 0.0
        %4929 = vmatprep.subr.mxu0 0.0
        %4930 = vmatpush1.msra.mxu0 0.0
        %4931 = vmatprep.subr.mxu0 0.0
        %4932 = vmatpush1.msra.mxu0 0.0
        %4933 = vmatprep.subr.mxu0 0.0
        %4934 = vmatpush1.msra.mxu0 0.0
        %4935 = vmatprep.subr.mxu0 0.0
        %4936 = vmatpush1.msra.mxu0 0.0
        %4937 = vmatprep.subr.mxu0 0.0
        %4938 = vmatpush1.msra.mxu0 0.0
        %4939 = vmatprep.subr.mxu0 0.0
        %4940 = vmatpush1.msra.mxu0 0.0
        %4941 = vmatprep.subr.mxu0 0.0
        %4942 = vmatpush1.msra.mxu0 0.0
        %4943 = vmatprep.subr.mxu0 0.0
        %4944 = vmatpush1.msra.mxu0 0.0
        %4945 = vmatprep.subr.mxu0 0.0
        %4946 = vmatpush1.msra.mxu0 0.0
        %4947 = vmatprep.subr.mxu0 0.0
        %4948 = vmatpush1.msra.mxu0 0.0
        %4949 = vmatprep.subr.mxu0 0.0
        %4950 = vmatpush1.msra.mxu0 0.0
        %4951 = vmatprep.subr.mxu0 0.0
        %4952 = vmatpush1.msra.mxu0 0.0
        %4953 = vmatprep.subr.mxu0 0.0
        %4954 = vmatpush1.msra.mxu0 0.0
        %4955 = vmatprep.subr.mxu0 0.0
        %4956 = vmatpush1.msra.mxu0 0.0
        %4957 = vmatprep.subr.mxu0 0.0
        %4958 = vmatpush1.msra.mxu0 0.0
        %4959 = vmatprep.subr.mxu0 0.0
        %4960 = vmatpush1.msra.mxu0 0.0
        %4961 = vmatprep.subr.mxu0 0.0
        %4962 = vmatpush1.msra.mxu0 0.0
        %4963 = vmatprep.subr.mxu0 0.0
        %4964 = vmatpush1.msra.mxu0 0.0
        %4965 = vmatprep.subr.mxu0 0.0
        %4966 = vmatpush1.msra.mxu0 0.0
        %4967 = vmatprep.subr.mxu0 0.0
        %4968 = vmatpush1.msra.mxu0 0.0
        %4969 = vmatprep.subr.mxu0 0.0
        %4970 = vmatpush1.msra.mxu0 0.0
        %4971 = vmatprep.subr.mxu0 0.0
        %4972 = vmatpush1.msra.mxu0 0.0
        %4973 = vmatprep.subr.mxu0 0.0
        %4974 = vmatpush1.msra.mxu0 0.0
        %4975 = vmatprep.subr.mxu0 0.0
        %4976 = vmatpush1.msra.mxu0 0.0
        %4977 = vmatprep.subr.mxu0 0.0
        %4978 = vmatpush1.msra.mxu0 0.0
        %4979 = vmatprep.subr.mxu0 0.0
        %4980 = vmatpush1.msra.mxu0 0.0
        %4981 = vmatprep.subr.mxu0 0.0
        %4982 = vmatpush1.msra.mxu0 0.0
        %4983 = vmatprep.subr.mxu0 0.0
        %4984 = vmatpush1.msra.mxu0 0.0
        %4985 = vmatprep.mubr.f32.mxu0 0.0
        %4986 = vmatmul.mubr.f32.gmra.mrb[0].mxu0 %v4919
        %v4987 = vpop.f32.mrb[0].mxu0
        %v4988 = vadd.f32 %v4844, %v4987
        %v4989 = vpop.f32.mrb[0].mxu0
        %v4990 = vadd.f32 %v4846, %v4989
        %4991 = vdwg.mxu0
        %4992 = vmatprep.subr.mxu0 0.0
        %4993 = vmatpush1.msra.mxu0 %v253
        %4994 = vmatprep.subr.mxu0 0.0
        %4995 = vmatpush1.msra.mxu0 0.0
        %4996 = vmatprep.subr.mxu0 0.0
        %4997 = vmatpush1.msra.mxu0 0.0
        %4998 = vmatprep.subr.mxu0 0.0
        %4999 = vmatpush1.msra.mxu0 0.0
        %5000 = vmatprep.subr.mxu0 0.0
        %5001 = vmatpush1.msra.mxu0 0.0
        %5002 = vmatprep.subr.mxu0 0.0
        %5003 = vmatpush1.msra.mxu0 0.0
        %5004 = vmatprep.subr.mxu0 0.0
        %5005 = vmatpush1.msra.mxu0 0.0
        %5006 = vmatprep.subr.mxu0 0.0
        %5007 = vmatpush1.msra.mxu0 0.0
        %5008 = vmatprep.subr.mxu0 0.0
        %5009 = vmatpush1.msra.mxu0 0.0
        %5010 = vmatprep.subr.mxu0 0.0
        %5011 = vmatpush1.msra.mxu0 0.0
        %5012 = vmatprep.subr.mxu0 0.0
        %5013 = vmatpush1.msra.mxu0 0.0
        %5014 = vmatprep.subr.mxu0 0.0
        %5015 = vmatpush1.msra.mxu0 0.0
        %5016 = vmatprep.subr.mxu0 0.0
        %5017 = vmatpush1.msra.mxu0 0.0
        %5018 = vmatprep.subr.mxu0 0.0
        %5019 = vmatpush1.msra.mxu0 0.0
        %5020 = vmatprep.subr.mxu0 0.0
        %5021 = vmatpush1.msra.mxu0 0.0
        %5022 = vmatprep.subr.mxu0 0.0
        %5023 = vmatpush1.msra.mxu0 0.0
        %5024 = vmatprep.subr.mxu0 0.0
        %5025 = vmatpush1.msra.mxu0 0.0
        %5026 = vmatprep.subr.mxu0 0.0
        %5027 = vmatpush1.msra.mxu0 0.0
        %5028 = vmatprep.subr.mxu0 0.0
        %5029 = vmatpush1.msra.mxu0 0.0
        %5030 = vmatprep.subr.mxu0 0.0
        %5031 = vmatpush1.msra.mxu0 0.0
        %5032 = vmatprep.subr.mxu0 0.0
        %5033 = vmatpush1.msra.mxu0 0.0
        %5034 = vmatprep.subr.mxu0 0.0
        %5035 = vmatpush1.msra.mxu0 0.0
        %5036 = vmatprep.subr.mxu0 0.0
        %5037 = vmatpush1.msra.mxu0 0.0
        %5038 = vmatprep.subr.mxu0 0.0
        %5039 = vmatpush1.msra.mxu0 0.0
        %5040 = vmatprep.subr.mxu0 0.0
        %5041 = vmatpush1.msra.mxu0 0.0
        %5042 = vmatprep.subr.mxu0 0.0
        %5043 = vmatpush1.msra.mxu0 0.0
        %5044 = vmatprep.subr.mxu0 0.0
        %5045 = vmatpush1.msra.mxu0 0.0
        %5046 = vmatprep.subr.mxu0 0.0
        %5047 = vmatpush1.msra.mxu0 0.0
        %5048 = vmatprep.subr.mxu0 0.0
        %5049 = vmatpush1.msra.mxu0 0.0
        %5050 = vmatprep.subr.mxu0 0.0
        %5051 = vmatpush1.msra.mxu0 0.0
        %5052 = vmatprep.subr.mxu0 0.0
        %5053 = vmatpush1.msra.mxu0 0.0
        %5054 = vmatprep.subr.mxu0 0.0
        %5055 = vmatpush1.msra.mxu0 0.0
        %5056 = vmatprep.mubr.f32.mxu0 0.0
        %5057 = vmatmul.mubr.f32.gmra.mrb[0].mxu0 %v4919
        %v5058 = vpop.f32.mrb[0].mxu0
        %v5059 = vadd.f32 %v4915, %v5058
        %v5060 = vpop.f32.mrb[0].mxu0
        %5061 = vdwg.mxu0
        %s5062 = scalar_lea.vmem %s3, 56
        %v5063 = vld [vmem:[%s5062] sm:$0xff]
        %v5065 = vsel %vm1525, %v5063, 0
        %5067 = vmatprep.subr.mxu0 %v3069
        %5068 = vmatpush1.msra.mxu0 %v3068
        %5069 = vmatprep.subr.mxu0 0.0
        %5070 = vmatpush1.msra.mxu0 0.0
        %5071 = vmatprep.subr.mxu0 0.0
        %5072 = vmatpush1.msra.mxu0 0.0
        %5073 = vmatprep.subr.mxu0 0.0
        %5074 = vmatpush1.msra.mxu0 0.0
        %5075 = vmatprep.subr.mxu0 0.0
        %5076 = vmatpush1.msra.mxu0 0.0
        %5077 = vmatprep.subr.mxu0 0.0
        %5078 = vmatpush1.msra.mxu0 0.0
        %5079 = vmatprep.subr.mxu0 0.0
        %5080 = vmatpush1.msra.mxu0 0.0
        %5081 = vmatprep.subr.mxu0 0.0
        %5082 = vmatpush1.msra.mxu0 0.0
        %5083 = vmatprep.subr.mxu0 0.0
        %5084 = vmatpush1.msra.mxu0 0.0
        %5085 = vmatprep.subr.mxu0 0.0
        %5086 = vmatpush1.msra.mxu0 0.0
        %5087 = vmatprep.subr.mxu0 0.0
        %5088 = vmatpush1.msra.mxu0 0.0
        %5089 = vmatprep.subr.mxu0 0.0
        %5090 = vmatpush1.msra.mxu0 0.0
        %5091 = vmatprep.subr.mxu0 0.0
        %5092 = vmatpush1.msra.mxu0 0.0
        %5093 = vmatprep.subr.mxu0 0.0
        %5094 = vmatpush1.msra.mxu0 0.0
        %5095 = vmatprep.subr.mxu0 0.0
        %5096 = vmatpush1.msra.mxu0 0.0
        %5097 = vmatprep.subr.mxu0 0.0
        %5098 = vmatpush1.msra.mxu0 0.0
        %5099 = vmatprep.subr.mxu0 0.0
        %5100 = vmatpush1.msra.mxu0 0.0
        %5101 = vmatprep.subr.mxu0 0.0
        %5102 = vmatpush1.msra.mxu0 0.0
        %5103 = vmatprep.subr.mxu0 0.0
        %5104 = vmatpush1.msra.mxu0 0.0
        %5105 = vmatprep.subr.mxu0 0.0
        %5106 = vmatpush1.msra.mxu0 0.0
        %5107 = vmatprep.subr.mxu0 0.0
        %5108 = vmatpush1.msra.mxu0 0.0
        %5109 = vmatprep.subr.mxu0 0.0
        %5110 = vmatpush1.msra.mxu0 0.0
        %5111 = vmatprep.subr.mxu0 0.0
        %5112 = vmatpush1.msra.mxu0 0.0
        %5113 = vmatprep.subr.mxu0 0.0
        %5114 = vmatpush1.msra.mxu0 0.0
        %5115 = vmatprep.subr.mxu0 0.0
        %5116 = vmatpush1.msra.mxu0 0.0
        %5117 = vmatprep.subr.mxu0 0.0
        %5118 = vmatpush1.msra.mxu0 0.0
        %5119 = vmatprep.subr.mxu0 0.0
        %5120 = vmatpush1.msra.mxu0 0.0
        %5121 = vmatprep.subr.mxu0 0.0
        %5122 = vmatpush1.msra.mxu0 0.0
        %5123 = vmatprep.subr.mxu0 0.0
        %5124 = vmatpush1.msra.mxu0 0.0
        %5125 = vmatprep.subr.mxu0 0.0
        %5126 = vmatpush1.msra.mxu0 0.0
        %5127 = vmatprep.subr.mxu0 0.0
        %5128 = vmatpush1.msra.mxu0 0.0
        %5129 = vmatprep.subr.mxu0 0.0
        %5130 = vmatpush1.msra.mxu0 0.0
        %5131 = vmatprep.mubr.f32.mxu0 0.0
        %5132 = vmatmul.mubr.f32.gmra.mrb[0].mxu0 %v5065
        %v5133 = vpop.f32.mrb[0].mxu0
        %v5134 = vadd.f32 0.0, %v5133
        %v5135 = vpop.f32.mrb[0].mxu0
        %v5136 = vadd.f32 0.0, %v5135
        %5137 = vdwg.mxu0
        %5138 = vmatprep.subr.mxu0 0.0
        %5139 = vmatpush1.msra.mxu0 %v3070
        %5140 = vmatprep.subr.mxu0 0.0
        %5141 = vmatpush1.msra.mxu0 0.0
        %5142 = vmatprep.subr.mxu0 0.0
        %5143 = vmatpush1.msra.mxu0 0.0
        %5144 = vmatprep.subr.mxu0 0.0
        %5145 = vmatpush1.msra.mxu0 0.0
        %5146 = vmatprep.subr.mxu0 0.0
        %5147 = vmatpush1.msra.mxu0 0.0
        %5148 = vmatprep.subr.mxu0 0.0
        %5149 = vmatpush1.msra.mxu0 0.0
        %5150 = vmatprep.subr.mxu0 0.0
        %5151 = vmatpush1.msra.mxu0 0.0
        %5152 = vmatprep.subr.mxu0 0.0
        %5153 = vmatpush1.msra.mxu0 0.0
        %5154 = vmatprep.subr.mxu0 0.0
        %5155 = vmatpush1.msra.mxu0 0.0
        %5156 = vmatprep.subr.mxu0 0.0
        %5157 = vmatpush1.msra.mxu0 0.0
        %5158 = vmatprep.subr.mxu0 0.0
        %5159 = vmatpush1.msra.mxu0 0.0
        %5160 = vmatprep.subr.mxu0 0.0
        %5161 = vmatpush1.msra.mxu0 0.0
        %5162 = vmatprep.subr.mxu0 0.0
        %5163 = vmatpush1.msra.mxu0 0.0
        %5164 = vmatprep.subr.mxu0 0.0
        %5165 = vmatpush1.msra.mxu0 0.0
        %5166 = vmatprep.subr.mxu0 0.0
        %5167 = vmatpush1.msra.mxu0 0.0
        %5168 = vmatprep.subr.mxu0 0.0
        %5169 = vmatpush1.msra.mxu0 0.0
        %5170 = vmatprep.subr.mxu0 0.0
        %5171 = vmatpush1.msra.mxu0 0.0
        %5172 = vmatprep.subr.mxu0 0.0
        %5173 = vmatpush1.msra.mxu0 0.0
        %5174 = vmatprep.subr.mxu0 0.0
        %5175 = vmatpush1.msra.mxu0 0.0
        %5176 = vmatprep.subr.mxu0 0.0
        %5177 = vmatpush1.msra.mxu0 0.0
        %5178 = vmatprep.subr.mxu0 0.0
        %5179 = vmatpush1.msra.mxu0 0.0
        %5180 = vmatprep.subr.mxu0 0.0
        %5181 = vmatpush1.msra.mxu0 0.0
        %5182 = vmatprep.subr.mxu0 0.0
        %5183 = vmatpush1.msra.mxu0 0.0
        %5184 = vmatprep.subr.mxu0 0.0
        %5185 = vmatpush1.msra.mxu0 0.0
        %5186 = vmatprep.subr.mxu0 0.0
        %5187 = vmatpush1.msra.mxu0 0.0
        %5188 = vmatprep.subr.mxu0 0.0
        %5189 = vmatpush1.msra.mxu0 0.0
        %5190 = vmatprep.subr.mxu0 0.0
        %5191 = vmatpush1.msra.mxu0 0.0
        %5192 = vmatprep.subr.mxu0 0.0
        %5193 = vmatpush1.msra.mxu0 0.0
        %5194 = vmatprep.subr.mxu0 0.0
        %5195 = vmatpush1.msra.mxu0 0.0
        %5196 = vmatprep.subr.mxu0 0.0
        %5197 = vmatpush1.msra.mxu0 0.0
        %5198 = vmatprep.subr.mxu0 0.0
        %5199 = vmatpush1.msra.mxu0 0.0
        %5200 = vmatprep.subr.mxu0 0.0
        %5201 = vmatpush1.msra.mxu0 0.0
        %5202 = vmatprep.mubr.f32.mxu0 0.0
        %5203 = vmatmul.mubr.f32.gmra.mrb[0].mxu0 %v5065
        %v5204 = vpop.f32.mrb[0].mxu0
        %v5205 = vadd.f32 0.0, %v5204
        %v5206 = vpop.f32.mrb[0].mxu0
        %5207 = vdwg.mxu0
        %v5208 = vadd.f32 %v4988, %v5134
        %v5209 = vadd.f32 %v4990, %v5136
        %v5210 = vadd.f32 %v5059, %v5205
        %s5211 = scalar_lea.vmem %s3, 64
        %v5212 = vld [vmem:[%s5211] sm:$0xff]
        %v5214 = vsel %vm1525, %v5212, 0
        %5216 = vmatprep.subr.mxu0 %v4768
        %5217 = vmatpush1.msra.mxu0 %v4767
        %5218 = vmatprep.subr.mxu0 0.0
        %5219 = vmatpush1.msra.mxu0 0.0
        %5220 = vmatprep.subr.mxu0 0.0
        %5221 = vmatpush1.msra.mxu0 0.0
        %5222 = vmatprep.subr.mxu0 0.0
        %5223 = vmatpush1.msra.mxu0 0.0
        %5224 = vmatprep.subr.mxu0 0.0
        %5225 = vmatpush1.msra.mxu0 0.0
        %5226 = vmatprep.subr.mxu0 0.0
        %5227 = vmatpush1.msra.mxu0 0.0
        %5228 = vmatprep.subr.mxu0 0.0
        %5229 = vmatpush1.msra.mxu0 0.0
        %5230 = vmatprep.subr.mxu0 0.0
        %5231 = vmatpush1.msra.mxu0 0.0
        %5232 = vmatprep.subr.mxu0 0.0
        %5233 = vmatpush1.msra.mxu0 0.0
        %5234 = vmatprep.subr.mxu0 0.0
        %5235 = vmatpush1.msra.mxu0 0.0
        %5236 = vmatprep.subr.mxu0 0.0
        %5237 = vmatpush1.msra.mxu0 0.0
        %5238 = vmatprep.subr.mxu0 0.0
        %5239 = vmatpush1.msra.mxu0 0.0
        %5240 = vmatprep.subr.mxu0 0.0
        %5241 = vmatpush1.msra.mxu0 0.0
        %5242 = vmatprep.subr.mxu0 0.0
        %5243 = vmatpush1.msra.mxu0 0.0
        %5244 = vmatprep.subr.mxu0 0.0
        %5245 = vmatpush1.msra.mxu0 0.0
        %5246 = vmatprep.subr.mxu0 0.0
        %5247 = vmatpush1.msra.mxu0 0.0
        %5248 = vmatprep.subr.mxu0 0.0
        %5249 = vmatpush1.msra.mxu0 0.0
        %5250 = vmatprep.subr.mxu0 0.0
        %5251 = vmatpush1.msra.mxu0 0.0
        %5252 = vmatprep.subr.mxu0 0.0
        %5253 = vmatpush1.msra.mxu0 0.0
        %5254 = vmatprep.subr.mxu0 0.0
        %5255 = vmatpush1.msra.mxu0 0.0
        %5256 = vmatprep.subr.mxu0 0.0
        %5257 = vmatpush1.msra.mxu0 0.0
        %5258 = vmatprep.subr.mxu0 0.0
        %5259 = vmatpush1.msra.mxu0 0.0
        %5260 = vmatprep.subr.mxu0 0.0
        %5261 = vmatpush1.msra.mxu0 0.0
        %5262 = vmatprep.subr.mxu0 0.0
        %5263 = vmatpush1.msra.mxu0 0.0
        %5264 = vmatprep.subr.mxu0 0.0
        %5265 = vmatpush1.msra.mxu0 0.0
        %5266 = vmatprep.subr.mxu0 0.0
        %5267 = vmatpush1.msra.mxu0 0.0
        %5268 = vmatprep.subr.mxu0 0.0
        %5269 = vmatpush1.msra.mxu0 0.0
        %5270 = vmatprep.subr.mxu0 0.0
        %5271 = vmatpush1.msra.mxu0 0.0
        %5272 = vmatprep.subr.mxu0 0.0
        %5273 = vmatpush1.msra.mxu0 0.0
        %5274 = vmatprep.subr.mxu0 0.0
        %5275 = vmatpush1.msra.mxu0 0.0
        %5276 = vmatprep.subr.mxu0 0.0
        %5277 = vmatpush1.msra.mxu0 0.0
        %5278 = vmatprep.subr.mxu0 0.0
        %5279 = vmatpush1.msra.mxu0 0.0
        %5280 = vmatprep.mubr.f32.mxu0 0.0
        %5281 = vmatmul.mubr.f32.gmra.mrb[0].mxu0 %v5214
        %v5282 = vpop.f32.mrb[0].mxu0
        %v5283 = vadd.f32 0.0, %v5282
        %v5284 = vpop.f32.mrb[0].mxu0
        %v5285 = vadd.f32 0.0, %v5284
        %5286 = vdwg.mxu0
        %5287 = vmatprep.subr.mxu0 0.0
        %5288 = vmatpush1.msra.mxu0 %v4769
        %5289 = vmatprep.subr.mxu0 0.0
        %5290 = vmatpush1.msra.mxu0 0.0
        %5291 = vmatprep.subr.mxu0 0.0
        %5292 = vmatpush1.msra.mxu0 0.0
        %5293 = vmatprep.subr.mxu0 0.0
        %5294 = vmatpush1.msra.mxu0 0.0
        %5295 = vmatprep.subr.mxu0 0.0
        %5296 = vmatpush1.msra.mxu0 0.0
        %5297 = vmatprep.subr.mxu0 0.0
        %5298 = vmatpush1.msra.mxu0 0.0
        %5299 = vmatprep.subr.mxu0 0.0
        %5300 = vmatpush1.msra.mxu0 0.0
        %5301 = vmatprep.subr.mxu0 0.0
        %5302 = vmatpush1.msra.mxu0 0.0
        %5303 = vmatprep.subr.mxu0 0.0
        %5304 = vmatpush1.msra.mxu0 0.0
        %5305 = vmatprep.subr.mxu0 0.0
        %5306 = vmatpush1.msra.mxu0 0.0
        %5307 = vmatprep.subr.mxu0 0.0
        %5308 = vmatpush1.msra.mxu0 0.0
        %5309 = vmatprep.subr.mxu0 0.0
        %5310 = vmatpush1.msra.mxu0 0.0
        %5311 = vmatprep.subr.mxu0 0.0
        %5312 = vmatpush1.msra.mxu0 0.0
        %5313 = vmatprep.subr.mxu0 0.0
        %5314 = vmatpush1.msra.mxu0 0.0
        %5315 = vmatprep.subr.mxu0 0.0
        %5316 = vmatpush1.msra.mxu0 0.0
        %5317 = vmatprep.subr.mxu0 0.0
        %5318 = vmatpush1.msra.mxu0 0.0
        %5319 = vmatprep.subr.mxu0 0.0
        %5320 = vmatpush1.msra.mxu0 0.0
        %5321 = vmatprep.subr.mxu0 0.0
        %5322 = vmatpush1.msra.mxu0 0.0
        %5323 = vmatprep.subr.mxu0 0.0
        %5324 = vmatpush1.msra.mxu0 0.0
        %5325 = vmatprep.subr.mxu0 0.0
        %5326 = vmatpush1.msra.mxu0 0.0
        %5327 = vmatprep.subr.mxu0 0.0
        %5328 = vmatpush1.msra.mxu0 0.0
        %5329 = vmatprep.subr.mxu0 0.0
        %5330 = vmatpush1.msra.mxu0 0.0
        %5331 = vmatprep.subr.mxu0 0.0
        %5332 = vmatpush1.msra.mxu0 0.0
        %5333 = vmatprep.subr.mxu0 0.0
        %5334 = vmatpush1.msra.mxu0 0.0
        %5335 = vmatprep.subr.mxu0 0.0
        %5336 = vmatpush1.msra.mxu0 0.0
        %5337 = vmatprep.subr.mxu0 0.0
        %5338 = vmatpush1.msra.mxu0 0.0
        %5339 = vmatprep.subr.mxu0 0.0
        %5340 = vmatpush1.msra.mxu0 0.0
        %5341 = vmatprep.subr.mxu0 0.0
        %5342 = vmatpush1.msra.mxu0 0.0
        %5343 = vmatprep.subr.mxu0 0.0
        %5344 = vmatpush1.msra.mxu0 0.0
        %5345 = vmatprep.subr.mxu0 0.0
        %5346 = vmatpush1.msra.mxu0 0.0
        %5347 = vmatprep.subr.mxu0 0.0
        %5348 = vmatpush1.msra.mxu0 0.0
        %5349 = vmatprep.subr.mxu0 0.0
        %5350 = vmatpush1.msra.mxu0 0.0
        %5351 = vmatprep.mubr.f32.mxu0 0.0
        %5352 = vmatmul.mubr.f32.gmra.mrb[0].mxu0 %v5214
        %v5353 = vpop.f32.mrb[0].mxu0
        %v5354 = vadd.f32 0.0, %v5353
        %v5355 = vpop.f32.mrb[0].mxu0
        %5356 = vdwg.mxu0
        %v5357 = vadd.f32 %v5208, %v5283
        %v5358 = vadd.f32 %v5209, %v5285
        %v5359 = vadd.f32 %v5210, %v5354
        %s5360 = scalar_lea.vmem %s5, 16
        %v5361 = vld [vmem:[%s5360] sm:$0xff]
        %5363 = vset.pattern.permute.xlu0 0
        %5364 = vperm.xlu0 %5363, %v5361
        %v5365 = vpop.permute.xlu0 %5364
        %v5367 = vadd.f32 %v5357, %v5365
        %v5368 = vadd.f32 %v5358, %v5365
        %v5369 = vadd.f32 %v5359, %v5365
        %v5370 = vmul.f32 %v5367, %v528
        %v5371 = vmul.f32 %v5368, %v532
        %v5372 = vmul.f32 %v5369, %v536
        %5373 = vst [vmem:[%s244] sm:$0xff] %v5370
        %5374 = vst [vmem:[%s244 + $0x8] sm:$0xff] %v5371
        %5375 = vst [vmem:[%s244 + $0x10] sm:$0xff] %v5372
        %s5376 = sand.u32 %s159, 1
        %s5377 = scalar_lea.sflag [#allocation3], %s5376
        %s5378 = sand.u32 %s159, 1
        %s5379 = smul.addr %s5378, 24
        %s5380 = scalar_lea.vmem [#allocation2], %s5379
        // Predicated region
        $region45: #{tpu_custom_call.1} parent=43 // pred_check
          %p5381 = pneg %p169
        $region46: #{tpu_custom_call.1} parent=43 // pred_check_branch
          %5383 = sbr.rel (%p5381) target = $region48
        $region47: #{tpu_custom_call.1} parent=43 // pred_region
          %s5385 = ssub.s32 384, 384
          %5386 = vsyncadd %s5377, %s5385
          %s5387 = smul.addr %s20, 3
          %s5388 = smul.addr %s5387, 128
          %s5389 = scalar_lea.hbm %s6, %s5388
          %s5391 = sshll.u32 %s5380, 4
          %s5392 = int_to_ptr.vmem [resolvable:$true] %s5391
          %5394 = dma.vmem_to_hbm [thread:$0]  %s5392, 384, %s5389, %s5377
        $region48: #{tpu_custom_call.1} parent=43 // pred_fallthru
          _
      $region44: #{tpu_custom_call.1} parent=5 // pred_fallthru
        _
      %p5395 = scmp.le.s32.totalorder 2, %s15
      // Predicated region
      $region49: #{tpu_custom_call.1} parent=5 // pred_check
        %p5396 = pneg %p5395
      $region50: #{tpu_custom_call.1} parent=5 // pred_check_branch
        %5398 = sbr.rel (%p5396) target = $region52
      $region51: #{tpu_custom_call.1} parent=5 // pred_region
        %s5399 = ssub.s32 %s15, 2
        // Predicated region
        $region53: #{tpu_custom_call.1} parent=51 // pred_check
          %p5400 = pneg %p175
        $region54: #{tpu_custom_call.1} parent=51 // pred_check_branch
          %5402 = sbr.rel (%p5400) target = $region56
        $region55: #{tpu_custom_call.1} parent=51 // pred_region
          %s5403 = sand.u32 %s160, 1
          %s5404 = scalar_lea.sflag [#allocation3], %s5403
          %s5405 = sand.u32 %s160, 1
          %s5406 = smul.addr %s5405, 24
          %s5407 = scalar_lea.vmem [#allocation2], %s5406
          %5408 = dma.done %s5404, 384
        $region56: #{tpu_custom_call.1} parent=51 // pred_fallthru
          _
      $region52: #{tpu_custom_call.1} parent=5 // pred_fallthru
        _
    $region6: #{tpu_custom_call.1} parent=1 // loop_footer
      %s19 = sadd.s32 1, %s15
    $region7: #{tpu_custom_call.1} parent=1 // loop_footer_branch
      %14 = sbr.rel target = $region3
    $region8: #{tpu_custom_call.1} parent=1 // loop_exit
      _
    %5409 = vsyncpa [#allocation3], 1
    %s5410 = scalar_lea.sflag [#allocation3], 1
    %5411 = vsyncpa %s5410, 1

</llo_original>
